<compile_context>
chip_gen: v6e
topology: v6e:2x2x1
jax: 0.10.0
libtpu: 0.0.40
codegen_flags: <defaults>
</compile_context>

<pallas_src>
import functools

import jax
import jax.numpy as jnp
from jax import lax
from jax.experimental import pallas as pl
from jax.experimental.pallas import tpu as pltpu


# ----------------------------------------------------------------------------
# Fused Pallas kernel: all layers, both directions (packed), and the decoder.
# ----------------------------------------------------------------------------
def _fused_kernel(*refs, T, B, H, num_layers):
    """Positional ref layout:

    refs[0]                    : x_flat (T*B, E)  embedded tokens
    refs[1 : 1+3*L]            : per layer [wx_packed (In,8H), u_packed (2H,8H),
                                            b_packed (1,8H)]
    refs[1+3*L : 4+3*L]        : dwa (2H,2), dwb (2H,2), db (1,2)   decoder
    refs[4+3*L]                : out_ref (B, 2) logits
    refs[5+3*L]                : gx scratch (T*B, 8H) VMEM (reused per layer)

    Packed column order of the 8H gate axis: [i,f,g,o]_fw (4H) | [i,f,g,o]_bw (4H).
    U_packed is block-diagonal: rows 0:H (h_f) -> cols 0:4H, rows H:2H (h_b) ->
    cols 4H:8H.
    """
    n_w = num_layers * 3
    x_ref = refs[0]
    layer_refs = refs[1:1 + n_w]
    dwa_ref, dwb_ref, db_ref = refs[1 + n_w:4 + n_w]
    out_ref = refs[4 + n_w]
    gx_ref = refs[5 + n_w]

    H2, H4, H8 = 2 * H, 4 * H, 8 * H

    # Hoisted constants (never rebuilt inside the loops): lane mask selecting
    # the two "g" (cell-candidate) blocks, and the 0.5/1.0 pre-scale so that a
    # SINGLE tanh pass implements both sigmoid and tanh:
    #   sigmoid(x) = 0.5 * tanh(0.5 * x) + 0.5
    lane = lax.broadcasted_iota(jnp.int32, (B, H8), 1)
    is_g = ((lane >= 2 * H) & (lane < 3 * H)) | ((lane >= 6 * H) & (lane < 7 * H))
    pre_scale = jnp.where(is_g, jnp.float32(1.0), jnp.float32(0.5))

    layer_in = x_ref[...]                                           # (T*B, In)
    for layer in range(num_layers):
        wx_ref, u_ref, b_ref = layer_refs[3 * layer:3 * layer + 3]

        # Fused hoisted input projection for BOTH directions: one wide matmul
        # (T*B, In) @ (In, 8H), bias folded in, stored once (lane-dense) into
        # the reused gx scratch.
        gx_ref[...] = (jnp.dot(layer_in, wx_ref[...],
                               preferred_element_type=jnp.float32) + b_ref[...])

        u_packed = u_ref[...]                                       # (2H, 8H)

        h_cat = jnp.zeros((B, H2), jnp.float32)                     # [h_f | h_b]
        c_f = jnp.zeros((B, H), jnp.float32)
        c_b = jnp.zeros((B, H), jnp.float32)
        fw_h = [None] * T
        bw_h = [None] * T

        # Packed fw+bw recurrence: at step s, the fw half processes time s and
        # the bw half processes time T-1-s. T is small & static -> unrolled.
        for s in range(T):
            tb = T - 1 - s
            gx_f = gx_ref[s * B:(s + 1) * B, 0:H4]                  # fw @ t=s
            gx_b = gx_ref[tb * B:(tb + 1) * B, H4:H8]               # bw @ t=T-1-s
            gates = (jnp.concatenate([gx_f, gx_b], axis=1)
                     + jnp.dot(h_cat, u_packed,
                               preferred_element_type=jnp.float32))  # (B, 8H)

            # One EUP pass over the packed gates.
            t_all = jnp.tanh(gates * pre_scale)
            act = jnp.where(is_g, t_all, 0.5 * t_all + 0.5)

            i_f = act[:, 0 * H:1 * H]
            f_f = act[:, 1 * H:2 * H]
            g_f = act[:, 2 * H:3 * H]
            o_f = act[:, 3 * H:4 * H]
            i_b = act[:, 4 * H:5 * H]
            f_b = act[:, 5 * H:6 * H]
            g_b = act[:, 6 * H:7 * H]
            o_b = act[:, 7 * H:8 * H]

            c_f = f_f * c_f + i_f * g_f
            c_b = f_b * c_b + i_b * g_b
            h_f = o_f * jnp.tanh(c_f)
            h_b = o_b * jnp.tanh(c_b)
            h_cat = jnp.concatenate([h_f, h_b], axis=1)

            fw_h[s] = h_f                                           # fw hidden @ t=s
            bw_h[tb] = h_b                                          # bw hidden @ t=T-1-s

        # Layer output (T*B, 2H): assembled as ONE lane-dense value (no per-step
        # masked scratch stores, no seq scratch at all).
        layer_in = jnp.concatenate(
            [jnp.concatenate([fw_h[t], bw_h[t]], axis=1) for t in range(T)],
            axis=0)

    # Decoder epilogue:
    #   encoding = cat(outputs[0], outputs[-1])  (B, 4H)
    #   logits   = encoding @ W_dec^T + b_dec
    # pre-split decoder weight avoids an in-kernel concat.
    first = layer_in[0:B, :]                   # outputs[0]   (B, 2H)
    final = layer_in[(T - 1) * B:T * B, :]     # outputs[-1]  (B, 2H)
    out_ref[...] = (jnp.dot(first, dwa_ref[...], preferred_element_type=jnp.float32)
                    + jnp.dot(final, dwb_ref[...], preferred_element_type=jnp.float32)
                    + db_ref[...])


# ----------------------------------------------------------------------------
# Forward pass (embedding gather is plain-JAX glue; everything else is Pallas).
# ----------------------------------------------------------------------------
@jax.jit
def lstm_text_classifier_forward(params, tokens):
    """tokens: (batch, seq) int32 -> logits (batch, 2)."""
    # embeddings = self.embedding(inputs.T)  -> (seq, batch, embed)
    emb = jnp.take(params["embedding"], tokens.T, axis=0).astype(jnp.float32)
    T, B, E = emb.shape
    H = params["lstm"][0]["u_packed"].shape[0] // 2
    num_layers = len(params["lstm"])

    x_flat = emb.reshape(T * B, E)

    flat_w = []
    for layer in params["lstm"]:
        flat_w += [layer["wx_packed"], layer["u_packed"], layer["b_packed"]]

    dwa = params["dec_w_t"][:2 * H]    # multiplies outputs[0]
    dwb = params["dec_w_t"][2 * H:]    # multiplies outputs[-1]
    db = params["dec_b"]

    vmem = pl.BlockSpec(memory_space=pltpu.MemorySpace.VMEM)
    n_in = 1 + len(flat_w) + 3

    return pl.pallas_call(
        functools.partial(_fused_kernel, T=T, B=B, H=H, num_layers=num_layers),
        out_shape=jax.ShapeDtypeStruct((B, 2), jnp.float32),
        in_specs=[vmem] * n_in,
        out_specs=vmem,
        # single reused gx scratch (both directions, all layers share it)
        scratch_shapes=[pltpu.VMEM((T * B, 8 * H), jnp.float32)],
    )(x_flat, *flat_w, dwa, dwb, db)


# ----------------------------------------------------------------------------
# Parameter init (PyTorch-equivalent distributions, weights pre-packed).
# ----------------------------------------------------------------------------
def init_params(key, vocab_size, embed_size, num_hiddens, num_layers):
    num_keys = 1 + num_layers * 2 * 4 + 2
    keys = iter(jax.random.split(key, num_keys))
    params = {}
    H = num_hiddens

    # nn.Embedding: N(0, 1)
    params["embedding"] = jax.random.normal(
        next(keys), (vocab_size, embed_size), jnp.float32)

    # nn.LSTM: U(-1/sqrt(H), 1/sqrt(H)); packed once at init:
    #   wx_packed (In, 8H) = [W_ih_fw^T | W_ih_bw^T]
    #   u_packed  (2H, 8H) = block-diag(W_hh_fw^T, W_hh_bw^T)
    #   b_packed  (1, 8H)  = [b_ih_fw + b_hh_fw | b_ih_bw + b_hh_bw]
    bound = 1.0 / float(H) ** 0.5
    lstm = []
    for layer in range(num_layers):
        in_size = embed_size if layer == 0 else 2 * H
        raw = {}
        for direction in ("fw", "bw"):
            w_ih = jax.random.uniform(next(keys), (4 * H, in_size),
                                      jnp.float32, -bound, bound)
            w_hh = jax.random.uniform(next(keys), (4 * H, H),
                                      jnp.float32, -bound, bound)
            b_ih = jax.random.uniform(next(keys), (4 * H,),
                                      jnp.float32, -bound, bound)
            b_hh = jax.random.uniform(next(keys), (4 * H,),
                                      jnp.float32, -bound, bound)
            raw[direction] = (jnp.transpose(w_ih), jnp.transpose(w_hh),
                              b_ih + b_hh)
        wx_packed = jnp.concatenate([raw["fw"][0], raw["bw"][0]], axis=1)
        u_packed = jnp.zeros((2 * H, 8 * H), jnp.float32)
        u_packed = u_packed.at[:H, :4 * H].set(raw["fw"][1])
        u_packed = u_packed.at[H:, 4 * H:].set(raw["bw"][1])
        b_packed = jnp.concatenate([raw["fw"][2], raw["bw"][2]]).reshape(1, 8 * H)
        lstm.append({"wx_packed": wx_packed, "u_packed": u_packed,
                     "b_packed": b_packed})
    params["lstm"] = lstm

    # nn.Linear(4H, 2): U(-1/sqrt(4H), 1/sqrt(4H)); stored transposed.
    dbound = 1.0 / float(4 * H) ** 0.5
    dec_w = jax.random.uniform(next(keys), (2, 4 * H),
                               jnp.float32, -dbound, dbound)
    dec_b = jax.random.uniform(next(keys), (2,), jnp.float32, -dbound, dbound)
    params["dec_w_t"] = jnp.transpose(dec_w)     # (4H, 2)
    params["dec_b"] = dec_b.reshape(1, 2)        # (1, 2)
    return params


# ----------------------------------------------------------------------------
# Pure-JAX reference (unpacks the packed weights; no Pallas) for sanity check.
# ----------------------------------------------------------------------------
def _reference_forward(params, tokens):
    x = jnp.take(params["embedding"], tokens.T, axis=0).astype(jnp.float32)
    T, B, _ = x.shape
    for layer in params["lstm"]:
        H = layer["u_packed"].shape[0] // 2
        dir_specs = [
            (layer["wx_packed"][:, :4 * H], layer["u_packed"][:H, :4 * H],
             layer["b_packed"][:, :4 * H], False),
            (layer["wx_packed"][:, 4 * H:], layer["u_packed"][H:, 4 * H:],
             layer["b_packed"][:, 4 * H:], True),
        ]
        outs = []
        for w_t, u_t, b, rev in dir_specs:
            h = jnp.zeros((B, H), jnp.float32)
            c = jnp.zeros((B, H), jnp.float32)
            hs = [None] * T
            steps = range(T - 1, -1, -1) if rev else range(T)
            for t in steps:
                g = x[t] @ w_t + h @ u_t + b
                i = jax.nn.sigmoid(g[:, 0 * H:1 * H])
                f = jax.nn.sigmoid(g[:, 1 * H:2 * H])
                gg = jnp.tanh(g[:, 2 * H:3 * H])
                o = jax.nn.sigmoid(g[:, 3 * H:4 * H])
                c = f * c + i * gg
                h = o * jnp.tanh(c)
                hs[t] = h
            outs.append(jnp.stack(hs, axis=0))
        x = jnp.concatenate(outs, axis=-1)
    enc = jnp.concatenate([x[0], x[-1]], axis=-1)
    return enc @ params["dec_w_t"] + params["dec_b"]


if __name__ == "__main__":
    vocab_size = 50
    embed_size = 32
    num_hiddens = 32
    num_layers = 2
    batch = 2
    seq_len = 8

    key = jax.random.PRNGKey(0)
    k_params, k_tokens = jax.random.split(key)
    params = init_params(k_params, vocab_size, embed_size, num_hiddens,
                         num_layers)
    tokens = jax.random.randint(k_tokens, (batch, seq_len), 0, vocab_size,
                                dtype=jnp.int32)

    logits = lstm_text_classifier_forward(params, tokens)
    logits = jax.block_until_ready(logits)
    assert logits.shape == (batch, 2) and logits.dtype == jnp.float32

    ref = _reference_forward(params, tokens)
    assert jnp.allclose(logits, ref, atol=1e-4, rtol=1e-4), (logits, ref)

    print("KERNEL_OK")
</pallas_src>

<mosaic_0001>
module attributes {stable_mosaic.version = 11 : i64} {
  func.func @_fused_kernel(%arg0: memref<16x32xf32, #tpu.memory_space<vmem>>, %arg1: memref<32x256xf32, #tpu.memory_space<vmem>>, %arg2: memref<64x256xf32, #tpu.memory_space<vmem>>, %arg3: memref<1x256xf32, #tpu.memory_space<vmem>>, %arg4: memref<64x256xf32, #tpu.memory_space<vmem>>, %arg5: memref<64x256xf32, #tpu.memory_space<vmem>>, %arg6: memref<1x256xf32, #tpu.memory_space<vmem>>, %arg7: memref<64x2xf32, #tpu.memory_space<vmem>>, %arg8: memref<64x2xf32, #tpu.memory_space<vmem>>, %arg9: memref<1x2xf32, #tpu.memory_space<vmem>>, %arg10: memref<2x2xf32, #tpu.memory_space<vmem>>, %arg11: memref<16x256xf32, #tpu.memory_space<vmem>>) attributes {dimension_semantics = [], scalar_prefetch = 0 : i64, scratch_operands = 1 : i64, tpu.core_type = #tpu.core_type<tc>} {
    %0 = tpu.iota {dimensions = array<i32: 1>} : vector<2x256xi32>
    %c64_i32 = arith.constant 64 : i32
    %1 = vector.broadcast %c64_i32 : i32 to vector<2x256xi32>
    %2 = arith.cmpi sge, %0, %1 : vector<2x256xi32>
    %c96_i32 = arith.constant 96 : i32
    %3 = vector.broadcast %c96_i32 : i32 to vector<2x256xi32>
    %4 = arith.cmpi slt, %0, %3 : vector<2x256xi32>
    %5 = arith.andi %2, %4 : vector<2x256xi1>
    %c192_i32 = arith.constant 192 : i32
    %6 = vector.broadcast %c192_i32 : i32 to vector<2x256xi32>
    %7 = arith.cmpi sge, %0, %6 : vector<2x256xi32>
    %c224_i32 = arith.constant 224 : i32
    %8 = vector.broadcast %c224_i32 : i32 to vector<2x256xi32>
    %9 = arith.cmpi slt, %0, %8 : vector<2x256xi32>
    %10 = arith.andi %7, %9 : vector<2x256xi1>
    %11 = arith.ori %5, %10 : vector<2x256xi1>
    %cst = arith.constant 1.000000e+00 : f32
    %cst_0 = arith.constant 5.000000e-01 : f32
    %12 = vector.broadcast %cst : f32 to vector<2x256xf32>
    %13 = vector.broadcast %cst_0 : f32 to vector<2x256xf32>
    %14 = arith.select %11, %12, %13 : vector<2x256xi1>, vector<2x256xf32>
    %c0 = arith.constant 0 : index
    %c0_1 = arith.constant 0 : index
    %15 = vector.load %arg0[%c0, %c0_1] : memref<16x32xf32, #tpu.memory_space<vmem>>, vector<16x32xf32>
    %c0_2 = arith.constant 0 : index
    %c0_3 = arith.constant 0 : index
    %16 = vector.load %arg1[%c0_2, %c0_3] : memref<32x256xf32, #tpu.memory_space<vmem>>, vector<32x256xf32>
    %cst_4 = arith.constant dense<0.000000e+00> : vector<16x256xf32>
    %17 = tpu.matmul %15, %16, %cst_4 {dimension_numbers = #tpu.dot_dimension_numbers<[1], [0], [0], [1], [0, 0, 1, 1], [], []>} : vector<16x32xf32>, vector<32x256xf32>, vector<16x256xf32> -> vector<16x256xf32>
    %c0_5 = arith.constant 0 : index
    %c0_6 = arith.constant 0 : index
    %18 = vector.load %arg3[%c0_5, %c0_6] : memref<1x256xf32, #tpu.memory_space<vmem>>, vector<1x256xf32>
    %19 = vector.broadcast %18 : vector<1x256xf32> to vector<16x256xf32>
    %20 = arith.addf %17, %19 : vector<16x256xf32>
    %c0_7 = arith.constant 0 : index
    %c0_8 = arith.constant 0 : index
    %21 = vector.load %arg11[%c0_7, %c0_8] : memref<16x256xf32, #tpu.memory_space<vmem>>, vector<16x256xf32>
    tpu.vector_store %arg11[%c0_7, %c0_8], %20 {strides = array<i32>} : memref<16x256xf32, #tpu.memory_space<vmem>>, vector<16x256xf32>,
    %c0_9 = arith.constant 0 : index
    %c0_10 = arith.constant 0 : index
    %22 = vector.load %arg2[%c0_9, %c0_10] : memref<64x256xf32, #tpu.memory_space<vmem>>, vector<64x256xf32>
    %cst_11 = arith.constant 0.000000e+00 : f32
    %23 = vector.broadcast %cst_11 : f32 to vector<2x64xf32>
    %cst_12 = arith.constant 0.000000e+00 : f32
    %24 = vector.broadcast %cst_12 : f32 to vector<2x32xf32>
    %cst_13 = arith.constant 0.000000e+00 : f32
    %25 = vector.broadcast %cst_13 : f32 to vector<2x32xf32>
    %c0_14 = arith.constant 0 : index
    %c0_15 = arith.constant 0 : index
    %26 = vector.load %arg11[%c0_14, %c0_15] : memref<16x256xf32, #tpu.memory_space<vmem>>, vector<2x128xf32>
    %c14 = arith.constant 14 : index
    %c128 = arith.constant 128 : index
    %27 = vector.load %arg11[%c14, %c128] : memref<16x256xf32, #tpu.memory_space<vmem>>, vector<2x128xf32>
    %28 = tpu.concatenate %26, %27 in 1 : vector<2x128xf32>, vector<2x128xf32> -> vector<2x256xf32>
    %cst_16 = arith.constant dense<0.000000e+00> : vector<2x256xf32>
    %29 = tpu.matmul %23, %22, %cst_16 {dimension_numbers = #tpu.dot_dimension_numbers<[1], [0], [0], [1], [0, 0, 1, 1], [], []>} : vector<2x64xf32>, vector<64x256xf32>, vector<2x256xf32> -> vector<2x256xf32>
    %30 = arith.addf %28, %29 : vector<2x256xf32>
    %31 = arith.mulf %30, %14 : vector<2x256xf32>
    %32 = math.tanh %31 : vector<2x256xf32>
    %cst_17 = arith.constant 5.000000e-01 : f32
    %33 = vector.broadcast %cst_17 : f32 to vector<2x256xf32>
    %34 = arith.mulf %33, %32 : vector<2x256xf32>
    %cst_18 = arith.constant 5.000000e-01 : f32
    %35 = vector.broadcast %cst_18 : f32 to vector<2x256xf32>
    %36 = arith.addf %34, %35 : vector<2x256xf32>
    %37 = arith.select %11, %32, %36 : vector<2x256xi1>, vector<2x256xf32>
    %38 = vector.extract_strided_slice %37 {offsets = [0, 0], sizes = [2, 32], strides = [1, 1]} : vector<2x256xf32> to vector<2x32xf32>
    %39 = vector.extract_strided_slice %37 {offsets = [0, 32], sizes = [2, 32], strides = [1, 1]} : vector<2x256xf32> to vector<2x32xf32>
    %40 = vector.extract_strided_slice %37 {offsets = [0, 64], sizes = [2, 32], strides = [1, 1]} : vector<2x256xf32> to vector<2x32xf32>
    %41 = vector.extract_strided_slice %37 {offsets = [0, 96], sizes = [2, 32], strides = [1, 1]} : vector<2x256xf32> to vector<2x32xf32>
    %42 = vector.extract_strided_slice %37 {offsets = [0, 128], sizes = [2, 32], strides = [1, 1]} : vector<2x256xf32> to vector<2x32xf32>
    %43 = vector.extract_strided_slice %37 {offsets = [0, 160], sizes = [2, 32], strides = [1, 1]} : vector<2x256xf32> to vector<2x32xf32>
    %44 = vector.extract_strided_slice %37 {offsets = [0, 192], sizes = [2, 32], strides = [1, 1]} : vector<2x256xf32> to vector<2x32xf32>
    %45 = vector.extract_strided_slice %37 {offsets = [0, 224], sizes = [2, 32], strides = [1, 1]} : vector<2x256xf32> to vector<2x32xf32>
    %46 = arith.mulf %39, %24 : vector<2x32xf32>
    %47 = arith.mulf %38, %40 : vector<2x32xf32>
    %48 = arith.addf %46, %47 : vector<2x32xf32>
    %49 = arith.mulf %43, %25 : vector<2x32xf32>
    %50 = arith.mulf %42, %44 : vector<2x32xf32>
    %51 = arith.addf %49, %50 : vector<2x32xf32>
    %52 = math.tanh %48 : vector<2x32xf32>
    %53 = arith.mulf %41, %52 : vector<2x32xf32>
    %54 = math.tanh %51 : vector<2x32xf32>
    %55 = arith.mulf %45, %54 : vector<2x32xf32>
    %56 = tpu.concatenate %53, %55 in 1 : vector<2x32xf32>, vector<2x32xf32> -> vector<2x64xf32>
    %c2 = arith.constant 2 : index
    %c0_19 = arith.constant 0 : index
    %57 = vector.load %arg11[%c2, %c0_19] : memref<16x256xf32, #tpu.memory_space<vmem>>, vector<2x128xf32>
    %c12 = arith.constant 12 : index
    %c128_20 = arith.constant 128 : index
    %58 = vector.load %arg11[%c12, %c128_20] : memref<16x256xf32, #tpu.memory_space<vmem>>, vector<2x128xf32>
    %59 = tpu.concatenate %57, %58 in 1 : vector<2x128xf32>, vector<2x128xf32> -> vector<2x256xf32>
    %cst_21 = arith.constant dense<0.000000e+00> : vector<2x256xf32>
    %60 = tpu.matmul %56, %22, %cst_21 {dimension_numbers = #tpu.dot_dimension_numbers<[1], [0], [0], [1], [0, 0, 1, 1], [], []>} : vector<2x64xf32>, vector<64x256xf32>, vector<2x256xf32> -> vector<2x256xf32>
    %61 = arith.addf %59, %60 : vector<2x256xf32>
    %62 = arith.mulf %61, %14 : vector<2x256xf32>
    %63 = math.tanh %62 : vector<2x256xf32>
    %cst_22 = arith.constant 5.000000e-01 : f32
    %64 = vector.broadcast %cst_22 : f32 to vector<2x256xf32>
    %65 = arith.mulf %64, %63 : vector<2x256xf32>
    %cst_23 = arith.constant 5.000000e-01 : f32
    %66 = vector.broadcast %cst_23 : f32 to vector<2x256xf32>
    %67 = arith.addf %65, %66 : vector<2x256xf32>
    %68 = arith.select %11, %63, %67 : vector<2x256xi1>, vector<2x256xf32>
    %69 = vector.extract_strided_slice %68 {offsets = [0, 0], sizes = [2, 32], strides = [1, 1]} : vector<2x256xf32> to vector<2x32xf32>
    %70 = vector.extract_strided_slice %68 {offsets = [0, 32], sizes = [2, 32], strides = [1, 1]} : vector<2x256xf32> to vector<2x32xf32>
    %71 = vector.extract_strided_slice %68 {offsets = [0, 64], sizes = [2, 32], strides = [1, 1]} : vector<2x256xf32> to vector<2x32xf32>
    %72 = vector.extract_strided_slice %68 {offsets = [0, 96], sizes = [2, 32], strides = [1, 1]} : vector<2x256xf32> to vector<2x32xf32>
    %73 = vector.extract_strided_slice %68 {offsets = [0, 128], sizes = [2, 32], strides = [1, 1]} : vector<2x256xf32> to vector<2x32xf32>
    %74 = vector.extract_strided_slice %68 {offsets = [0, 160], sizes = [2, 32], strides = [1, 1]} : vector<2x256xf32> to vector<2x32xf32>
    %75 = vector.extract_strided_slice %68 {offsets = [0, 192], sizes = [2, 32], strides = [1, 1]} : vector<2x256xf32> to vector<2x32xf32>
    %76 = vector.extract_strided_slice %68 {offsets = [0, 224], sizes = [2, 32], strides = [1, 1]} : vector<2x256xf32> to vector<2x32xf32>
    %77 = arith.mulf %70, %48 : vector<2x32xf32>
    %78 = arith.mulf %69, %71 : vector<2x32xf32>
    %79 = arith.addf %77, %78 : vector<2x32xf32>
    %80 = arith.mulf %74, %51 : vector<2x32xf32>
    %81 = arith.mulf %73, %75 : vector<2x32xf32>
    %82 = arith.addf %80, %81 : vector<2x32xf32>
    %83 = math.tanh %79 : vector<2x32xf32>
    %84 = arith.mulf %72, %83 : vector<2x32xf32>
    %85 = math.tanh %82 : vector<2x32xf32>
    %86 = arith.mulf %76, %85 : vector<2x32xf32>
    %87 = tpu.concatenate %84, %86 in 1 : vector<2x32xf32>, vector<2x32xf32> -> vector<2x64xf32>
    %c4 = arith.constant 4 : index
    %c0_24 = arith.constant 0 : index
    %88 = vector.load %arg11[%c4, %c0_24] : memref<16x256xf32, #tpu.memory_space<vmem>>, vector<2x128xf32>
    %c10 = arith.constant 10 : index
    %c128_25 = arith.constant 128 : index
    %89 = vector.load %arg11[%c10, %c128_25] : memref<16x256xf32, #tpu.memory_space<vmem>>, vector<2x128xf32>
    %90 = tpu.concatenate %88, %89 in 1 : vector<2x128xf32>, vector<2x128xf32> -> vector<2x256xf32>
    %cst_26 = arith.constant dense<0.000000e+00> : vector<2x256xf32>
    %91 = tpu.matmul %87, %22, %cst_26 {dimension_numbers = #tpu.dot_dimension_numbers<[1], [0], [0], [1], [0, 0, 1, 1], [], []>} : vector<2x64xf32>, vector<64x256xf32>, vector<2x256xf32> -> vector<2x256xf32>
    %92 = arith.addf %90, %91 : vector<2x256xf32>
    %93 = arith.mulf %92, %14 : vector<2x256xf32>
    %94 = math.tanh %93 : vector<2x256xf32>
    %cst_27 = arith.constant 5.000000e-01 : f32
    %95 = vector.broadcast %cst_27 : f32 to vector<2x256xf32>
    %96 = arith.mulf %95, %94 : vector<2x256xf32>
    %cst_28 = arith.constant 5.000000e-01 : f32
    %97 = vector.broadcast %cst_28 : f32 to vector<2x256xf32>
    %98 = arith.addf %96, %97 : vector<2x256xf32>
    %99 = arith.select %11, %94, %98 : vector<2x256xi1>, vector<2x256xf32>
    %100 = vector.extract_strided_slice %99 {offsets = [0, 0], sizes = [2, 32], strides = [1, 1]} : vector<2x256xf32> to vector<2x32xf32>
    %101 = vector.extract_strided_slice %99 {offsets = [0, 32], sizes = [2, 32], strides = [1, 1]} : vector<2x256xf32> to vector<2x32xf32>
    %102 = vector.extract_strided_slice %99 {offsets = [0, 64], sizes = [2, 32], strides = [1, 1]} : vector<2x256xf32> to vector<2x32xf32>
    %103 = vector.extract_strided_slice %99 {offsets = [0, 96], sizes = [2, 32], strides = [1, 1]} : vector<2x256xf32> to vector<2x32xf32>
    %104 = vector.extract_strided_slice %99 {offsets = [0, 128], sizes = [2, 32], strides = [1, 1]} : vector<2x256xf32> to vector<2x32xf32>
    %105 = vector.extract_strided_slice %99 {offsets = [0, 160], sizes = [2, 32], strides = [1, 1]} : vector<2x256xf32> to vector<2x32xf32>
    %106 = vector.extract_strided_slice %99 {offsets = [0, 192], sizes = [2, 32], strides = [1, 1]} : vector<2x256xf32> to vector<2x32xf32>
    %107 = vector.extract_strided_slice %99 {offsets = [0, 224], sizes = [2, 32], strides = [1, 1]} : vector<2x256xf32> to vector<2x32xf32>
    %108 = arith.mulf %101, %79 : vector<2x32xf32>
    %109 = arith.mulf %100, %102 : vector<2x32xf32>
    %110 = arith.addf %108, %109 : vector<2x32xf32>
    %111 = arith.mulf %105, %82 : vector<2x32xf32>
    %112 = arith.mulf %104, %106 : vector<2x32xf32>
    %113 = arith.addf %111, %112 : vector<2x32xf32>
    %114 = math.tanh %110 : vector<2x32xf32>
    %115 = arith.mulf %103, %114 : vector<2x32xf32>
    %116 = math.tanh %113 : vector<2x32xf32>
    %117 = arith.mulf %107, %116 : vector<2x32xf32>
    %118 = tpu.concatenate %115, %117 in 1 : vector<2x32xf32>, vector<2x32xf32> -> vector<2x64xf32>
    %c6 = arith.constant 6 : index
    %c0_29 = arith.constant 0 : index
    %119 = vector.load %arg11[%c6, %c0_29] : memref<16x256xf32, #tpu.memory_space<vmem>>, vector<2x128xf32>
    %c8 = arith.constant 8 : index
    %c128_30 = arith.constant 128 : index
    %120 = vector.load %arg11[%c8, %c128_30] : memref<16x256xf32, #tpu.memory_space<vmem>>, vector<2x128xf32>
    %121 = tpu.concatenate %119, %120 in 1 : vector<2x128xf32>, vector<2x128xf32> -> vector<2x256xf32>
    %cst_31 = arith.constant dense<0.000000e+00> : vector<2x256xf32>
    %122 = tpu.matmul %118, %22, %cst_31 {dimension_numbers = #tpu.dot_dimension_numbers<[1], [0], [0], [1], [0, 0, 1, 1], [], []>} : vector<2x64xf32>, vector<64x256xf32>, vector<2x256xf32> -> vector<2x256xf32>
    %123 = arith.addf %121, %122 : vector<2x256xf32>
    %124 = arith.mulf %123, %14 : vector<2x256xf32>
    %125 = math.tanh %124 : vector<2x256xf32>
    %cst_32 = arith.constant 5.000000e-01 : f32
    %126 = vector.broadcast %cst_32 : f32 to vector<2x256xf32>
    %127 = arith.mulf %126, %125 : vector<2x256xf32>
    %cst_33 = arith.constant 5.000000e-01 : f32
    %128 = vector.broadcast %cst_33 : f32 to vector<2x256xf32>
    %129 = arith.addf %127, %128 : vector<2x256xf32>
    %130 = arith.select %11, %125, %129 : vector<2x256xi1>, vector<2x256xf32>
    %131 = vector.extract_strided_slice %130 {offsets = [0, 0], sizes = [2, 32], strides = [1, 1]} : vector<2x256xf32> to vector<2x32xf32>
    %132 = vector.extract_strided_slice %130 {offsets = [0, 32], sizes = [2, 32], strides = [1, 1]} : vector<2x256xf32> to vector<2x32xf32>
    %133 = vector.extract_strided_slice %130 {offsets = [0, 64], sizes = [2, 32], strides = [1, 1]} : vector<2x256xf32> to vector<2x32xf32>
    %134 = vector.extract_strided_slice %130 {offsets = [0, 96], sizes = [2, 32], strides = [1, 1]} : vector<2x256xf32> to vector<2x32xf32>
    %135 = vector.extract_strided_slice %130 {offsets = [0, 128], sizes = [2, 32], strides = [1, 1]} : vector<2x256xf32> to vector<2x32xf32>
    %136 = vector.extract_strided_slice %130 {offsets = [0, 160], sizes = [2, 32], strides = [1, 1]} : vector<2x256xf32> to vector<2x32xf32>
    %137 = vector.extract_strided_slice %130 {offsets = [0, 192], sizes = [2, 32], strides = [1, 1]} : vector<2x256xf32> to vector<2x32xf32>
    %138 = vector.extract_strided_slice %130 {offsets = [0, 224], sizes = [2, 32], strides = [1, 1]} : vector<2x256xf32> to vector<2x32xf32>
    %139 = arith.mulf %132, %110 : vector<2x32xf32>
    %140 = arith.mulf %131, %133 : vector<2x32xf32>
    %141 = arith.addf %139, %140 : vector<2x32xf32>
    %142 = arith.mulf %136, %113 : vector<2x32xf32>
    %143 = arith.mulf %135, %137 : vector<2x32xf32>
    %144 = arith.addf %142, %143 : vector<2x32xf32>
    %145 = math.tanh %141 : vector<2x32xf32>
    %146 = arith.mulf %134, %145 : vector<2x32xf32>
    %147 = math.tanh %144 : vector<2x32xf32>
    %148 = arith.mulf %138, %147 : vector<2x32xf32>
    %149 = tpu.concatenate %146, %148 in 1 : vector<2x32xf32>, vector<2x32xf32> -> vector<2x64xf32>
    %c8_34 = arith.constant 8 : index
    %c0_35 = arith.constant 0 : index
    %150 = vector.load %arg11[%c8_34, %c0_35] : memref<16x256xf32, #tpu.memory_space<vmem>>, vector<2x128xf32>
    %c6_36 = arith.constant 6 : index
    %c128_37 = arith.constant 128 : index
    %151 = vector.load %arg11[%c6_36, %c128_37] : memref<16x256xf32, #tpu.memory_space<vmem>>, vector<2x128xf32>
    %152 = tpu.concatenate %150, %151 in 1 : vector<2x128xf32>, vector<2x128xf32> -> vector<2x256xf32>
    %cst_38 = arith.constant dense<0.000000e+00> : vector<2x256xf32>
    %153 = tpu.matmul %149, %22, %cst_38 {dimension_numbers = #tpu.dot_dimension_numbers<[1], [0], [0], [1], [0, 0, 1, 1], [], []>} : vector<2x64xf32>, vector<64x256xf32>, vector<2x256xf32> -> vector<2x256xf32>
    %154 = arith.addf %152, %153 : vector<2x256xf32>
    %155 = arith.mulf %154, %14 : vector<2x256xf32>
    %156 = math.tanh %155 : vector<2x256xf32>
    %cst_39 = arith.constant 5.000000e-01 : f32
    %157 = vector.broadcast %cst_39 : f32 to vector<2x256xf32>
    %158 = arith.mulf %157, %156 : vector<2x256xf32>
    %cst_40 = arith.constant 5.000000e-01 : f32
    %159 = vector.broadcast %cst_40 : f32 to vector<2x256xf32>
    %160 = arith.addf %158, %159 : vector<2x256xf32>
    %161 = arith.select %11, %156, %160 : vector<2x256xi1>, vector<2x256xf32>
    %162 = vector.extract_strided_slice %161 {offsets = [0, 0], sizes = [2, 32], strides = [1, 1]} : vector<2x256xf32> to vector<2x32xf32>
    %163 = vector.extract_strided_slice %161 {offsets = [0, 32], sizes = [2, 32], strides = [1, 1]} : vector<2x256xf32> to vector<2x32xf32>
    %164 = vector.extract_strided_slice %161 {offsets = [0, 64], sizes = [2, 32], strides = [1, 1]} : vector<2x256xf32> to vector<2x32xf32>
    %165 = vector.extract_strided_slice %161 {offsets = [0, 96], sizes = [2, 32], strides = [1, 1]} : vector<2x256xf32> to vector<2x32xf32>
    %166 = vector.extract_strided_slice %161 {offsets = [0, 128], sizes = [2, 32], strides = [1, 1]} : vector<2x256xf32> to vector<2x32xf32>
    %167 = vector.extract_strided_slice %161 {offsets = [0, 160], sizes = [2, 32], strides = [1, 1]} : vector<2x256xf32> to vector<2x32xf32>
    %168 = vector.extract_strided_slice %161 {offsets = [0, 192], sizes = [2, 32], strides = [1, 1]} : vector<2x256xf32> to vector<2x32xf32>
    %169 = vector.extract_strided_slice %161 {offsets = [0, 224], sizes = [2, 32], strides = [1, 1]} : vector<2x256xf32> to vector<2x32xf32>
    %170 = arith.mulf %163, %141 : vector<2x32xf32>
    %171 = arith.mulf %162, %164 : vector<2x32xf32>
    %172 = arith.addf %170, %171 : vector<2x32xf32>
    %173 = arith.mulf %167, %144 : vector<2x32xf32>
    %174 = arith.mulf %166, %168 : vector<2x32xf32>
    %175 = arith.addf %173, %174 : vector<2x32xf32>
    %176 = math.tanh %172 : vector<2x32xf32>
    %177 = arith.mulf %165, %176 : vector<2x32xf32>
    %178 = math.tanh %175 : vector<2x32xf32>
    %179 = arith.mulf %169, %178 : vector<2x32xf32>
    %180 = tpu.concatenate %177, %179 in 1 : vector<2x32xf32>, vector<2x32xf32> -> vector<2x64xf32>
    %c10_41 = arith.constant 10 : index
    %c0_42 = arith.constant 0 : index
    %181 = vector.load %arg11[%c10_41, %c0_42] : memref<16x256xf32, #tpu.memory_space<vmem>>, vector<2x128xf32>
    %c4_43 = arith.constant 4 : index
    %c128_44 = arith.constant 128 : index
    %182 = vector.load %arg11[%c4_43, %c128_44] : memref<16x256xf32, #tpu.memory_space<vmem>>, vector<2x128xf32>
    %183 = tpu.concatenate %181, %182 in 1 : vector<2x128xf32>, vector<2x128xf32> -> vector<2x256xf32>
    %cst_45 = arith.constant dense<0.000000e+00> : vector<2x256xf32>
    %184 = tpu.matmul %180, %22, %cst_45 {dimension_numbers = #tpu.dot_dimension_numbers<[1], [0], [0], [1], [0, 0, 1, 1], [], []>} : vector<2x64xf32>, vector<64x256xf32>, vector<2x256xf32> -> vector<2x256xf32>
    %185 = arith.addf %183, %184 : vector<2x256xf32>
    %186 = arith.mulf %185, %14 : vector<2x256xf32>
    %187 = math.tanh %186 : vector<2x256xf32>
    %cst_46 = arith.constant 5.000000e-01 : f32
    %188 = vector.broadcast %cst_46 : f32 to vector<2x256xf32>
    %189 = arith.mulf %188, %187 : vector<2x256xf32>
    %cst_47 = arith.constant 5.000000e-01 : f32
    %190 = vector.broadcast %cst_47 : f32 to vector<2x256xf32>
    %191 = arith.addf %189, %190 : vector<2x256xf32>
    %192 = arith.select %11, %187, %191 : vector<2x256xi1>, vector<2x256xf32>
    %193 = vector.extract_strided_slice %192 {offsets = [0, 0], sizes = [2, 32], strides = [1, 1]} : vector<2x256xf32> to vector<2x32xf32>
    %194 = vector.extract_strided_slice %192 {offsets = [0, 32], sizes = [2, 32], strides = [1, 1]} : vector<2x256xf32> to vector<2x32xf32>
    %195 = vector.extract_strided_slice %192 {offsets = [0, 64], sizes = [2, 32], strides = [1, 1]} : vector<2x256xf32> to vector<2x32xf32>
    %196 = vector.extract_strided_slice %192 {offsets = [0, 96], sizes = [2, 32], strides = [1, 1]} : vector<2x256xf32> to vector<2x32xf32>
    %197 = vector.extract_strided_slice %192 {offsets = [0, 128], sizes = [2, 32], strides = [1, 1]} : vector<2x256xf32> to vector<2x32xf32>
    %198 = vector.extract_strided_slice %192 {offsets = [0, 160], sizes = [2, 32], strides = [1, 1]} : vector<2x256xf32> to vector<2x32xf32>
    %199 = vector.extract_strided_slice %192 {offsets = [0, 192], sizes = [2, 32], strides = [1, 1]} : vector<2x256xf32> to vector<2x32xf32>
    %200 = vector.extract_strided_slice %192 {offsets = [0, 224], sizes = [2, 32], strides = [1, 1]} : vector<2x256xf32> to vector<2x32xf32>
    %201 = arith.mulf %194, %172 : vector<2x32xf32>
    %202 = arith.mulf %193, %195 : vector<2x32xf32>
    %203 = arith.addf %201, %202 : vector<2x32xf32>
    %204 = arith.mulf %198, %175 : vector<2x32xf32>
    %205 = arith.mulf %197, %199 : vector<2x32xf32>
    %206 = arith.addf %204, %205 : vector<2x32xf32>
    %207 = math.tanh %203 : vector<2x32xf32>
    %208 = arith.mulf %196, %207 : vector<2x32xf32>
    %209 = math.tanh %206 : vector<2x32xf32>
    %210 = arith.mulf %200, %209 : vector<2x32xf32>
    %211 = tpu.concatenate %208, %210 in 1 : vector<2x32xf32>, vector<2x32xf32> -> vector<2x64xf32>
    %c12_48 = arith.constant 12 : index
    %c0_49 = arith.constant 0 : index
    %212 = vector.load %arg11[%c12_48, %c0_49] : memref<16x256xf32, #tpu.memory_space<vmem>>, vector<2x128xf32>
    %c2_50 = arith.constant 2 : index
    %c128_51 = arith.constant 128 : index
    %213 = vector.load %arg11[%c2_50, %c128_51] : memref<16x256xf32, #tpu.memory_space<vmem>>, vector<2x128xf32>
    %214 = tpu.concatenate %212, %213 in 1 : vector<2x128xf32>, vector<2x128xf32> -> vector<2x256xf32>
    %cst_52 = arith.constant dense<0.000000e+00> : vector<2x256xf32>
    %215 = tpu.matmul %211, %22, %cst_52 {dimension_numbers = #tpu.dot_dimension_numbers<[1], [0], [0], [1], [0, 0, 1, 1], [], []>} : vector<2x64xf32>, vector<64x256xf32>, vector<2x256xf32> -> vector<2x256xf32>
    %216 = arith.addf %214, %215 : vector<2x256xf32>
    %217 = arith.mulf %216, %14 : vector<2x256xf32>
    %218 = math.tanh %217 : vector<2x256xf32>
    %cst_53 = arith.constant 5.000000e-01 : f32
    %219 = vector.broadcast %cst_53 : f32 to vector<2x256xf32>
    %220 = arith.mulf %219, %218 : vector<2x256xf32>
    %cst_54 = arith.constant 5.000000e-01 : f32
    %221 = vector.broadcast %cst_54 : f32 to vector<2x256xf32>
    %222 = arith.addf %220, %221 : vector<2x256xf32>
    %223 = arith.select %11, %218, %222 : vector<2x256xi1>, vector<2x256xf32>
    %224 = vector.extract_strided_slice %223 {offsets = [0, 0], sizes = [2, 32], strides = [1, 1]} : vector<2x256xf32> to vector<2x32xf32>
    %225 = vector.extract_strided_slice %223 {offsets = [0, 32], sizes = [2, 32], strides = [1, 1]} : vector<2x256xf32> to vector<2x32xf32>
    %226 = vector.extract_strided_slice %223 {offsets = [0, 64], sizes = [2, 32], strides = [1, 1]} : vector<2x256xf32> to vector<2x32xf32>
    %227 = vector.extract_strided_slice %223 {offsets = [0, 96], sizes = [2, 32], strides = [1, 1]} : vector<2x256xf32> to vector<2x32xf32>
    %228 = vector.extract_strided_slice %223 {offsets = [0, 128], sizes = [2, 32], strides = [1, 1]} : vector<2x256xf32> to vector<2x32xf32>
    %229 = vector.extract_strided_slice %223 {offsets = [0, 160], sizes = [2, 32], strides = [1, 1]} : vector<2x256xf32> to vector<2x32xf32>
    %230 = vector.extract_strided_slice %223 {offsets = [0, 192], sizes = [2, 32], strides = [1, 1]} : vector<2x256xf32> to vector<2x32xf32>
    %231 = vector.extract_strided_slice %223 {offsets = [0, 224], sizes = [2, 32], strides = [1, 1]} : vector<2x256xf32> to vector<2x32xf32>
    %232 = arith.mulf %225, %203 : vector<2x32xf32>
    %233 = arith.mulf %224, %226 : vector<2x32xf32>
    %234 = arith.addf %232, %233 : vector<2x32xf32>
    %235 = arith.mulf %229, %206 : vector<2x32xf32>
    %236 = arith.mulf %228, %230 : vector<2x32xf32>
    %237 = arith.addf %235, %236 : vector<2x32xf32>
    %238 = math.tanh %234 : vector<2x32xf32>
    %239 = arith.mulf %227, %238 : vector<2x32xf32>
    %240 = math.tanh %237 : vector<2x32xf32>
    %241 = arith.mulf %231, %240 : vector<2x32xf32>
    %242 = tpu.concatenate %239, %241 in 1 : vector<2x32xf32>, vector<2x32xf32> -> vector<2x64xf32>
    %c14_55 = arith.constant 14 : index
    %c0_56 = arith.constant 0 : index
    %243 = vector.load %arg11[%c14_55, %c0_56] : memref<16x256xf32, #tpu.memory_space<vmem>>, vector<2x128xf32>
    %c0_57 = arith.constant 0 : index
    %c128_58 = arith.constant 128 : index
    %244 = vector.load %arg11[%c0_57, %c128_58] : memref<16x256xf32, #tpu.memory_space<vmem>>, vector<2x128xf32>
    %245 = tpu.concatenate %243, %244 in 1 : vector<2x128xf32>, vector<2x128xf32> -> vector<2x256xf32>
    %cst_59 = arith.constant dense<0.000000e+00> : vector<2x256xf32>
    %246 = tpu.matmul %242, %22, %cst_59 {dimension_numbers = #tpu.dot_dimension_numbers<[1], [0], [0], [1], [0, 0, 1, 1], [], []>} : vector<2x64xf32>, vector<64x256xf32>, vector<2x256xf32> -> vector<2x256xf32>
    %247 = arith.addf %245, %246 : vector<2x256xf32>
    %248 = arith.mulf %247, %14 : vector<2x256xf32>
    %249 = math.tanh %248 : vector<2x256xf32>
    %cst_60 = arith.constant 5.000000e-01 : f32
    %250 = vector.broadcast %cst_60 : f32 to vector<2x256xf32>
    %251 = arith.mulf %250, %249 : vector<2x256xf32>
    %cst_61 = arith.constant 5.000000e-01 : f32
    %252 = vector.broadcast %cst_61 : f32 to vector<2x256xf32>
    %253 = arith.addf %251, %252 : vector<2x256xf32>
    %254 = arith.select %11, %249, %253 : vector<2x256xi1>, vector<2x256xf32>
    %255 = vector.extract_strided_slice %254 {offsets = [0, 0], sizes = [2, 32], strides = [1, 1]} : vector<2x256xf32> to vector<2x32xf32>
    %256 = vector.extract_strided_slice %254 {offsets = [0, 32], sizes = [2, 32], strides = [1, 1]} : vector<2x256xf32> to vector<2x32xf32>
    %257 = vector.extract_strided_slice %254 {offsets = [0, 64], sizes = [2, 32], strides = [1, 1]} : vector<2x256xf32> to vector<2x32xf32>
    %258 = vector.extract_strided_slice %254 {offsets = [0, 96], sizes = [2, 32], strides = [1, 1]} : vector<2x256xf32> to vector<2x32xf32>
    %259 = vector.extract_strided_slice %254 {offsets = [0, 128], sizes = [2, 32], strides = [1, 1]} : vector<2x256xf32> to vector<2x32xf32>
    %260 = vector.extract_strided_slice %254 {offsets = [0, 160], sizes = [2, 32], strides = [1, 1]} : vector<2x256xf32> to vector<2x32xf32>
    %261 = vector.extract_strided_slice %254 {offsets = [0, 192], sizes = [2, 32], strides = [1, 1]} : vector<2x256xf32> to vector<2x32xf32>
    %262 = vector.extract_strided_slice %254 {offsets = [0, 224], sizes = [2, 32], strides = [1, 1]} : vector<2x256xf32> to vector<2x32xf32>
    %263 = arith.mulf %256, %234 : vector<2x32xf32>
    %264 = arith.mulf %255, %257 : vector<2x32xf32>
    %265 = arith.addf %263, %264 : vector<2x32xf32>
    %266 = arith.mulf %260, %237 : vector<2x32xf32>
    %267 = arith.mulf %259, %261 : vector<2x32xf32>
    %268 = arith.addf %266, %267 : vector<2x32xf32>
    %269 = math.tanh %265 : vector<2x32xf32>
    %270 = arith.mulf %258, %269 : vector<2x32xf32>
    %271 = math.tanh %268 : vector<2x32xf32>
    %272 = arith.mulf %262, %271 : vector<2x32xf32>
    %273 = tpu.concatenate %53, %272 in 1 : vector<2x32xf32>, vector<2x32xf32> -> vector<2x64xf32>
    %274 = tpu.concatenate %84, %241 in 1 : vector<2x32xf32>, vector<2x32xf32> -> vector<2x64xf32>
    %275 = tpu.concatenate %115, %210 in 1 : vector<2x32xf32>, vector<2x32xf32> -> vector<2x64xf32>
    %276 = tpu.concatenate %146, %179 in 1 : vector<2x32xf32>, vector<2x32xf32> -> vector<2x64xf32>
    %277 = tpu.concatenate %177, %148 in 1 : vector<2x32xf32>, vector<2x32xf32> -> vector<2x64xf32>
    %278 = tpu.concatenate %208, %117 in 1 : vector<2x32xf32>, vector<2x32xf32> -> vector<2x64xf32>
    %279 = tpu.concatenate %239, %86 in 1 : vector<2x32xf32>, vector<2x32xf32> -> vector<2x64xf32>
    %280 = tpu.concatenate %270, %55 in 1 : vector<2x32xf32>, vector<2x32xf32> -> vector<2x64xf32>
    %281 = tpu.concatenate %273, %274, %275, %276, %277, %278, %279, %280 in 0 : vector<2x64xf32>, vector<2x64xf32>, vector<2x64xf32>, vector<2x64xf32>, vector<2x64xf32>, vector<2x64xf32>, vector<2x64xf32>, vector<2x64xf32> -> vector<16x64xf32>
    %c0_62 = arith.constant 0 : index
    %c0_63 = arith.constant 0 : index
    %282 = vector.load %arg4[%c0_62, %c0_63] : memref<64x256xf32, #tpu.memory_space<vmem>>, vector<64x256xf32>
    %cst_64 = arith.constant dense<0.000000e+00> : vector<16x256xf32>
    %283 = tpu.matmul %281, %282, %cst_64 {dimension_numbers = #tpu.dot_dimension_numbers<[1], [0], [0], [1], [0, 0, 1, 1], [], []>} : vector<16x64xf32>, vector<64x256xf32>, vector<16x256xf32> -> vector<16x256xf32>
    %c0_65 = arith.constant 0 : index
    %c0_66 = arith.constant 0 : index
    %284 = vector.load %arg6[%c0_65, %c0_66] : memref<1x256xf32, #tpu.memory_space<vmem>>, vector<1x256xf32>
    %285 = vector.broadcast %284 : vector<1x256xf32> to vector<16x256xf32>
    %286 = arith.addf %283, %285 : vector<16x256xf32>
    %c0_67 = arith.constant 0 : index
    %c0_68 = arith.constant 0 : index
    %287 = vector.load %arg11[%c0_67, %c0_68] : memref<16x256xf32, #tpu.memory_space<vmem>>, vector<16x256xf32>
    tpu.vector_store %arg11[%c0_67, %c0_68], %286 {strides = array<i32>} : memref<16x256xf32, #tpu.memory_space<vmem>>, vector<16x256xf32>,
    %c0_69 = arith.constant 0 : index
    %c0_70 = arith.constant 0 : index
    %288 = vector.load %arg5[%c0_69, %c0_70] : memref<64x256xf32, #tpu.memory_space<vmem>>, vector<64x256xf32>
    %cst_71 = arith.constant 0.000000e+00 : f32
    %289 = vector.broadcast %cst_71 : f32 to vector<2x64xf32>
    %cst_72 = arith.constant 0.000000e+00 : f32
    %290 = vector.broadcast %cst_72 : f32 to vector<2x32xf32>
    %cst_73 = arith.constant 0.000000e+00 : f32
    %291 = vector.broadcast %cst_73 : f32 to vector<2x32xf32>
    %c0_74 = arith.constant 0 : index
    %c0_75 = arith.constant 0 : index
    %292 = vector.load %arg11[%c0_74, %c0_75] : memref<16x256xf32, #tpu.memory_space<vmem>>, vector<2x128xf32>
    %c14_76 = arith.constant 14 : index
    %c128_77 = arith.constant 128 : index
    %293 = vector.load %arg11[%c14_76, %c128_77] : memref<16x256xf32, #tpu.memory_space<vmem>>, vector<2x128xf32>
    %294 = tpu.concatenate %292, %293 in 1 : vector<2x128xf32>, vector<2x128xf32> -> vector<2x256xf32>
    %cst_78 = arith.constant dense<0.000000e+00> : vector<2x256xf32>
    %295 = tpu.matmul %289, %288, %cst_78 {dimension_numbers = #tpu.dot_dimension_numbers<[1], [0], [0], [1], [0, 0, 1, 1], [], []>} : vector<2x64xf32>, vector<64x256xf32>, vector<2x256xf32> -> vector<2x256xf32>
    %296 = arith.addf %294, %295 : vector<2x256xf32>
    %297 = arith.mulf %296, %14 : vector<2x256xf32>
    %298 = math.tanh %297 : vector<2x256xf32>
    %cst_79 = arith.constant 5.000000e-01 : f32
    %299 = vector.broadcast %cst_79 : f32 to vector<2x256xf32>
    %300 = arith.mulf %299, %298 : vector<2x256xf32>
    %cst_80 = arith.constant 5.000000e-01 : f32
    %301 = vector.broadcast %cst_80 : f32 to vector<2x256xf32>
    %302 = arith.addf %300, %301 : vector<2x256xf32>
    %303 = arith.select %11, %298, %302 : vector<2x256xi1>, vector<2x256xf32>
    %304 = vector.extract_strided_slice %303 {offsets = [0, 0], sizes = [2, 32], strides = [1, 1]} : vector<2x256xf32> to vector<2x32xf32>
    %305 = vector.extract_strided_slice %303 {offsets = [0, 32], sizes = [2, 32], strides = [1, 1]} : vector<2x256xf32> to vector<2x32xf32>
    %306 = vector.extract_strided_slice %303 {offsets = [0, 64], sizes = [2, 32], strides = [1, 1]} : vector<2x256xf32> to vector<2x32xf32>
    %307 = vector.extract_strided_slice %303 {offsets = [0, 96], sizes = [2, 32], strides = [1, 1]} : vector<2x256xf32> to vector<2x32xf32>
    %308 = vector.extract_strided_slice %303 {offsets = [0, 128], sizes = [2, 32], strides = [1, 1]} : vector<2x256xf32> to vector<2x32xf32>
    %309 = vector.extract_strided_slice %303 {offsets = [0, 160], sizes = [2, 32], strides = [1, 1]} : vector<2x256xf32> to vector<2x32xf32>
    %310 = vector.extract_strided_slice %303 {offsets = [0, 192], sizes = [2, 32], strides = [1, 1]} : vector<2x256xf32> to vector<2x32xf32>
    %311 = vector.extract_strided_slice %303 {offsets = [0, 224], sizes = [2, 32], strides = [1, 1]} : vector<2x256xf32> to vector<2x32xf32>
    %312 = arith.mulf %305, %290 : vector<2x32xf32>
    %313 = arith.mulf %304, %306 : vector<2x32xf32>
    %314 = arith.addf %312, %313 : vector<2x32xf32>
    %315 = arith.mulf %309, %291 : vector<2x32xf32>
    %316 = arith.mulf %308, %310 : vector<2x32xf32>
    %317 = arith.addf %315, %316 : vector<2x32xf32>
    %318 = math.tanh %314 : vector<2x32xf32>
    %319 = arith.mulf %307, %318 : vector<2x32xf32>
    %320 = math.tanh %317 : vector<2x32xf32>
    %321 = arith.mulf %311, %320 : vector<2x32xf32>
    %322 = tpu.concatenate %319, %321 in 1 : vector<2x32xf32>, vector<2x32xf32> -> vector<2x64xf32>
    %c2_81 = arith.constant 2 : index
    %c0_82 = arith.constant 0 : index
    %323 = vector.load %arg11[%c2_81, %c0_82] : memref<16x256xf32, #tpu.memory_space<vmem>>, vector<2x128xf32>
    %c12_83 = arith.constant 12 : index
    %c128_84 = arith.constant 128 : index
    %324 = vector.load %arg11[%c12_83, %c128_84] : memref<16x256xf32, #tpu.memory_space<vmem>>, vector<2x128xf32>
    %325 = tpu.concatenate %323, %324 in 1 : vector<2x128xf32>, vector<2x128xf32> -> vector<2x256xf32>
    %cst_85 = arith.constant dense<0.000000e+00> : vector<2x256xf32>
    %326 = tpu.matmul %322, %288, %cst_85 {dimension_numbers = #tpu.dot_dimension_numbers<[1], [0], [0], [1], [0, 0, 1, 1], [], []>} : vector<2x64xf32>, vector<64x256xf32>, vector<2x256xf32> -> vector<2x256xf32>
    %327 = arith.addf %325, %326 : vector<2x256xf32>
    %328 = arith.mulf %327, %14 : vector<2x256xf32>
    %329 = math.tanh %328 : vector<2x256xf32>
    %cst_86 = arith.constant 5.000000e-01 : f32
    %330 = vector.broadcast %cst_86 : f32 to vector<2x256xf32>
    %331 = arith.mulf %330, %329 : vector<2x256xf32>
    %cst_87 = arith.constant 5.000000e-01 : f32
    %332 = vector.broadcast %cst_87 : f32 to vector<2x256xf32>
    %333 = arith.addf %331, %332 : vector<2x256xf32>
    %334 = arith.select %11, %329, %333 : vector<2x256xi1>, vector<2x256xf32>
    %335 = vector.extract_strided_slice %334 {offsets = [0, 0], sizes = [2, 32], strides = [1, 1]} : vector<2x256xf32> to vector<2x32xf32>
    %336 = vector.extract_strided_slice %334 {offsets = [0, 32], sizes = [2, 32], strides = [1, 1]} : vector<2x256xf32> to vector<2x32xf32>
    %337 = vector.extract_strided_slice %334 {offsets = [0, 64], sizes = [2, 32], strides = [1, 1]} : vector<2x256xf32> to vector<2x32xf32>
    %338 = vector.extract_strided_slice %334 {offsets = [0, 96], sizes = [2, 32], strides = [1, 1]} : vector<2x256xf32> to vector<2x32xf32>
    %339 = vector.extract_strided_slice %334 {offsets = [0, 128], sizes = [2, 32], strides = [1, 1]} : vector<2x256xf32> to vector<2x32xf32>
    %340 = vector.extract_strided_slice %334 {offsets = [0, 160], sizes = [2, 32], strides = [1, 1]} : vector<2x256xf32> to vector<2x32xf32>
    %341 = vector.extract_strided_slice %334 {offsets = [0, 192], sizes = [2, 32], strides = [1, 1]} : vector<2x256xf32> to vector<2x32xf32>
    %342 = vector.extract_strided_slice %334 {offsets = [0, 224], sizes = [2, 32], strides = [1, 1]} : vector<2x256xf32> to vector<2x32xf32>
    %343 = arith.mulf %336, %314 : vector<2x32xf32>
    %344 = arith.mulf %335, %337 : vector<2x32xf32>
    %345 = arith.addf %343, %344 : vector<2x32xf32>
    %346 = arith.mulf %340, %317 : vector<2x32xf32>
    %347 = arith.mulf %339, %341 : vector<2x32xf32>
    %348 = arith.addf %346, %347 : vector<2x32xf32>
    %349 = math.tanh %345 : vector<2x32xf32>
    %350 = arith.mulf %338, %349 : vector<2x32xf32>
    %351 = math.tanh %348 : vector<2x32xf32>
    %352 = arith.mulf %342, %351 : vector<2x32xf32>
    %353 = tpu.concatenate %350, %352 in 1 : vector<2x32xf32>, vector<2x32xf32> -> vector<2x64xf32>
    %c4_88 = arith.constant 4 : index
    %c0_89 = arith.constant 0 : index
    %354 = vector.load %arg11[%c4_88, %c0_89] : memref<16x256xf32, #tpu.memory_space<vmem>>, vector<2x128xf32>
    %c10_90 = arith.constant 10 : index
    %c128_91 = arith.constant 128 : index
    %355 = vector.load %arg11[%c10_90, %c128_91] : memref<16x256xf32, #tpu.memory_space<vmem>>, vector<2x128xf32>
    %356 = tpu.concatenate %354, %355 in 1 : vector<2x128xf32>, vector<2x128xf32> -> vector<2x256xf32>
    %cst_92 = arith.constant dense<0.000000e+00> : vector<2x256xf32>
    %357 = tpu.matmul %353, %288, %cst_92 {dimension_numbers = #tpu.dot_dimension_numbers<[1], [0], [0], [1], [0, 0, 1, 1], [], []>} : vector<2x64xf32>, vector<64x256xf32>, vector<2x256xf32> -> vector<2x256xf32>
    %358 = arith.addf %356, %357 : vector<2x256xf32>
    %359 = arith.mulf %358, %14 : vector<2x256xf32>
    %360 = math.tanh %359 : vector<2x256xf32>
    %cst_93 = arith.constant 5.000000e-01 : f32
    %361 = vector.broadcast %cst_93 : f32 to vector<2x256xf32>
    %362 = arith.mulf %361, %360 : vector<2x256xf32>
    %cst_94 = arith.constant 5.000000e-01 : f32
    %363 = vector.broadcast %cst_94 : f32 to vector<2x256xf32>
    %364 = arith.addf %362, %363 : vector<2x256xf32>
    %365 = arith.select %11, %360, %364 : vector<2x256xi1>, vector<2x256xf32>
    %366 = vector.extract_strided_slice %365 {offsets = [0, 0], sizes = [2, 32], strides = [1, 1]} : vector<2x256xf32> to vector<2x32xf32>
    %367 = vector.extract_strided_slice %365 {offsets = [0, 32], sizes = [2, 32], strides = [1, 1]} : vector<2x256xf32> to vector<2x32xf32>
    %368 = vector.extract_strided_slice %365 {offsets = [0, 64], sizes = [2, 32], strides = [1, 1]} : vector<2x256xf32> to vector<2x32xf32>
    %369 = vector.extract_strided_slice %365 {offsets = [0, 96], sizes = [2, 32], strides = [1, 1]} : vector<2x256xf32> to vector<2x32xf32>
    %370 = vector.extract_strided_slice %365 {offsets = [0, 128], sizes = [2, 32], strides = [1, 1]} : vector<2x256xf32> to vector<2x32xf32>
    %371 = vector.extract_strided_slice %365 {offsets = [0, 160], sizes = [2, 32], strides = [1, 1]} : vector<2x256xf32> to vector<2x32xf32>
    %372 = vector.extract_strided_slice %365 {offsets = [0, 192], sizes = [2, 32], strides = [1, 1]} : vector<2x256xf32> to vector<2x32xf32>
    %373 = vector.extract_strided_slice %365 {offsets = [0, 224], sizes = [2, 32], strides = [1, 1]} : vector<2x256xf32> to vector<2x32xf32>
    %374 = arith.mulf %367, %345 : vector<2x32xf32>
    %375 = arith.mulf %366, %368 : vector<2x32xf32>
    %376 = arith.addf %374, %375 : vector<2x32xf32>
    %377 = arith.mulf %371, %348 : vector<2x32xf32>
    %378 = arith.mulf %370, %372 : vector<2x32xf32>
    %379 = arith.addf %377, %378 : vector<2x32xf32>
    %380 = math.tanh %376 : vector<2x32xf32>
    %381 = arith.mulf %369, %380 : vector<2x32xf32>
    %382 = math.tanh %379 : vector<2x32xf32>
    %383 = arith.mulf %373, %382 : vector<2x32xf32>
    %384 = tpu.concatenate %381, %383 in 1 : vector<2x32xf32>, vector<2x32xf32> -> vector<2x64xf32>
    %c6_95 = arith.constant 6 : index
    %c0_96 = arith.constant 0 : index
    %385 = vector.load %arg11[%c6_95, %c0_96] : memref<16x256xf32, #tpu.memory_space<vmem>>, vector<2x128xf32>
    %c8_97 = arith.constant 8 : index
    %c128_98 = arith.constant 128 : index
    %386 = vector.load %arg11[%c8_97, %c128_98] : memref<16x256xf32, #tpu.memory_space<vmem>>, vector<2x128xf32>
    %387 = tpu.concatenate %385, %386 in 1 : vector<2x128xf32>, vector<2x128xf32> -> vector<2x256xf32>
    %cst_99 = arith.constant dense<0.000000e+00> : vector<2x256xf32>
    %388 = tpu.matmul %384, %288, %cst_99 {dimension_numbers = #tpu.dot_dimension_numbers<[1], [0], [0], [1], [0, 0, 1, 1], [], []>} : vector<2x64xf32>, vector<64x256xf32>, vector<2x256xf32> -> vector<2x256xf32>
    %389 = arith.addf %387, %388 : vector<2x256xf32>
    %390 = arith.mulf %389, %14 : vector<2x256xf32>
    %391 = math.tanh %390 : vector<2x256xf32>
    %cst_100 = arith.constant 5.000000e-01 : f32
    %392 = vector.broadcast %cst_100 : f32 to vector<2x256xf32>
    %393 = arith.mulf %392, %391 : vector<2x256xf32>
    %cst_101 = arith.constant 5.000000e-01 : f32
    %394 = vector.broadcast %cst_101 : f32 to vector<2x256xf32>
    %395 = arith.addf %393, %394 : vector<2x256xf32>
    %396 = arith.select %11, %391, %395 : vector<2x256xi1>, vector<2x256xf32>
    %397 = vector.extract_strided_slice %396 {offsets = [0, 0], sizes = [2, 32], strides = [1, 1]} : vector<2x256xf32> to vector<2x32xf32>
    %398 = vector.extract_strided_slice %396 {offsets = [0, 32], sizes = [2, 32], strides = [1, 1]} : vector<2x256xf32> to vector<2x32xf32>
    %399 = vector.extract_strided_slice %396 {offsets = [0, 64], sizes = [2, 32], strides = [1, 1]} : vector<2x256xf32> to vector<2x32xf32>
    %400 = vector.extract_strided_slice %396 {offsets = [0, 96], sizes = [2, 32], strides = [1, 1]} : vector<2x256xf32> to vector<2x32xf32>
    %401 = vector.extract_strided_slice %396 {offsets = [0, 128], sizes = [2, 32], strides = [1, 1]} : vector<2x256xf32> to vector<2x32xf32>
    %402 = vector.extract_strided_slice %396 {offsets = [0, 160], sizes = [2, 32], strides = [1, 1]} : vector<2x256xf32> to vector<2x32xf32>
    %403 = vector.extract_strided_slice %396 {offsets = [0, 192], sizes = [2, 32], strides = [1, 1]} : vector<2x256xf32> to vector<2x32xf32>
    %404 = vector.extract_strided_slice %396 {offsets = [0, 224], sizes = [2, 32], strides = [1, 1]} : vector<2x256xf32> to vector<2x32xf32>
    %405 = arith.mulf %398, %376 : vector<2x32xf32>
    %406 = arith.mulf %397, %399 : vector<2x32xf32>
    %407 = arith.addf %405, %406 : vector<2x32xf32>
    %408 = arith.mulf %402, %379 : vector<2x32xf32>
    %409 = arith.mulf %401, %403 : vector<2x32xf32>
    %410 = arith.addf %408, %409 : vector<2x32xf32>
    %411 = math.tanh %407 : vector<2x32xf32>
    %412 = arith.mulf %400, %411 : vector<2x32xf32>
    %413 = math.tanh %410 : vector<2x32xf32>
    %414 = arith.mulf %404, %413 : vector<2x32xf32>
    %415 = tpu.concatenate %412, %414 in 1 : vector<2x32xf32>, vector<2x32xf32> -> vector<2x64xf32>
    %c8_102 = arith.constant 8 : index
    %c0_103 = arith.constant 0 : index
    %416 = vector.load %arg11[%c8_102, %c0_103] : memref<16x256xf32, #tpu.memory_space<vmem>>, vector<2x128xf32>
    %c6_104 = arith.constant 6 : index
    %c128_105 = arith.constant 128 : index
    %417 = vector.load %arg11[%c6_104, %c128_105] : memref<16x256xf32, #tpu.memory_space<vmem>>, vector<2x128xf32>
    %418 = tpu.concatenate %416, %417 in 1 : vector<2x128xf32>, vector<2x128xf32> -> vector<2x256xf32>
    %cst_106 = arith.constant dense<0.000000e+00> : vector<2x256xf32>
    %419 = tpu.matmul %415, %288, %cst_106 {dimension_numbers = #tpu.dot_dimension_numbers<[1], [0], [0], [1], [0, 0, 1, 1], [], []>} : vector<2x64xf32>, vector<64x256xf32>, vector<2x256xf32> -> vector<2x256xf32>
    %420 = arith.addf %418, %419 : vector<2x256xf32>
    %421 = arith.mulf %420, %14 : vector<2x256xf32>
    %422 = math.tanh %421 : vector<2x256xf32>
    %cst_107 = arith.constant 5.000000e-01 : f32
    %423 = vector.broadcast %cst_107 : f32 to vector<2x256xf32>
    %424 = arith.mulf %423, %422 : vector<2x256xf32>
    %cst_108 = arith.constant 5.000000e-01 : f32
    %425 = vector.broadcast %cst_108 : f32 to vector<2x256xf32>
    %426 = arith.addf %424, %425 : vector<2x256xf32>
    %427 = arith.select %11, %422, %426 : vector<2x256xi1>, vector<2x256xf32>
    %428 = vector.extract_strided_slice %427 {offsets = [0, 0], sizes = [2, 32], strides = [1, 1]} : vector<2x256xf32> to vector<2x32xf32>
    %429 = vector.extract_strided_slice %427 {offsets = [0, 32], sizes = [2, 32], strides = [1, 1]} : vector<2x256xf32> to vector<2x32xf32>
    %430 = vector.extract_strided_slice %427 {offsets = [0, 64], sizes = [2, 32], strides = [1, 1]} : vector<2x256xf32> to vector<2x32xf32>
    %431 = vector.extract_strided_slice %427 {offsets = [0, 96], sizes = [2, 32], strides = [1, 1]} : vector<2x256xf32> to vector<2x32xf32>
    %432 = vector.extract_strided_slice %427 {offsets = [0, 128], sizes = [2, 32], strides = [1, 1]} : vector<2x256xf32> to vector<2x32xf32>
    %433 = vector.extract_strided_slice %427 {offsets = [0, 160], sizes = [2, 32], strides = [1, 1]} : vector<2x256xf32> to vector<2x32xf32>
    %434 = vector.extract_strided_slice %427 {offsets = [0, 192], sizes = [2, 32], strides = [1, 1]} : vector<2x256xf32> to vector<2x32xf32>
    %435 = vector.extract_strided_slice %427 {offsets = [0, 224], sizes = [2, 32], strides = [1, 1]} : vector<2x256xf32> to vector<2x32xf32>
    %436 = arith.mulf %429, %407 : vector<2x32xf32>
    %437 = arith.mulf %428, %430 : vector<2x32xf32>
    %438 = arith.addf %436, %437 : vector<2x32xf32>
    %439 = arith.mulf %433, %410 : vector<2x32xf32>
    %440 = arith.mulf %432, %434 : vector<2x32xf32>
    %441 = arith.addf %439, %440 : vector<2x32xf32>
    %442 = math.tanh %438 : vector<2x32xf32>
    %443 = arith.mulf %431, %442 : vector<2x32xf32>
    %444 = math.tanh %441 : vector<2x32xf32>
    %445 = arith.mulf %435, %444 : vector<2x32xf32>
    %446 = tpu.concatenate %443, %445 in 1 : vector<2x32xf32>, vector<2x32xf32> -> vector<2x64xf32>
    %c10_109 = arith.constant 10 : index
    %c0_110 = arith.constant 0 : index
    %447 = vector.load %arg11[%c10_109, %c0_110] : memref<16x256xf32, #tpu.memory_space<vmem>>, vector<2x128xf32>
    %c4_111 = arith.constant 4 : index
    %c128_112 = arith.constant 128 : index
    %448 = vector.load %arg11[%c4_111, %c128_112] : memref<16x256xf32, #tpu.memory_space<vmem>>, vector<2x128xf32>
    %449 = tpu.concatenate %447, %448 in 1 : vector<2x128xf32>, vector<2x128xf32> -> vector<2x256xf32>
    %cst_113 = arith.constant dense<0.000000e+00> : vector<2x256xf32>
    %450 = tpu.matmul %446, %288, %cst_113 {dimension_numbers = #tpu.dot_dimension_numbers<[1], [0], [0], [1], [0, 0, 1, 1], [], []>} : vector<2x64xf32>, vector<64x256xf32>, vector<2x256xf32> -> vector<2x256xf32>
    %451 = arith.addf %449, %450 : vector<2x256xf32>
    %452 = arith.mulf %451, %14 : vector<2x256xf32>
    %453 = math.tanh %452 : vector<2x256xf32>
    %cst_114 = arith.constant 5.000000e-01 : f32
    %454 = vector.broadcast %cst_114 : f32 to vector<2x256xf32>
    %455 = arith.mulf %454, %453 : vector<2x256xf32>
    %cst_115 = arith.constant 5.000000e-01 : f32
    %456 = vector.broadcast %cst_115 : f32 to vector<2x256xf32>
    %457 = arith.addf %455, %456 : vector<2x256xf32>
    %458 = arith.select %11, %453, %457 : vector<2x256xi1>, vector<2x256xf32>
    %459 = vector.extract_strided_slice %458 {offsets = [0, 0], sizes = [2, 32], strides = [1, 1]} : vector<2x256xf32> to vector<2x32xf32>
    %460 = vector.extract_strided_slice %458 {offsets = [0, 32], sizes = [2, 32], strides = [1, 1]} : vector<2x256xf32> to vector<2x32xf32>
    %461 = vector.extract_strided_slice %458 {offsets = [0, 64], sizes = [2, 32], strides = [1, 1]} : vector<2x256xf32> to vector<2x32xf32>
    %462 = vector.extract_strided_slice %458 {offsets = [0, 96], sizes = [2, 32], strides = [1, 1]} : vector<2x256xf32> to vector<2x32xf32>
    %463 = vector.extract_strided_slice %458 {offsets = [0, 128], sizes = [2, 32], strides = [1, 1]} : vector<2x256xf32> to vector<2x32xf32>
    %464 = vector.extract_strided_slice %458 {offsets = [0, 160], sizes = [2, 32], strides = [1, 1]} : vector<2x256xf32> to vector<2x32xf32>
    %465 = vector.extract_strided_slice %458 {offsets = [0, 192], sizes = [2, 32], strides = [1, 1]} : vector<2x256xf32> to vector<2x32xf32>
    %466 = vector.extract_strided_slice %458 {offsets = [0, 224], sizes = [2, 32], strides = [1, 1]} : vector<2x256xf32> to vector<2x32xf32>
    %467 = arith.mulf %460, %438 : vector<2x32xf32>
    %468 = arith.mulf %459, %461 : vector<2x32xf32>
    %469 = arith.addf %467, %468 : vector<2x32xf32>
    %470 = arith.mulf %464, %441 : vector<2x32xf32>
    %471 = arith.mulf %463, %465 : vector<2x32xf32>
    %472 = arith.addf %470, %471 : vector<2x32xf32>
    %473 = math.tanh %469 : vector<2x32xf32>
    %474 = arith.mulf %462, %473 : vector<2x32xf32>
    %475 = math.tanh %472 : vector<2x32xf32>
    %476 = arith.mulf %466, %475 : vector<2x32xf32>
    %477 = tpu.concatenate %474, %476 in 1 : vector<2x32xf32>, vector<2x32xf32> -> vector<2x64xf32>
    %c12_116 = arith.constant 12 : index
    %c0_117 = arith.constant 0 : index
    %478 = vector.load %arg11[%c12_116, %c0_117] : memref<16x256xf32, #tpu.memory_space<vmem>>, vector<2x128xf32>
    %c2_118 = arith.constant 2 : index
    %c128_119 = arith.constant 128 : index
    %479 = vector.load %arg11[%c2_118, %c128_119] : memref<16x256xf32, #tpu.memory_space<vmem>>, vector<2x128xf32>
    %480 = tpu.concatenate %478, %479 in 1 : vector<2x128xf32>, vector<2x128xf32> -> vector<2x256xf32>
    %cst_120 = arith.constant dense<0.000000e+00> : vector<2x256xf32>
    %481 = tpu.matmul %477, %288, %cst_120 {dimension_numbers = #tpu.dot_dimension_numbers<[1], [0], [0], [1], [0, 0, 1, 1], [], []>} : vector<2x64xf32>, vector<64x256xf32>, vector<2x256xf32> -> vector<2x256xf32>
    %482 = arith.addf %480, %481 : vector<2x256xf32>
    %483 = arith.mulf %482, %14 : vector<2x256xf32>
    %484 = math.tanh %483 : vector<2x256xf32>
    %cst_121 = arith.constant 5.000000e-01 : f32
    %485 = vector.broadcast %cst_121 : f32 to vector<2x256xf32>
    %486 = arith.mulf %485, %484 : vector<2x256xf32>
    %cst_122 = arith.constant 5.000000e-01 : f32
    %487 = vector.broadcast %cst_122 : f32 to vector<2x256xf32>
    %488 = arith.addf %486, %487 : vector<2x256xf32>
    %489 = arith.select %11, %484, %488 : vector<2x256xi1>, vector<2x256xf32>
    %490 = vector.extract_strided_slice %489 {offsets = [0, 0], sizes = [2, 32], strides = [1, 1]} : vector<2x256xf32> to vector<2x32xf32>
    %491 = vector.extract_strided_slice %489 {offsets = [0, 32], sizes = [2, 32], strides = [1, 1]} : vector<2x256xf32> to vector<2x32xf32>
    %492 = vector.extract_strided_slice %489 {offsets = [0, 64], sizes = [2, 32], strides = [1, 1]} : vector<2x256xf32> to vector<2x32xf32>
    %493 = vector.extract_strided_slice %489 {offsets = [0, 96], sizes = [2, 32], strides = [1, 1]} : vector<2x256xf32> to vector<2x32xf32>
    %494 = vector.extract_strided_slice %489 {offsets = [0, 128], sizes = [2, 32], strides = [1, 1]} : vector<2x256xf32> to vector<2x32xf32>
    %495 = vector.extract_strided_slice %489 {offsets = [0, 160], sizes = [2, 32], strides = [1, 1]} : vector<2x256xf32> to vector<2x32xf32>
    %496 = vector.extract_strided_slice %489 {offsets = [0, 192], sizes = [2, 32], strides = [1, 1]} : vector<2x256xf32> to vector<2x32xf32>
    %497 = vector.extract_strided_slice %489 {offsets = [0, 224], sizes = [2, 32], strides = [1, 1]} : vector<2x256xf32> to vector<2x32xf32>
    %498 = arith.mulf %491, %469 : vector<2x32xf32>
    %499 = arith.mulf %490, %492 : vector<2x32xf32>
    %500 = arith.addf %498, %499 : vector<2x32xf32>
    %501 = arith.mulf %495, %472 : vector<2x32xf32>
    %502 = arith.mulf %494, %496 : vector<2x32xf32>
    %503 = arith.addf %501, %502 : vector<2x32xf32>
    %504 = math.tanh %500 : vector<2x32xf32>
    %505 = arith.mulf %493, %504 : vector<2x32xf32>
    %506 = math.tanh %503 : vector<2x32xf32>
    %507 = arith.mulf %497, %506 : vector<2x32xf32>
    %508 = tpu.concatenate %505, %507 in 1 : vector<2x32xf32>, vector<2x32xf32> -> vector<2x64xf32>
    %c14_123 = arith.constant 14 : index
    %c0_124 = arith.constant 0 : index
    %509 = vector.load %arg11[%c14_123, %c0_124] : memref<16x256xf32, #tpu.memory_space<vmem>>, vector<2x128xf32>
    %c0_125 = arith.constant 0 : index
    %c128_126 = arith.constant 128 : index
    %510 = vector.load %arg11[%c0_125, %c128_126] : memref<16x256xf32, #tpu.memory_space<vmem>>, vector<2x128xf32>
    %511 = tpu.concatenate %509, %510 in 1 : vector<2x128xf32>, vector<2x128xf32> -> vector<2x256xf32>
    %cst_127 = arith.constant dense<0.000000e+00> : vector<2x256xf32>
    %512 = tpu.matmul %508, %288, %cst_127 {dimension_numbers = #tpu.dot_dimension_numbers<[1], [0], [0], [1], [0, 0, 1, 1], [], []>} : vector<2x64xf32>, vector<64x256xf32>, vector<2x256xf32> -> vector<2x256xf32>
    %513 = arith.addf %511, %512 : vector<2x256xf32>
    %514 = arith.mulf %513, %14 : vector<2x256xf32>
    %515 = math.tanh %514 : vector<2x256xf32>
    %cst_128 = arith.constant 5.000000e-01 : f32
    %516 = vector.broadcast %cst_128 : f32 to vector<2x256xf32>
    %517 = arith.mulf %516, %515 : vector<2x256xf32>
    %cst_129 = arith.constant 5.000000e-01 : f32
    %518 = vector.broadcast %cst_129 : f32 to vector<2x256xf32>
    %519 = arith.addf %517, %518 : vector<2x256xf32>
    %520 = arith.select %11, %515, %519 : vector<2x256xi1>, vector<2x256xf32>
    %521 = vector.extract_strided_slice %520 {offsets = [0, 0], sizes = [2, 32], strides = [1, 1]} : vector<2x256xf32> to vector<2x32xf32>
    %522 = vector.extract_strided_slice %520 {offsets = [0, 32], sizes = [2, 32], strides = [1, 1]} : vector<2x256xf32> to vector<2x32xf32>
    %523 = vector.extract_strided_slice %520 {offsets = [0, 64], sizes = [2, 32], strides = [1, 1]} : vector<2x256xf32> to vector<2x32xf32>
    %524 = vector.extract_strided_slice %520 {offsets = [0, 96], sizes = [2, 32], strides = [1, 1]} : vector<2x256xf32> to vector<2x32xf32>
    %525 = vector.extract_strided_slice %520 {offsets = [0, 128], sizes = [2, 32], strides = [1, 1]} : vector<2x256xf32> to vector<2x32xf32>
    %526 = vector.extract_strided_slice %520 {offsets = [0, 160], sizes = [2, 32], strides = [1, 1]} : vector<2x256xf32> to vector<2x32xf32>
    %527 = vector.extract_strided_slice %520 {offsets = [0, 192], sizes = [2, 32], strides = [1, 1]} : vector<2x256xf32> to vector<2x32xf32>
    %528 = vector.extract_strided_slice %520 {offsets = [0, 224], sizes = [2, 32], strides = [1, 1]} : vector<2x256xf32> to vector<2x32xf32>
    %529 = arith.mulf %522, %500 : vector<2x32xf32>
    %530 = arith.mulf %521, %523 : vector<2x32xf32>
    %531 = arith.addf %529, %530 : vector<2x32xf32>
    %532 = arith.mulf %526, %503 : vector<2x32xf32>
    %533 = arith.mulf %525, %527 : vector<2x32xf32>
    %534 = arith.addf %532, %533 : vector<2x32xf32>
    %535 = math.tanh %531 : vector<2x32xf32>
    %536 = arith.mulf %524, %535 : vector<2x32xf32>
    %537 = math.tanh %534 : vector<2x32xf32>
    %538 = arith.mulf %528, %537 : vector<2x32xf32>
    %539 = tpu.concatenate %319, %538 in 1 : vector<2x32xf32>, vector<2x32xf32> -> vector<2x64xf32>
    %540 = tpu.concatenate %350, %507 in 1 : vector<2x32xf32>, vector<2x32xf32> -> vector<2x64xf32>
    %541 = tpu.concatenate %381, %476 in 1 : vector<2x32xf32>, vector<2x32xf32> -> vector<2x64xf32>
    %542 = tpu.concatenate %412, %445 in 1 : vector<2x32xf32>, vector<2x32xf32> -> vector<2x64xf32>
    %543 = tpu.concatenate %443, %414 in 1 : vector<2x32xf32>, vector<2x32xf32> -> vector<2x64xf32>
    %544 = tpu.concatenate %474, %383 in 1 : vector<2x32xf32>, vector<2x32xf32> -> vector<2x64xf32>
    %545 = tpu.concatenate %505, %352 in 1 : vector<2x32xf32>, vector<2x32xf32> -> vector<2x64xf32>
    %546 = tpu.concatenate %536, %321 in 1 : vector<2x32xf32>, vector<2x32xf32> -> vector<2x64xf32>
    %547 = tpu.concatenate %539, %540, %541, %542, %543, %544, %545, %546 in 0 : vector<2x64xf32>, vector<2x64xf32>, vector<2x64xf32>, vector<2x64xf32>, vector<2x64xf32>, vector<2x64xf32>, vector<2x64xf32>, vector<2x64xf32> -> vector<16x64xf32>
    %548 = vector.extract_strided_slice %547 {offsets = [0, 0], sizes = [2, 64], strides = [1, 1]} : vector<16x64xf32> to vector<2x64xf32>
    %549 = vector.extract_strided_slice %547 {offsets = [14, 0], sizes = [2, 64], strides = [1, 1]} : vector<16x64xf32> to vector<2x64xf32>
    %c0_130 = arith.constant 0 : index
    %c0_131 = arith.constant 0 : index
    %550 = vector.load %arg7[%c0_130, %c0_131] : memref<64x2xf32, #tpu.memory_space<vmem>>, vector<64x2xf32>
    %cst_132 = arith.constant dense<0.000000e+00> : vector<2x2xf32>
    %551 = tpu.matmul %548, %550, %cst_132 {dimension_numbers = #tpu.dot_dimension_numbers<[1], [0], [0], [1], [0, 0, 1, 1], [], []>} : vector<2x64xf32>, vector<64x2xf32>, vector<2x2xf32> -> vector<2x2xf32>
    %c0_133 = arith.constant 0 : index
    %c0_134 = arith.constant 0 : index
    %552 = vector.load %arg8[%c0_133, %c0_134] : memref<64x2xf32, #tpu.memory_space<vmem>>, vector<64x2xf32>
    %cst_135 = arith.constant dense<0.000000e+00> : vector<2x2xf32>
    %553 = tpu.matmul %549, %552, %cst_135 {dimension_numbers = #tpu.dot_dimension_numbers<[1], [0], [0], [1], [0, 0, 1, 1], [], []>} : vector<2x64xf32>, vector<64x2xf32>, vector<2x2xf32> -> vector<2x2xf32>
    %554 = arith.addf %551, %553 : vector<2x2xf32>
    %c0_136 = arith.constant 0 : index
    %c0_137 = arith.constant 0 : index
    %555 = vector.load %arg9[%c0_136, %c0_137] : memref<1x2xf32, #tpu.memory_space<vmem>>, vector<1x2xf32>
    %556 = vector.broadcast %555 : vector<1x2xf32> to vector<2x2xf32>
    %557 = arith.addf %554, %556 : vector<2x2xf32>
    %c0_138 = arith.constant 0 : index
    %c0_139 = arith.constant 0 : index
    %558 = vector.load %arg10[%c0_138, %c0_139] : memref<2x2xf32, #tpu.memory_space<vmem>>, vector<2x2xf32>
    tpu.vector_store %arg10[%c0_138, %c0_139], %557 {strides = array<i32>} : memref<2x2xf32, #tpu.memory_space<vmem>>, vector<2x2xf32>,
    return
  }
}

</mosaic_0001>

<llo_original>
// kernel: lstm_text_classifier_forward.1
$region0: #{lstm_text_classifier_forward.1}
  #allocation0 [shape = 'u32[]', space=smem, size = 0x4, offset = 0x4, fixed_abs, tag = 'smem constant byte address 0x4 - core index']
  #allocation1 [shape = 'u32[144,128]{1,0:T(1,128)}', space=vmem, size = 0x12000, scoped, tag = 'internal scratch']
  #allocation2 [shape = 'f32[16,256]{1,0:T(8,128)}', space=vmem, size = 0x4000, scoped, tag = 'scratch operand']
  %s0 = inlined_call_operand.vmem [shape: f32[16,32], index: 0, kind: input, shape index: {}]
  %s1 = inlined_call_operand.vmem [shape: f32[32,256], index: 1, kind: input, shape index: {}]
  %s2 = inlined_call_operand.vmem [shape: f32[64,256], index: 2, kind: input, shape index: {}]
  %s3 = inlined_call_operand.vmem [shape: f32[1,256], index: 3, kind: input, shape index: {}]
  %s4 = inlined_call_operand.vmem [shape: f32[64,256], index: 4, kind: input, shape index: {}]
  %s5 = inlined_call_operand.vmem [shape: f32[64,256], index: 5, kind: input, shape index: {}]
  %s6 = inlined_call_operand.vmem [shape: f32[1,256], index: 6, kind: input, shape index: {}]
  %s7 = inlined_call_operand.vmem [shape: f32[64,2], index: 7, kind: input, shape index: {}]
  %s8 = inlined_call_operand.vmem [shape: f32[64,2], index: 8, kind: input, shape index: {}]
  %s9 = inlined_call_operand.vmem [shape: f32[1,2], index: 9, kind: input, shape index: {}]
  %s10 = inlined_call_operand.hbm [shape: f32[2,2], index: 10, kind: output, shape index: {}]
  %s11 = sld [smem:[#allocation0]]
  $region50: #{lstm_text_classifier_forward.1} parent=0
    _
  %s13 = ssub.s32 1, %s11
  %s14 = scalar_select 0, %s13, %s11
  $region1: #{lstm_text_classifier_forward.1} parent=0
    #allocation3 [shape = 'u8[1024]{0}', space=vmem, size = 0x400, scoped, tag = 'output window, operand 0, single buffered']
    #allocation4 [shape = 's32[1]{0}', space=sflag, size = 0x4, scoped, tag = 'scoped memory for lstm_text_classifier_forward.1']
    %15 = vsyncpa [#allocation4], 0
    // Predicated region
    $region2: #{lstm_text_classifier_forward.1} parent=1 // pred_check
      _
    $region3: #{lstm_text_classifier_forward.1} parent=1 // pred_check_branch
      %17 = sbr.rel (0) target = $region5
    $region4: #{lstm_text_classifier_forward.1} parent=1 // pred_region
      _
    $region5: #{lstm_text_classifier_forward.1} parent=1 // pred_fallthru
      _
    // Predicated region
    $region6: #{lstm_text_classifier_forward.1} parent=1 // pred_check
      _
    $region7: #{lstm_text_classifier_forward.1} parent=1 // pred_check_branch
      %19 = sbr.rel (0) target = $region9
    $region8: #{lstm_text_classifier_forward.1} parent=1 // pred_region
      _
    $region9: #{lstm_text_classifier_forward.1} parent=1 // pred_fallthru
      _
    // Predicated region
    $region10: #{lstm_text_classifier_forward.1} parent=1 // pred_check
      _
    $region11: #{lstm_text_classifier_forward.1} parent=1 // pred_check_branch
      %21 = sbr.rel (0) target = $region13
    $region12: #{lstm_text_classifier_forward.1} parent=1 // pred_region
      _
    $region13: #{lstm_text_classifier_forward.1} parent=1 // pred_fallthru
      _
    // Predicated region
    $region14: #{lstm_text_classifier_forward.1} parent=1 // pred_check
      _
    $region15: #{lstm_text_classifier_forward.1} parent=1 // pred_check_branch
      %23 = sbr.rel (0) target = $region17
    $region16: #{lstm_text_classifier_forward.1} parent=1 // pred_region
      _
    $region17: #{lstm_text_classifier_forward.1} parent=1 // pred_fallthru
      _
    // Predicated region
    $region18: #{lstm_text_classifier_forward.1} parent=1 // pred_check
      _
    $region19: #{lstm_text_classifier_forward.1} parent=1 // pred_check_branch
      %25 = sbr.rel (0) target = $region21
    $region20: #{lstm_text_classifier_forward.1} parent=1 // pred_region
      _
    $region21: #{lstm_text_classifier_forward.1} parent=1 // pred_fallthru
      _
    // Predicated region
    $region22: #{lstm_text_classifier_forward.1} parent=1 // pred_check
      _
    $region23: #{lstm_text_classifier_forward.1} parent=1 // pred_check_branch
      %27 = sbr.rel (0) target = $region25
    $region24: #{lstm_text_classifier_forward.1} parent=1 // pred_region
      _
    $region25: #{lstm_text_classifier_forward.1} parent=1 // pred_fallthru
      _
    // Predicated region
    $region26: #{lstm_text_classifier_forward.1} parent=1 // pred_check
      _
    $region27: #{lstm_text_classifier_forward.1} parent=1 // pred_check_branch
      %29 = sbr.rel (0) target = $region29
    $region28: #{lstm_text_classifier_forward.1} parent=1 // pred_region
      _
    $region29: #{lstm_text_classifier_forward.1} parent=1 // pred_fallthru
      _
    // Predicated region
    $region30: #{lstm_text_classifier_forward.1} parent=1 // pred_check
      _
    $region31: #{lstm_text_classifier_forward.1} parent=1 // pred_check_branch
      %31 = sbr.rel (0) target = $region33
    $region32: #{lstm_text_classifier_forward.1} parent=1 // pred_region
      _
    $region33: #{lstm_text_classifier_forward.1} parent=1 // pred_fallthru
      _
    // Predicated region
    $region34: #{lstm_text_classifier_forward.1} parent=1 // pred_check
      _
    $region35: #{lstm_text_classifier_forward.1} parent=1 // pred_check_branch
      %33 = sbr.rel (0) target = $region37
    $region36: #{lstm_text_classifier_forward.1} parent=1 // pred_region
      _
    $region37: #{lstm_text_classifier_forward.1} parent=1 // pred_fallthru
      _
    // Predicated region
    $region38: #{lstm_text_classifier_forward.1} parent=1 // pred_check
      _
    $region39: #{lstm_text_classifier_forward.1} parent=1 // pred_check_branch
      %35 = sbr.rel (0) target = $region41
    $region40: #{lstm_text_classifier_forward.1} parent=1 // pred_region
      _
    $region41: #{lstm_text_classifier_forward.1} parent=1 // pred_fallthru
      _
    %v36 = vlaneseq
    %v37 = vand.u32 %v36, 127
    %v38 = vadd.s32 %v37, 128
    %vm39 = vcmp.ge.s32.totalorder %v37, 64
    %vm40 = vcmp.ge.s32.totalorder %v38, 64
    %vm41 = vcmp.lt.s32.totalorder %v37, 96
    %vm42 = vcmp.lt.s32.totalorder %v38, 96
    %vm43 = vmand %vm39, %vm41
    %vm44 = vmand %vm40, %vm42
    %vm45 = vcmp.ge.s32.totalorder %v37, 192
    %vm46 = vcmp.ge.s32.totalorder %v38, 192
    %vm47 = vcmp.lt.s32.totalorder %v37, 224
    %vm48 = vcmp.lt.s32.totalorder %v38, 224
    %vm49 = vmand %vm45, %vm47
    %vm50 = vmand %vm46, %vm48
    %vm51 = vmor %vm43, %vm49
    %vm52 = vmor %vm44, %vm50
    %v53 = vsel %vm51, 1.0, 0.5
    %v54 = vsel %vm52, 1.0, 0.5
    %v55 = vld [vmem:[%s0] sm:$0xff]
    %v56 = vld [vmem:[%s0 + $0x8] sm:$0xff]
    %v57 = vld [vmem:[%s1] sm:$0xff]
    %v58 = vld [vmem:[%s1 + $0x8] sm:$0xff]
    %v59 = vld [vmem:[%s1 + $0x10] sm:$0xff]
    %v60 = vld [vmem:[%s1 + $0x18] sm:$0xff]
    %v61 = vld [vmem:[%s1 + $0x20] sm:$0xff]
    %v62 = vld [vmem:[%s1 + $0x28] sm:$0xff]
    %v63 = vld [vmem:[%s1 + $0x30] sm:$0xff]
    %v64 = vld [vmem:[%s1 + $0x38] sm:$0xff]
    %v65 = vld [vmem:[%s3] sm:$0x3]
    %v67 = vlaneseq
    %v68 = vshrl.u32 %v67, 7
    %v69 = vsub.s32 0, %v68
    %v70 = vrot.slane %v65, %v69
    %v71 = vlaneseq
    %v72 = vshrl.u32 %v71, 7
    %v73 = vsub.s32 1, %v72
    %v74 = vrot.slane %v65, %v73
    %vm77 = vcmask 261120
    %v79 = vsel %vm77, %v55, 0
    %v82 = vsel %vm77, %v56, 0
    %84 = vmatprep.subr.mxu0 0.0
    %85 = vmatpush1.msra.mxu0 0.0
    %86 = vmatprep.subr.mxu0 0.0
    %87 = vmatpush1.msra.mxu0 0.0
    %88 = vmatprep.subr.mxu0 0.0
    %89 = vmatpush1.msra.mxu0 0.0
    %90 = vmatprep.subr.mxu0 0.0
    %91 = vmatpush1.msra.mxu0 0.0
    %92 = vmatprep.subr.mxu0 0.0
    %93 = vmatpush1.msra.mxu0 0.0
    %94 = vmatprep.subr.mxu0 0.0
    %95 = vmatpush1.msra.mxu0 0.0
    %96 = vmatprep.subr.mxu0 0.0
    %97 = vmatpush1.msra.mxu0 0.0
    %98 = vmatprep.subr.mxu0 0.0
    %99 = vmatpush1.msra.mxu0 0.0
    %100 = vmatprep.subr.mxu0 0.0
    %101 = vmatpush1.msra.mxu0 0.0
    %102 = vmatprep.subr.mxu0 0.0
    %103 = vmatpush1.msra.mxu0 0.0
    %104 = vmatprep.subr.mxu0 0.0
    %105 = vmatpush1.msra.mxu0 0.0
    %106 = vmatprep.subr.mxu0 0.0
    %107 = vmatpush1.msra.mxu0 0.0
    %108 = vmatprep.subr.mxu0 %v64
    %109 = vmatpush1.msra.mxu0 %v63
    %110 = vmatprep.subr.mxu0 %v62
    %111 = vmatpush1.msra.mxu0 %v61
    %112 = vmatprep.subr.mxu0 %v60
    %113 = vmatpush1.msra.mxu0 %v59
    %114 = vmatprep.subr.mxu0 %v58
    %115 = vmatpush1.msra.mxu0 %v57
    %116 = vmatprep.subr.mxu0 0.0
    %117 = vmatpush2.msra.mxu0 0.0
    %118 = vmatprep.subr.mxu0 0.0
    %119 = vmatpush2.msra.mxu0 0.0
    %120 = vmatprep.subr.mxu0 0.0
    %121 = vmatpush2.msra.mxu0 0.0
    %122 = vmatprep.subr.mxu0 0.0
    %123 = vmatpush2.msra.mxu0 0.0
    %124 = vmatprep.subr.mxu0 0.0
    %125 = vmatpush2.msra.mxu0 0.0
    %126 = vmatprep.subr.mxu0 0.0
    %127 = vmatpush2.msra.mxu0 0.0
    %128 = vmatprep.subr.mxu0 0.0
    %129 = vmatpush2.msra.mxu0 0.0
    %130 = vmatprep.subr.mxu0 0.0
    %131 = vmatpush2.msra.mxu0 0.0
    %132 = vmatprep.subr.mxu0 0.0
    %133 = vmatpush2.msra.mxu0 0.0
    %134 = vmatprep.subr.mxu0 0.0
    %135 = vmatpush2.msra.mxu0 0.0
    %136 = vmatprep.subr.mxu0 0.0
    %137 = vmatpush2.msra.mxu0 0.0
    %138 = vmatprep.subr.mxu0 0.0
    %139 = vmatpush2.msra.mxu0 0.0
    %140 = vmatprep.subr.mxu0 0.0
    %141 = vmatpush2.msra.mxu0 0.0
    %142 = vmatprep.subr.mxu0 0.0
    %143 = vmatpush2.msra.mxu0 0.0
    %144 = vmatprep.subr.mxu0 0.0
    %145 = vmatpush2.msra.mxu0 0.0
    %146 = vmatprep.subr.mxu0 0.0
    %147 = vmatpush2.msra.mxu0 0.0
    %148 = vmatprep.mubr.f32.mxu0 0.0
    %149 = vmatmul.mubr.f32.gmra.mxu0 %v79
    %v150 = vpop.f32.mrf.mxu0
    %v151 = vadd.f32 %v70, %v150
    %v152 = vpop.f32.mrf.mxu0
    %v153 = vadd.f32 %v74, %v152
    %154 = vmatprep.mubr.f32.mxu0 0.0
    %155 = vmatmul.mubr.f32.gmra.mxu0 %v82
    %v156 = vpop.f32.mrf.mxu0
    %v157 = vadd.f32 %v70, %v156
    %v158 = vpop.f32.mrf.mxu0
    %v159 = vadd.f32 %v74, %v158
    %160 = vdwg.mxu0
    %161 = vst [vmem:[#allocation2] sm:$0xff] %v151
    %162 = vst [vmem:[#allocation2 + $0x8] sm:$0xff] %v153
    %163 = vst [vmem:[#allocation2 + $0x10] sm:$0xff] %v157
    %164 = vst [vmem:[#allocation2 + $0x18] sm:$0xff] %v159
    %v165 = vld [vmem:[%s2] sm:$0xff]
    %v166 = vld [vmem:[%s2 + $0x8] sm:$0xff]
    %v167 = vld [vmem:[%s2 + $0x10] sm:$0xff]
    %v168 = vld [vmem:[%s2 + $0x18] sm:$0xff]
    %v169 = vld [vmem:[%s2 + $0x20] sm:$0xff]
    %v170 = vld [vmem:[%s2 + $0x28] sm:$0xff]
    %v171 = vld [vmem:[%s2 + $0x30] sm:$0xff]
    %v172 = vld [vmem:[%s2 + $0x38] sm:$0xff]
    %v173 = vld [vmem:[%s2 + $0x40] sm:$0xff]
    %v174 = vld [vmem:[%s2 + $0x48] sm:$0xff]
    %v175 = vld [vmem:[%s2 + $0x50] sm:$0xff]
    %v176 = vld [vmem:[%s2 + $0x58] sm:$0xff]
    %v177 = vld [vmem:[%s2 + $0x60] sm:$0xff]
    %v178 = vld [vmem:[%s2 + $0x68] sm:$0xff]
    %v179 = vld [vmem:[%s2 + $0x70] sm:$0xff]
    %v180 = vld [vmem:[%s2 + $0x78] sm:$0xff]
    %v181 = vld [vmem:[#allocation2] sm:$0x3]
    %v182 = vld [vmem:[#allocation2 + $0x18] sm:$0xc0]
    %v184 = vrot.slane %v182, 6
    %vm186 = vcmask 523264
    %v188 = vsel %vm186, 0.0, 0
    %190 = vmatprep.subr.mxu0 0.0
    %191 = vmatpush1.msra.mxu0 0.0
    %192 = vmatprep.subr.mxu0 0.0
    %193 = vmatpush1.msra.mxu0 0.0
    %194 = vmatprep.subr.mxu0 0.0
    %195 = vmatpush1.msra.mxu0 0.0
    %196 = vmatprep.subr.mxu0 0.0
    %197 = vmatpush1.msra.mxu0 0.0
    %198 = vmatprep.subr.mxu0 0.0
    %199 = vmatpush1.msra.mxu0 0.0
    %200 = vmatprep.subr.mxu0 0.0
    %201 = vmatpush1.msra.mxu0 0.0
    %202 = vmatprep.subr.mxu0 0.0
    %203 = vmatpush1.msra.mxu0 0.0
    %204 = vmatprep.subr.mxu0 0.0
    %205 = vmatpush1.msra.mxu0 0.0
    %206 = vmatprep.subr.mxu0 %v180
    %207 = vmatpush1.msra.mxu0 %v179
    %208 = vmatprep.subr.mxu0 %v178
    %209 = vmatpush1.msra.mxu0 %v177
    %210 = vmatprep.subr.mxu0 %v176
    %211 = vmatpush1.msra.mxu0 %v175
    %212 = vmatprep.subr.mxu0 %v174
    %213 = vmatpush1.msra.mxu0 %v173
    %214 = vmatprep.subr.mxu0 %v172
    %215 = vmatpush1.msra.mxu0 %v171
    %216 = vmatprep.subr.mxu0 %v170
    %217 = vmatpush1.msra.mxu0 %v169
    %218 = vmatprep.subr.mxu0 %v168
    %219 = vmatpush1.msra.mxu0 %v167
    %220 = vmatprep.subr.mxu0 %v166
    %221 = vmatpush1.msra.mxu0 %v165
    %222 = vmatprep.subr.mxu0 0.0
    %223 = vmatpush2.msra.mxu0 0.0
    %224 = vmatprep.subr.mxu0 0.0
    %225 = vmatpush2.msra.mxu0 0.0
    %226 = vmatprep.subr.mxu0 0.0
    %227 = vmatpush2.msra.mxu0 0.0
    %228 = vmatprep.subr.mxu0 0.0
    %229 = vmatpush2.msra.mxu0 0.0
    %230 = vmatprep.subr.mxu0 0.0
    %231 = vmatpush2.msra.mxu0 0.0
    %232 = vmatprep.subr.mxu0 0.0
    %233 = vmatpush2.msra.mxu0 0.0
    %234 = vmatprep.subr.mxu0 0.0
    %235 = vmatpush2.msra.mxu0 0.0
    %236 = vmatprep.subr.mxu0 0.0
    %237 = vmatpush2.msra.mxu0 0.0
    %238 = vmatprep.subr.mxu0 0.0
    %239 = vmatpush2.msra.mxu0 0.0
    %240 = vmatprep.subr.mxu0 0.0
    %241 = vmatpush2.msra.mxu0 0.0
    %242 = vmatprep.subr.mxu0 0.0
    %243 = vmatpush2.msra.mxu0 0.0
    %244 = vmatprep.subr.mxu0 0.0
    %245 = vmatpush2.msra.mxu0 0.0
    %246 = vmatprep.subr.mxu0 0.0
    %247 = vmatpush2.msra.mxu0 0.0
    %248 = vmatprep.subr.mxu0 0.0
    %249 = vmatpush2.msra.mxu0 0.0
    %250 = vmatprep.subr.mxu0 0.0
    %251 = vmatpush2.msra.mxu0 0.0
    %252 = vmatprep.subr.mxu0 0.0
    %253 = vmatpush2.msra.mxu0 0.0
    %254 = vmatprep.mubr.f32.mxu0 0.0
    %255 = vmatmul.mubr.f32.gmra.mxu0 %v188
    %v256 = vpop.f32.mrf.mxu0
    %v257 = vadd.f32 0.0, %v256
    %v258 = vpop.f32.mrf.mxu0
    %v259 = vadd.f32 0.0, %v258
    %260 = vdwg.mxu0
    %v261 = vadd.f32 %v181, %v257
    %v262 = vadd.f32 %v184, %v259
    %v263 = vmul.f32 %v261, %v53
    %v264 = vmul.f32 %v262, %v54
    %v265 = vtanh.pop %v263
    %v266 = vtanh.pop %v264
    %v267 = vmul.f32 %v265, 0.5
    %v268 = vmul.f32 %v266, 0.5
    %v269 = vadd.f32 %v267, 0.5
    %v270 = vadd.f32 %v268, 0.5
    %v271 = vsel %vm51, %v265, %v269
    %v272 = vsel %vm52, %v266, %v270
    %v273 = vmul.f32 %v271, 0.0
    %275 = vrot.lane.b32.xlu0 %v271, 64
    %v276 = vpop.permute.xlu0 %275
    %v278 = vmul.f32 %v271, %v276
    %280 = vrot.lane.b32.xlu0 %v278, 32
    %v281 = vpop.permute.xlu0 %280
    %v283 = vadd.f32 %v273, %v281
    %v284 = vmul.f32 %v272, 0.0
    %286 = vrot.lane.b32.xlu0 %v272, 64
    %v287 = vpop.permute.xlu0 %286
    %v289 = vmul.f32 %v272, %v287
    %291 = vrot.lane.b32.xlu0 %v289, 32
    %v292 = vpop.permute.xlu0 %291
    %v294 = vadd.f32 %v284, %v292
    %v295 = vtanh.pop %v283
    %297 = vrot.lane.b32.xlu0 %v295, 64
    %v298 = vpop.permute.xlu0 %297
    %v300 = vmul.f32 %v271, %v298
    %v301 = vtanh.pop %v294
    %303 = vrot.lane.b32.xlu0 %v301, 64
    %v304 = vpop.permute.xlu0 %303
    %v306 = vmul.f32 %v272, %v304
    %308 = vrot.lane.b32.xlu0 %v300, 32
    %v309 = vpop.permute.xlu0 %308
    %312 = vrot.lane.b32.xlu0 %v306, 64
    %v313 = vpop.permute.xlu0 %312
    %v315 = vsel %vm77, %v309, %v313
    %v316 = vld [vmem:[#allocation2] sm:$0xc]
    %v317 = vld [vmem:[#allocation2 + $0x18] sm:$0x30]
    %v319 = vrot.slane %v317, 2
    %v322 = vsel %vm186, %v315, 0
    %324 = vmatprep.subr.mxu0 0.0
    %325 = vmatpush1.msra.mxu0 0.0
    %326 = vmatprep.subr.mxu0 0.0
    %327 = vmatpush1.msra.mxu0 0.0
    %328 = vmatprep.subr.mxu0 0.0
    %329 = vmatpush1.msra.mxu0 0.0
    %330 = vmatprep.subr.mxu0 0.0
    %331 = vmatpush1.msra.mxu0 0.0
    %332 = vmatprep.subr.mxu0 0.0
    %333 = vmatpush1.msra.mxu0 0.0
    %334 = vmatprep.subr.mxu0 0.0
    %335 = vmatpush1.msra.mxu0 0.0
    %336 = vmatprep.subr.mxu0 0.0
    %337 = vmatpush1.msra.mxu0 0.0
    %338 = vmatprep.subr.mxu0 0.0
    %339 = vmatpush1.msra.mxu0 0.0
    %340 = vmatprep.subr.mxu0 %v180
    %341 = vmatpush1.msra.mxu0 %v179
    %342 = vmatprep.subr.mxu0 %v178
    %343 = vmatpush1.msra.mxu0 %v177
    %344 = vmatprep.subr.mxu0 %v176
    %345 = vmatpush1.msra.mxu0 %v175
    %346 = vmatprep.subr.mxu0 %v174
    %347 = vmatpush1.msra.mxu0 %v173
    %348 = vmatprep.subr.mxu0 %v172
    %349 = vmatpush1.msra.mxu0 %v171
    %350 = vmatprep.subr.mxu0 %v170
    %351 = vmatpush1.msra.mxu0 %v169
    %352 = vmatprep.subr.mxu0 %v168
    %353 = vmatpush1.msra.mxu0 %v167
    %354 = vmatprep.subr.mxu0 %v166
    %355 = vmatpush1.msra.mxu0 %v165
    %356 = vmatprep.subr.mxu0 0.0
    %357 = vmatpush2.msra.mxu0 0.0
    %358 = vmatprep.subr.mxu0 0.0
    %359 = vmatpush2.msra.mxu0 0.0
    %360 = vmatprep.subr.mxu0 0.0
    %361 = vmatpush2.msra.mxu0 0.0
    %362 = vmatprep.subr.mxu0 0.0
    %363 = vmatpush2.msra.mxu0 0.0
    %364 = vmatprep.subr.mxu0 0.0
    %365 = vmatpush2.msra.mxu0 0.0
    %366 = vmatprep.subr.mxu0 0.0
    %367 = vmatpush2.msra.mxu0 0.0
    %368 = vmatprep.subr.mxu0 0.0
    %369 = vmatpush2.msra.mxu0 0.0
    %370 = vmatprep.subr.mxu0 0.0
    %371 = vmatpush2.msra.mxu0 0.0
    %372 = vmatprep.subr.mxu0 0.0
    %373 = vmatpush2.msra.mxu0 0.0
    %374 = vmatprep.subr.mxu0 0.0
    %375 = vmatpush2.msra.mxu0 0.0
    %376 = vmatprep.subr.mxu0 0.0
    %377 = vmatpush2.msra.mxu0 0.0
    %378 = vmatprep.subr.mxu0 0.0
    %379 = vmatpush2.msra.mxu0 0.0
    %380 = vmatprep.subr.mxu0 0.0
    %381 = vmatpush2.msra.mxu0 0.0
    %382 = vmatprep.subr.mxu0 0.0
    %383 = vmatpush2.msra.mxu0 0.0
    %384 = vmatprep.subr.mxu0 0.0
    %385 = vmatpush2.msra.mxu0 0.0
    %386 = vmatprep.subr.mxu0 0.0
    %387 = vmatpush2.msra.mxu0 0.0
    %388 = vmatprep.mubr.f32.mxu0 0.0
    %389 = vmatmul.mubr.f32.gmra.mxu0 %v322
    %v390 = vpop.f32.mrf.mxu0
    %v391 = vadd.f32 0.0, %v390
    %v392 = vpop.f32.mrf.mxu0
    %v393 = vadd.f32 0.0, %v392
    %394 = vdwg.mxu0
    %v397 = vrot.slane %v391, 6
    %v398 = vrot.slane %v393, 6
    %v401 = vadd.f32 %v316, %v397
    %v402 = vadd.f32 %v319, %v398
    %v403 = vmul.f32 %v401, %v53
    %v404 = vmul.f32 %v402, %v54
    %v405 = vtanh.pop %v403
    %v406 = vtanh.pop %v404
    %v407 = vmul.f32 %v405, 0.5
    %v408 = vmul.f32 %v406, 0.5
    %v409 = vadd.f32 %v407, 0.5
    %v410 = vadd.f32 %v408, 0.5
    %v411 = vsel %vm51, %v405, %v409
    %v412 = vsel %vm52, %v406, %v410
    %v414 = vrot.slane %v283, 6
    %v416 = vmul.f32 %v411, %v414
    %418 = vrot.lane.b32.xlu0 %v411, 64
    %v419 = vpop.permute.xlu0 %418
    %v421 = vmul.f32 %v411, %v419
    %423 = vrot.lane.b32.xlu0 %v421, 32
    %v424 = vpop.permute.xlu0 %423
    %v426 = vadd.f32 %v416, %v424
    %v428 = vrot.slane %v294, 6
    %v430 = vmul.f32 %v412, %v428
    %432 = vrot.lane.b32.xlu0 %v412, 64
    %v433 = vpop.permute.xlu0 %432
    %v435 = vmul.f32 %v412, %v433
    %437 = vrot.lane.b32.xlu0 %v435, 32
    %v438 = vpop.permute.xlu0 %437
    %v440 = vadd.f32 %v430, %v438
    %v441 = vtanh.pop %v426
    %443 = vrot.lane.b32.xlu0 %v441, 64
    %v444 = vpop.permute.xlu0 %443
    %v446 = vmul.f32 %v411, %v444
    %v447 = vtanh.pop %v440
    %449 = vrot.lane.b32.xlu0 %v447, 64
    %v450 = vpop.permute.xlu0 %449
    %v452 = vmul.f32 %v412, %v450
    %454 = vrot.lane.b32.xlu0 %v446, 32
    %v455 = vpop.permute.xlu0 %454
    %458 = vrot.lane.b32.xlu0 %v452, 64
    %v459 = vpop.permute.xlu0 %458
    %v461 = vsel %vm77, %v455, %v459
    %v462 = vld [vmem:[#allocation2] sm:$0x30]
    %v463 = vld [vmem:[#allocation2 + $0x18] sm:$0xc]
    %v465 = vrot.slane %v463, 6
    %v468 = vrot.slane %v461, 2
    %v469 = vsel %vm186, %v468, 0
    %471 = vmatprep.subr.mxu0 0.0
    %472 = vmatpush1.msra.mxu0 0.0
    %473 = vmatprep.subr.mxu0 0.0
    %474 = vmatpush1.msra.mxu0 0.0
    %475 = vmatprep.subr.mxu0 0.0
    %476 = vmatpush1.msra.mxu0 0.0
    %477 = vmatprep.subr.mxu0 0.0
    %478 = vmatpush1.msra.mxu0 0.0
    %479 = vmatprep.subr.mxu0 0.0
    %480 = vmatpush1.msra.mxu0 0.0
    %481 = vmatprep.subr.mxu0 0.0
    %482 = vmatpush1.msra.mxu0 0.0
    %483 = vmatprep.subr.mxu0 0.0
    %484 = vmatpush1.msra.mxu0 0.0
    %485 = vmatprep.subr.mxu0 0.0
    %486 = vmatpush1.msra.mxu0 0.0
    %487 = vmatprep.subr.mxu0 %v180
    %488 = vmatpush1.msra.mxu0 %v179
    %489 = vmatprep.subr.mxu0 %v178
    %490 = vmatpush1.msra.mxu0 %v177
    %491 = vmatprep.subr.mxu0 %v176
    %492 = vmatpush1.msra.mxu0 %v175
    %493 = vmatprep.subr.mxu0 %v174
    %494 = vmatpush1.msra.mxu0 %v173
    %495 = vmatprep.subr.mxu0 %v172
    %496 = vmatpush1.msra.mxu0 %v171
    %497 = vmatprep.subr.mxu0 %v170
    %498 = vmatpush1.msra.mxu0 %v169
    %499 = vmatprep.subr.mxu0 %v168
    %500 = vmatpush1.msra.mxu0 %v167
    %501 = vmatprep.subr.mxu0 %v166
    %502 = vmatpush1.msra.mxu0 %v165
    %503 = vmatprep.subr.mxu0 0.0
    %504 = vmatpush2.msra.mxu0 0.0
    %505 = vmatprep.subr.mxu0 0.0
    %506 = vmatpush2.msra.mxu0 0.0
    %507 = vmatprep.subr.mxu0 0.0
    %508 = vmatpush2.msra.mxu0 0.0
    %509 = vmatprep.subr.mxu0 0.0
    %510 = vmatpush2.msra.mxu0 0.0
    %511 = vmatprep.subr.mxu0 0.0
    %512 = vmatpush2.msra.mxu0 0.0
    %513 = vmatprep.subr.mxu0 0.0
    %514 = vmatpush2.msra.mxu0 0.0
    %515 = vmatprep.subr.mxu0 0.0
    %516 = vmatpush2.msra.mxu0 0.0
    %517 = vmatprep.subr.mxu0 0.0
    %518 = vmatpush2.msra.mxu0 0.0
    %519 = vmatprep.subr.mxu0 0.0
    %520 = vmatpush2.msra.mxu0 0.0
    %521 = vmatprep.subr.mxu0 0.0
    %522 = vmatpush2.msra.mxu0 0.0
    %523 = vmatprep.subr.mxu0 0.0
    %524 = vmatpush2.msra.mxu0 0.0
    %525 = vmatprep.subr.mxu0 0.0
    %526 = vmatpush2.msra.mxu0 0.0
    %527 = vmatprep.subr.mxu0 0.0
    %528 = vmatpush2.msra.mxu0 0.0
    %529 = vmatprep.subr.mxu0 0.0
    %530 = vmatpush2.msra.mxu0 0.0
    %531 = vmatprep.subr.mxu0 0.0
    %532 = vmatpush2.msra.mxu0 0.0
    %533 = vmatprep.subr.mxu0 0.0
    %534 = vmatpush2.msra.mxu0 0.0
    %535 = vmatprep.mubr.f32.mxu0 0.0
    %536 = vmatmul.mubr.f32.gmra.mxu0 %v469
    %v537 = vpop.f32.mrf.mxu0
    %v538 = vadd.f32 0.0, %v537
    %v539 = vpop.f32.mrf.mxu0
    %v540 = vadd.f32 0.0, %v539
    %541 = vdwg.mxu0
    %v544 = vrot.slane %v538, 4
    %v545 = vrot.slane %v540, 4
    %v548 = vadd.f32 %v462, %v544
    %v549 = vadd.f32 %v465, %v545
    %v550 = vmul.f32 %v548, %v53
    %v551 = vmul.f32 %v549, %v54
    %v552 = vtanh.pop %v550
    %v553 = vtanh.pop %v551
    %v554 = vmul.f32 %v552, 0.5
    %v555 = vmul.f32 %v553, 0.5
    %v556 = vadd.f32 %v554, 0.5
    %v557 = vadd.f32 %v555, 0.5
    %v558 = vsel %vm51, %v552, %v556
    %v559 = vsel %vm52, %v553, %v557
    %v561 = vrot.slane %v426, 6
    %v563 = vmul.f32 %v558, %v561
    %565 = vrot.lane.b32.xlu0 %v558, 64
    %v566 = vpop.permute.xlu0 %565
    %v568 = vmul.f32 %v558, %v566
    %570 = vrot.lane.b32.xlu0 %v568, 32
    %v571 = vpop.permute.xlu0 %570
    %v573 = vadd.f32 %v563, %v571
    %v575 = vrot.slane %v440, 6
    %v577 = vmul.f32 %v559, %v575
    %579 = vrot.lane.b32.xlu0 %v559, 64
    %v580 = vpop.permute.xlu0 %579
    %v582 = vmul.f32 %v559, %v580
    %584 = vrot.lane.b32.xlu0 %v582, 32
    %v585 = vpop.permute.xlu0 %584
    %v587 = vadd.f32 %v577, %v585
    %v588 = vtanh.pop %v573
    %590 = vrot.lane.b32.xlu0 %v588, 64
    %v591 = vpop.permute.xlu0 %590
    %v593 = vmul.f32 %v558, %v591
    %v594 = vtanh.pop %v587
    %596 = vrot.lane.b32.xlu0 %v594, 64
    %v597 = vpop.permute.xlu0 %596
    %v599 = vmul.f32 %v559, %v597
    %601 = vrot.lane.b32.xlu0 %v593, 32
    %v602 = vpop.permute.xlu0 %601
    %605 = vrot.lane.b32.xlu0 %v599, 64
    %v606 = vpop.permute.xlu0 %605
    %v608 = vsel %vm77, %v602, %v606
    %v609 = vld [vmem:[#allocation2] sm:$0xc0]
    %v610 = vld [vmem:[#allocation2 + $0x18] sm:$0x3]
    %v612 = vrot.slane %v610, 2
    %v615 = vrot.slane %v608, 4
    %v616 = vsel %vm186, %v615, 0
    %618 = vmatprep.subr.mxu0 0.0
    %619 = vmatpush1.msra.mxu0 0.0
    %620 = vmatprep.subr.mxu0 0.0
    %621 = vmatpush1.msra.mxu0 0.0
    %622 = vmatprep.subr.mxu0 0.0
    %623 = vmatpush1.msra.mxu0 0.0
    %624 = vmatprep.subr.mxu0 0.0
    %625 = vmatpush1.msra.mxu0 0.0
    %626 = vmatprep.subr.mxu0 0.0
    %627 = vmatpush1.msra.mxu0 0.0
    %628 = vmatprep.subr.mxu0 0.0
    %629 = vmatpush1.msra.mxu0 0.0
    %630 = vmatprep.subr.mxu0 0.0
    %631 = vmatpush1.msra.mxu0 0.0
    %632 = vmatprep.subr.mxu0 0.0
    %633 = vmatpush1.msra.mxu0 0.0
    %634 = vmatprep.subr.mxu0 %v180
    %635 = vmatpush1.msra.mxu0 %v179
    %636 = vmatprep.subr.mxu0 %v178
    %637 = vmatpush1.msra.mxu0 %v177
    %638 = vmatprep.subr.mxu0 %v176
    %639 = vmatpush1.msra.mxu0 %v175
    %640 = vmatprep.subr.mxu0 %v174
    %641 = vmatpush1.msra.mxu0 %v173
    %642 = vmatprep.subr.mxu0 %v172
    %643 = vmatpush1.msra.mxu0 %v171
    %644 = vmatprep.subr.mxu0 %v170
    %645 = vmatpush1.msra.mxu0 %v169
    %646 = vmatprep.subr.mxu0 %v168
    %647 = vmatpush1.msra.mxu0 %v167
    %648 = vmatprep.subr.mxu0 %v166
    %649 = vmatpush1.msra.mxu0 %v165
    %650 = vmatprep.subr.mxu0 0.0
    %651 = vmatpush2.msra.mxu0 0.0
    %652 = vmatprep.subr.mxu0 0.0
    %653 = vmatpush2.msra.mxu0 0.0
    %654 = vmatprep.subr.mxu0 0.0
    %655 = vmatpush2.msra.mxu0 0.0
    %656 = vmatprep.subr.mxu0 0.0
    %657 = vmatpush2.msra.mxu0 0.0
    %658 = vmatprep.subr.mxu0 0.0
    %659 = vmatpush2.msra.mxu0 0.0
    %660 = vmatprep.subr.mxu0 0.0
    %661 = vmatpush2.msra.mxu0 0.0
    %662 = vmatprep.subr.mxu0 0.0
    %663 = vmatpush2.msra.mxu0 0.0
    %664 = vmatprep.subr.mxu0 0.0
    %665 = vmatpush2.msra.mxu0 0.0
    %666 = vmatprep.subr.mxu0 0.0
    %667 = vmatpush2.msra.mxu0 0.0
    %668 = vmatprep.subr.mxu0 0.0
    %669 = vmatpush2.msra.mxu0 0.0
    %670 = vmatprep.subr.mxu0 0.0
    %671 = vmatpush2.msra.mxu0 0.0
    %672 = vmatprep.subr.mxu0 0.0
    %673 = vmatpush2.msra.mxu0 0.0
    %674 = vmatprep.subr.mxu0 0.0
    %675 = vmatpush2.msra.mxu0 0.0
    %676 = vmatprep.subr.mxu0 0.0
    %677 = vmatpush2.msra.mxu0 0.0
    %678 = vmatprep.subr.mxu0 0.0
    %679 = vmatpush2.msra.mxu0 0.0
    %680 = vmatprep.subr.mxu0 0.0
    %681 = vmatpush2.msra.mxu0 0.0
    %682 = vmatprep.mubr.f32.mxu0 0.0
    %683 = vmatmul.mubr.f32.gmra.mxu0 %v616
    %v684 = vpop.f32.mrf.mxu0
    %v685 = vadd.f32 0.0, %v684
    %v686 = vpop.f32.mrf.mxu0
    %v687 = vadd.f32 0.0, %v686
    %688 = vdwg.mxu0
    %v691 = vrot.slane %v685, 2
    %v692 = vrot.slane %v687, 2
    %v695 = vadd.f32 %v609, %v691
    %v696 = vadd.f32 %v612, %v692
    %v697 = vmul.f32 %v695, %v53
    %v698 = vmul.f32 %v696, %v54
    %v699 = vtanh.pop %v697
    %v700 = vtanh.pop %v698
    %v701 = vmul.f32 %v699, 0.5
    %v702 = vmul.f32 %v700, 0.5
    %v703 = vadd.f32 %v701, 0.5
    %v704 = vadd.f32 %v702, 0.5
    %v705 = vsel %vm51, %v699, %v703
    %v706 = vsel %vm52, %v700, %v704
    %v708 = vrot.slane %v573, 6
    %v710 = vmul.f32 %v705, %v708
    %712 = vrot.lane.b32.xlu0 %v705, 64
    %v713 = vpop.permute.xlu0 %712
    %v715 = vmul.f32 %v705, %v713
    %717 = vrot.lane.b32.xlu0 %v715, 32
    %v718 = vpop.permute.xlu0 %717
    %v720 = vadd.f32 %v710, %v718
    %v722 = vrot.slane %v587, 6
    %v724 = vmul.f32 %v706, %v722
    %726 = vrot.lane.b32.xlu0 %v706, 64
    %v727 = vpop.permute.xlu0 %726
    %v729 = vmul.f32 %v706, %v727
    %731 = vrot.lane.b32.xlu0 %v729, 32
    %v732 = vpop.permute.xlu0 %731
    %v734 = vadd.f32 %v724, %v732
    %v735 = vtanh.pop %v720
    %737 = vrot.lane.b32.xlu0 %v735, 64
    %v738 = vpop.permute.xlu0 %737
    %v740 = vmul.f32 %v705, %v738
    %v741 = vtanh.pop %v734
    %743 = vrot.lane.b32.xlu0 %v741, 64
    %v744 = vpop.permute.xlu0 %743
    %v746 = vmul.f32 %v706, %v744
    %748 = vrot.lane.b32.xlu0 %v740, 32
    %v749 = vpop.permute.xlu0 %748
    %752 = vrot.lane.b32.xlu0 %v746, 64
    %v753 = vpop.permute.xlu0 %752
    %v755 = vsel %vm77, %v749, %v753
    %v756 = vld [vmem:[#allocation2 + $0x10] sm:$0x3]
    %v757 = vld [vmem:[#allocation2 + $0x8] sm:$0xc0]
    %v759 = vrot.slane %v757, 6
    %v762 = vrot.slane %v755, 6
    %v763 = vsel %vm186, %v762, 0
    %765 = vmatprep.subr.mxu0 0.0
    %766 = vmatpush1.msra.mxu0 0.0
    %767 = vmatprep.subr.mxu0 0.0
    %768 = vmatpush1.msra.mxu0 0.0
    %769 = vmatprep.subr.mxu0 0.0
    %770 = vmatpush1.msra.mxu0 0.0
    %771 = vmatprep.subr.mxu0 0.0
    %772 = vmatpush1.msra.mxu0 0.0
    %773 = vmatprep.subr.mxu0 0.0
    %774 = vmatpush1.msra.mxu0 0.0
    %775 = vmatprep.subr.mxu0 0.0
    %776 = vmatpush1.msra.mxu0 0.0
    %777 = vmatprep.subr.mxu0 0.0
    %778 = vmatpush1.msra.mxu0 0.0
    %779 = vmatprep.subr.mxu0 0.0
    %780 = vmatpush1.msra.mxu0 0.0
    %781 = vmatprep.subr.mxu0 %v180
    %782 = vmatpush1.msra.mxu0 %v179
    %783 = vmatprep.subr.mxu0 %v178
    %784 = vmatpush1.msra.mxu0 %v177
    %785 = vmatprep.subr.mxu0 %v176
    %786 = vmatpush1.msra.mxu0 %v175
    %787 = vmatprep.subr.mxu0 %v174
    %788 = vmatpush1.msra.mxu0 %v173
    %789 = vmatprep.subr.mxu0 %v172
    %790 = vmatpush1.msra.mxu0 %v171
    %791 = vmatprep.subr.mxu0 %v170
    %792 = vmatpush1.msra.mxu0 %v169
    %793 = vmatprep.subr.mxu0 %v168
    %794 = vmatpush1.msra.mxu0 %v167
    %795 = vmatprep.subr.mxu0 %v166
    %796 = vmatpush1.msra.mxu0 %v165
    %797 = vmatprep.subr.mxu0 0.0
    %798 = vmatpush2.msra.mxu0 0.0
    %799 = vmatprep.subr.mxu0 0.0
    %800 = vmatpush2.msra.mxu0 0.0
    %801 = vmatprep.subr.mxu0 0.0
    %802 = vmatpush2.msra.mxu0 0.0
    %803 = vmatprep.subr.mxu0 0.0
    %804 = vmatpush2.msra.mxu0 0.0
    %805 = vmatprep.subr.mxu0 0.0
    %806 = vmatpush2.msra.mxu0 0.0
    %807 = vmatprep.subr.mxu0 0.0
    %808 = vmatpush2.msra.mxu0 0.0
    %809 = vmatprep.subr.mxu0 0.0
    %810 = vmatpush2.msra.mxu0 0.0
    %811 = vmatprep.subr.mxu0 0.0
    %812 = vmatpush2.msra.mxu0 0.0
    %813 = vmatprep.subr.mxu0 0.0
    %814 = vmatpush2.msra.mxu0 0.0
    %815 = vmatprep.subr.mxu0 0.0
    %816 = vmatpush2.msra.mxu0 0.0
    %817 = vmatprep.subr.mxu0 0.0
    %818 = vmatpush2.msra.mxu0 0.0
    %819 = vmatprep.subr.mxu0 0.0
    %820 = vmatpush2.msra.mxu0 0.0
    %821 = vmatprep.subr.mxu0 0.0
    %822 = vmatpush2.msra.mxu0 0.0
    %823 = vmatprep.subr.mxu0 0.0
    %824 = vmatpush2.msra.mxu0 0.0
    %825 = vmatprep.subr.mxu0 0.0
    %826 = vmatpush2.msra.mxu0 0.0
    %827 = vmatprep.subr.mxu0 0.0
    %828 = vmatpush2.msra.mxu0 0.0
    %829 = vmatprep.mubr.f32.mxu0 0.0
    %830 = vmatmul.mubr.f32.gmra.mxu0 %v763
    %v831 = vpop.f32.mrf.mxu0
    %v832 = vadd.f32 0.0, %v831
    %v833 = vpop.f32.mrf.mxu0
    %v834 = vadd.f32 0.0, %v833
    %835 = vdwg.mxu0
    %v836 = vadd.f32 %v756, %v832
    %v837 = vadd.f32 %v759, %v834
    %v838 = vmul.f32 %v836, %v53
    %v839 = vmul.f32 %v837, %v54
    %v840 = vtanh.pop %v838
    %v841 = vtanh.pop %v839
    %v842 = vmul.f32 %v840, 0.5
    %v843 = vmul.f32 %v841, 0.5
    %v844 = vadd.f32 %v842, 0.5
    %v845 = vadd.f32 %v843, 0.5
    %v846 = vsel %vm51, %v840, %v844
    %v847 = vsel %vm52, %v841, %v845
    %v849 = vrot.slane %v720, 6
    %v851 = vmul.f32 %v846, %v849
    %853 = vrot.lane.b32.xlu0 %v846, 64
    %v854 = vpop.permute.xlu0 %853
    %v856 = vmul.f32 %v846, %v854
    %858 = vrot.lane.b32.xlu0 %v856, 32
    %v859 = vpop.permute.xlu0 %858
    %v861 = vadd.f32 %v851, %v859
    %v863 = vrot.slane %v734, 6
    %v865 = vmul.f32 %v847, %v863
    %867 = vrot.lane.b32.xlu0 %v847, 64
    %v868 = vpop.permute.xlu0 %867
    %v870 = vmul.f32 %v847, %v868
    %872 = vrot.lane.b32.xlu0 %v870, 32
    %v873 = vpop.permute.xlu0 %872
    %v875 = vadd.f32 %v865, %v873
    %v876 = vtanh.pop %v861
    %878 = vrot.lane.b32.xlu0 %v876, 64
    %v879 = vpop.permute.xlu0 %878
    %v881 = vmul.f32 %v846, %v879
    %v882 = vtanh.pop %v875
    %884 = vrot.lane.b32.xlu0 %v882, 64
    %v885 = vpop.permute.xlu0 %884
    %v887 = vmul.f32 %v847, %v885
    %889 = vrot.lane.b32.xlu0 %v881, 32
    %v890 = vpop.permute.xlu0 %889
    %893 = vrot.lane.b32.xlu0 %v887, 64
    %v894 = vpop.permute.xlu0 %893
    %v896 = vsel %vm77, %v890, %v894
    %v897 = vld [vmem:[#allocation2 + $0x10] sm:$0xc]
    %v898 = vld [vmem:[#allocation2 + $0x8] sm:$0x30]
    %v900 = vrot.slane %v898, 2
    %v903 = vsel %vm186, %v896, 0
    %905 = vmatprep.subr.mxu0 0.0
    %906 = vmatpush1.msra.mxu0 0.0
    %907 = vmatprep.subr.mxu0 0.0
    %908 = vmatpush1.msra.mxu0 0.0
    %909 = vmatprep.subr.mxu0 0.0
    %910 = vmatpush1.msra.mxu0 0.0
    %911 = vmatprep.subr.mxu0 0.0
    %912 = vmatpush1.msra.mxu0 0.0
    %913 = vmatprep.subr.mxu0 0.0
    %914 = vmatpush1.msra.mxu0 0.0
    %915 = vmatprep.subr.mxu0 0.0
    %916 = vmatpush1.msra.mxu0 0.0
    %917 = vmatprep.subr.mxu0 0.0
    %918 = vmatpush1.msra.mxu0 0.0
    %919 = vmatprep.subr.mxu0 0.0
    %920 = vmatpush1.msra.mxu0 0.0
    %921 = vmatprep.subr.mxu0 %v180
    %922 = vmatpush1.msra.mxu0 %v179
    %923 = vmatprep.subr.mxu0 %v178
    %924 = vmatpush1.msra.mxu0 %v177
    %925 = vmatprep.subr.mxu0 %v176
    %926 = vmatpush1.msra.mxu0 %v175
    %927 = vmatprep.subr.mxu0 %v174
    %928 = vmatpush1.msra.mxu0 %v173
    %929 = vmatprep.subr.mxu0 %v172
    %930 = vmatpush1.msra.mxu0 %v171
    %931 = vmatprep.subr.mxu0 %v170
    %932 = vmatpush1.msra.mxu0 %v169
    %933 = vmatprep.subr.mxu0 %v168
    %934 = vmatpush1.msra.mxu0 %v167
    %935 = vmatprep.subr.mxu0 %v166
    %936 = vmatpush1.msra.mxu0 %v165
    %937 = vmatprep.subr.mxu0 0.0
    %938 = vmatpush2.msra.mxu0 0.0
    %939 = vmatprep.subr.mxu0 0.0
    %940 = vmatpush2.msra.mxu0 0.0
    %941 = vmatprep.subr.mxu0 0.0
    %942 = vmatpush2.msra.mxu0 0.0
    %943 = vmatprep.subr.mxu0 0.0
    %944 = vmatpush2.msra.mxu0 0.0
    %945 = vmatprep.subr.mxu0 0.0
    %946 = vmatpush2.msra.mxu0 0.0
    %947 = vmatprep.subr.mxu0 0.0
    %948 = vmatpush2.msra.mxu0 0.0
    %949 = vmatprep.subr.mxu0 0.0
    %950 = vmatpush2.msra.mxu0 0.0
    %951 = vmatprep.subr.mxu0 0.0
    %952 = vmatpush2.msra.mxu0 0.0
    %953 = vmatprep.subr.mxu0 0.0
    %954 = vmatpush2.msra.mxu0 0.0
    %955 = vmatprep.subr.mxu0 0.0
    %956 = vmatpush2.msra.mxu0 0.0
    %957 = vmatprep.subr.mxu0 0.0
    %958 = vmatpush2.msra.mxu0 0.0
    %959 = vmatprep.subr.mxu0 0.0
    %960 = vmatpush2.msra.mxu0 0.0
    %961 = vmatprep.subr.mxu0 0.0
    %962 = vmatpush2.msra.mxu0 0.0
    %963 = vmatprep.subr.mxu0 0.0
    %964 = vmatpush2.msra.mxu0 0.0
    %965 = vmatprep.subr.mxu0 0.0
    %966 = vmatpush2.msra.mxu0 0.0
    %967 = vmatprep.subr.mxu0 0.0
    %968 = vmatpush2.msra.mxu0 0.0
    %969 = vmatprep.mubr.f32.mxu0 0.0
    %970 = vmatmul.mubr.f32.gmra.mxu0 %v903
    %v971 = vpop.f32.mrf.mxu0
    %v972 = vadd.f32 0.0, %v971
    %v973 = vpop.f32.mrf.mxu0
    %v974 = vadd.f32 0.0, %v973
    %975 = vdwg.mxu0
    %v978 = vrot.slane %v972, 6
    %v979 = vrot.slane %v974, 6
    %v982 = vadd.f32 %v897, %v978
    %v983 = vadd.f32 %v900, %v979
    %v984 = vmul.f32 %v982, %v53
    %v985 = vmul.f32 %v983, %v54
    %v986 = vtanh.pop %v984
    %v987 = vtanh.pop %v985
    %v988 = vmul.f32 %v986, 0.5
    %v989 = vmul.f32 %v987, 0.5
    %v990 = vadd.f32 %v988, 0.5
    %v991 = vadd.f32 %v989, 0.5
    %v992 = vsel %vm51, %v986, %v990
    %v993 = vsel %vm52, %v987, %v991
    %v995 = vrot.slane %v861, 6
    %v997 = vmul.f32 %v992, %v995
    %999 = vrot.lane.b32.xlu0 %v992, 64
    %v1000 = vpop.permute.xlu0 %999
    %v1002 = vmul.f32 %v992, %v1000
    %1004 = vrot.lane.b32.xlu0 %v1002, 32
    %v1005 = vpop.permute.xlu0 %1004
    %v1007 = vadd.f32 %v997, %v1005
    %v1009 = vrot.slane %v875, 6
    %v1011 = vmul.f32 %v993, %v1009
    %1013 = vrot.lane.b32.xlu0 %v993, 64
    %v1014 = vpop.permute.xlu0 %1013
    %v1016 = vmul.f32 %v993, %v1014
    %1018 = vrot.lane.b32.xlu0 %v1016, 32
    %v1019 = vpop.permute.xlu0 %1018
    %v1021 = vadd.f32 %v1011, %v1019
    %v1022 = vtanh.pop %v1007
    %1024 = vrot.lane.b32.xlu0 %v1022, 64
    %v1025 = vpop.permute.xlu0 %1024
    %v1027 = vmul.f32 %v992, %v1025
    %v1028 = vtanh.pop %v1021
    %1030 = vrot.lane.b32.xlu0 %v1028, 64
    %v1031 = vpop.permute.xlu0 %1030
    %v1033 = vmul.f32 %v993, %v1031
    %1035 = vrot.lane.b32.xlu0 %v1027, 32
    %v1036 = vpop.permute.xlu0 %1035
    %1039 = vrot.lane.b32.xlu0 %v1033, 64
    %v1040 = vpop.permute.xlu0 %1039
    %v1042 = vsel %vm77, %v1036, %v1040
    %v1043 = vld [vmem:[#allocation2 + $0x10] sm:$0x30]
    %v1044 = vld [vmem:[#allocation2 + $0x8] sm:$0xc]
    %v1046 = vrot.slane %v1044, 6
    %v1049 = vrot.slane %v1042, 2
    %v1050 = vsel %vm186, %v1049, 0
    %1052 = vmatprep.subr.mxu0 0.0
    %1053 = vmatpush1.msra.mxu0 0.0
    %1054 = vmatprep.subr.mxu0 0.0
    %1055 = vmatpush1.msra.mxu0 0.0
    %1056 = vmatprep.subr.mxu0 0.0
    %1057 = vmatpush1.msra.mxu0 0.0
    %1058 = vmatprep.subr.mxu0 0.0
    %1059 = vmatpush1.msra.mxu0 0.0
    %1060 = vmatprep.subr.mxu0 0.0
    %1061 = vmatpush1.msra.mxu0 0.0
    %1062 = vmatprep.subr.mxu0 0.0
    %1063 = vmatpush1.msra.mxu0 0.0
    %1064 = vmatprep.subr.mxu0 0.0
    %1065 = vmatpush1.msra.mxu0 0.0
    %1066 = vmatprep.subr.mxu0 0.0
    %1067 = vmatpush1.msra.mxu0 0.0
    %1068 = vmatprep.subr.mxu0 %v180
    %1069 = vmatpush1.msra.mxu0 %v179
    %1070 = vmatprep.subr.mxu0 %v178
    %1071 = vmatpush1.msra.mxu0 %v177
    %1072 = vmatprep.subr.mxu0 %v176
    %1073 = vmatpush1.msra.mxu0 %v175
    %1074 = vmatprep.subr.mxu0 %v174
    %1075 = vmatpush1.msra.mxu0 %v173
    %1076 = vmatprep.subr.mxu0 %v172
    %1077 = vmatpush1.msra.mxu0 %v171
    %1078 = vmatprep.subr.mxu0 %v170
    %1079 = vmatpush1.msra.mxu0 %v169
    %1080 = vmatprep.subr.mxu0 %v168
    %1081 = vmatpush1.msra.mxu0 %v167
    %1082 = vmatprep.subr.mxu0 %v166
    %1083 = vmatpush1.msra.mxu0 %v165
    %1084 = vmatprep.subr.mxu0 0.0
    %1085 = vmatpush2.msra.mxu0 0.0
    %1086 = vmatprep.subr.mxu0 0.0
    %1087 = vmatpush2.msra.mxu0 0.0
    %1088 = vmatprep.subr.mxu0 0.0
    %1089 = vmatpush2.msra.mxu0 0.0
    %1090 = vmatprep.subr.mxu0 0.0
    %1091 = vmatpush2.msra.mxu0 0.0
    %1092 = vmatprep.subr.mxu0 0.0
    %1093 = vmatpush2.msra.mxu0 0.0
    %1094 = vmatprep.subr.mxu0 0.0
    %1095 = vmatpush2.msra.mxu0 0.0
    %1096 = vmatprep.subr.mxu0 0.0
    %1097 = vmatpush2.msra.mxu0 0.0
    %1098 = vmatprep.subr.mxu0 0.0
    %1099 = vmatpush2.msra.mxu0 0.0
    %1100 = vmatprep.subr.mxu0 0.0
    %1101 = vmatpush2.msra.mxu0 0.0
    %1102 = vmatprep.subr.mxu0 0.0
    %1103 = vmatpush2.msra.mxu0 0.0
    %1104 = vmatprep.subr.mxu0 0.0
    %1105 = vmatpush2.msra.mxu0 0.0
    %1106 = vmatprep.subr.mxu0 0.0
    %1107 = vmatpush2.msra.mxu0 0.0
    %1108 = vmatprep.subr.mxu0 0.0
    %1109 = vmatpush2.msra.mxu0 0.0
    %1110 = vmatprep.subr.mxu0 0.0
    %1111 = vmatpush2.msra.mxu0 0.0
    %1112 = vmatprep.subr.mxu0 0.0
    %1113 = vmatpush2.msra.mxu0 0.0
    %1114 = vmatprep.subr.mxu0 0.0
    %1115 = vmatpush2.msra.mxu0 0.0
    %1116 = vmatprep.mubr.f32.mxu0 0.0
    %1117 = vmatmul.mubr.f32.gmra.mxu0 %v1050
    %v1118 = vpop.f32.mrf.mxu0
    %v1119 = vadd.f32 0.0, %v1118
    %v1120 = vpop.f32.mrf.mxu0
    %v1121 = vadd.f32 0.0, %v1120
    %1122 = vdwg.mxu0
    %v1125 = vrot.slane %v1119, 4
    %v1126 = vrot.slane %v1121, 4
    %v1129 = vadd.f32 %v1043, %v1125
    %v1130 = vadd.f32 %v1046, %v1126
    %v1131 = vmul.f32 %v1129, %v53
    %v1132 = vmul.f32 %v1130, %v54
    %v1133 = vtanh.pop %v1131
    %v1134 = vtanh.pop %v1132
    %v1135 = vmul.f32 %v1133, 0.5
    %v1136 = vmul.f32 %v1134, 0.5
    %v1137 = vadd.f32 %v1135, 0.5
    %v1138 = vadd.f32 %v1136, 0.5
    %v1139 = vsel %vm51, %v1133, %v1137
    %v1140 = vsel %vm52, %v1134, %v1138
    %v1142 = vrot.slane %v1007, 6
    %v1144 = vmul.f32 %v1139, %v1142
    %1146 = vrot.lane.b32.xlu0 %v1139, 64
    %v1147 = vpop.permute.xlu0 %1146
    %v1149 = vmul.f32 %v1139, %v1147
    %1151 = vrot.lane.b32.xlu0 %v1149, 32
    %v1152 = vpop.permute.xlu0 %1151
    %v1154 = vadd.f32 %v1144, %v1152
    %v1156 = vrot.slane %v1021, 6
    %v1158 = vmul.f32 %v1140, %v1156
    %1160 = vrot.lane.b32.xlu0 %v1140, 64
    %v1161 = vpop.permute.xlu0 %1160
    %v1163 = vmul.f32 %v1140, %v1161
    %1165 = vrot.lane.b32.xlu0 %v1163, 32
    %v1166 = vpop.permute.xlu0 %1165
    %v1168 = vadd.f32 %v1158, %v1166
    %v1169 = vtanh.pop %v1154
    %1171 = vrot.lane.b32.xlu0 %v1169, 64
    %v1172 = vpop.permute.xlu0 %1171
    %v1174 = vmul.f32 %v1139, %v1172
    %v1175 = vtanh.pop %v1168
    %1177 = vrot.lane.b32.xlu0 %v1175, 64
    %v1178 = vpop.permute.xlu0 %1177
    %v1180 = vmul.f32 %v1140, %v1178
    %1182 = vrot.lane.b32.xlu0 %v1174, 32
    %v1183 = vpop.permute.xlu0 %1182
    %1186 = vrot.lane.b32.xlu0 %v1180, 64
    %v1187 = vpop.permute.xlu0 %1186
    %v1189 = vsel %vm77, %v1183, %v1187
    %v1190 = vld [vmem:[#allocation2 + $0x10] sm:$0xc0]
    %v1191 = vld [vmem:[#allocation2 + $0x8] sm:$0x3]
    %v1193 = vrot.slane %v1191, 2
    %v1196 = vrot.slane %v1189, 4
    %v1197 = vsel %vm186, %v1196, 0
    %1199 = vmatprep.subr.mxu0 0.0
    %1200 = vmatpush1.msra.mxu0 0.0
    %1201 = vmatprep.subr.mxu0 0.0
    %1202 = vmatpush1.msra.mxu0 0.0
    %1203 = vmatprep.subr.mxu0 0.0
    %1204 = vmatpush1.msra.mxu0 0.0
    %1205 = vmatprep.subr.mxu0 0.0
    %1206 = vmatpush1.msra.mxu0 0.0
    %1207 = vmatprep.subr.mxu0 0.0
    %1208 = vmatpush1.msra.mxu0 0.0
    %1209 = vmatprep.subr.mxu0 0.0
    %1210 = vmatpush1.msra.mxu0 0.0
    %1211 = vmatprep.subr.mxu0 0.0
    %1212 = vmatpush1.msra.mxu0 0.0
    %1213 = vmatprep.subr.mxu0 0.0
    %1214 = vmatpush1.msra.mxu0 0.0
    %1215 = vmatprep.subr.mxu0 %v180
    %1216 = vmatpush1.msra.mxu0 %v179
    %1217 = vmatprep.subr.mxu0 %v178
    %1218 = vmatpush1.msra.mxu0 %v177
    %1219 = vmatprep.subr.mxu0 %v176
    %1220 = vmatpush1.msra.mxu0 %v175
    %1221 = vmatprep.subr.mxu0 %v174
    %1222 = vmatpush1.msra.mxu0 %v173
    %1223 = vmatprep.subr.mxu0 %v172
    %1224 = vmatpush1.msra.mxu0 %v171
    %1225 = vmatprep.subr.mxu0 %v170
    %1226 = vmatpush1.msra.mxu0 %v169
    %1227 = vmatprep.subr.mxu0 %v168
    %1228 = vmatpush1.msra.mxu0 %v167
    %1229 = vmatprep.subr.mxu0 %v166
    %1230 = vmatpush1.msra.mxu0 %v165
    %1231 = vmatprep.subr.mxu0 0.0
    %1232 = vmatpush2.msra.mxu0 0.0
    %1233 = vmatprep.subr.mxu0 0.0
    %1234 = vmatpush2.msra.mxu0 0.0
    %1235 = vmatprep.subr.mxu0 0.0
    %1236 = vmatpush2.msra.mxu0 0.0
    %1237 = vmatprep.subr.mxu0 0.0
    %1238 = vmatpush2.msra.mxu0 0.0
    %1239 = vmatprep.subr.mxu0 0.0
    %1240 = vmatpush2.msra.mxu0 0.0
    %1241 = vmatprep.subr.mxu0 0.0
    %1242 = vmatpush2.msra.mxu0 0.0
    %1243 = vmatprep.subr.mxu0 0.0
    %1244 = vmatpush2.msra.mxu0 0.0
    %1245 = vmatprep.subr.mxu0 0.0
    %1246 = vmatpush2.msra.mxu0 0.0
    %1247 = vmatprep.subr.mxu0 0.0
    %1248 = vmatpush2.msra.mxu0 0.0
    %1249 = vmatprep.subr.mxu0 0.0
    %1250 = vmatpush2.msra.mxu0 0.0
    %1251 = vmatprep.subr.mxu0 0.0
    %1252 = vmatpush2.msra.mxu0 0.0
    %1253 = vmatprep.subr.mxu0 0.0
    %1254 = vmatpush2.msra.mxu0 0.0
    %1255 = vmatprep.subr.mxu0 0.0
    %1256 = vmatpush2.msra.mxu0 0.0
    %1257 = vmatprep.subr.mxu0 0.0
    %1258 = vmatpush2.msra.mxu0 0.0
    %1259 = vmatprep.subr.mxu0 0.0
    %1260 = vmatpush2.msra.mxu0 0.0
    %1261 = vmatprep.subr.mxu0 0.0
    %1262 = vmatpush2.msra.mxu0 0.0
    %1263 = vmatprep.mubr.f32.mxu0 0.0
    %1264 = vmatmul.mubr.f32.gmra.mxu0 %v1197
    %v1265 = vpop.f32.mrf.mxu0
    %v1266 = vadd.f32 0.0, %v1265
    %v1267 = vpop.f32.mrf.mxu0
    %v1268 = vadd.f32 0.0, %v1267
    %1269 = vdwg.mxu0
    %v1272 = vrot.slane %v1266, 2
    %v1273 = vrot.slane %v1268, 2
    %v1276 = vadd.f32 %v1190, %v1272
    %v1277 = vadd.f32 %v1193, %v1273
    %v1278 = vmul.f32 %v1276, %v53
    %v1279 = vmul.f32 %v1277, %v54
    %v1280 = vtanh.pop %v1278
    %v1281 = vtanh.pop %v1279
    %v1282 = vmul.f32 %v1280, 0.5
    %v1283 = vmul.f32 %v1281, 0.5
    %v1284 = vadd.f32 %v1282, 0.5
    %v1285 = vadd.f32 %v1283, 0.5
    %v1286 = vsel %vm51, %v1280, %v1284
    %v1287 = vsel %vm52, %v1281, %v1285
    %v1289 = vrot.slane %v1154, 6
    %v1291 = vmul.f32 %v1286, %v1289
    %1293 = vrot.lane.b32.xlu0 %v1286, 64
    %v1294 = vpop.permute.xlu0 %1293
    %v1296 = vmul.f32 %v1286, %v1294
    %1298 = vrot.lane.b32.xlu0 %v1296, 32
    %v1299 = vpop.permute.xlu0 %1298
    %v1301 = vadd.f32 %v1291, %v1299
    %v1303 = vrot.slane %v1168, 6
    %v1305 = vmul.f32 %v1287, %v1303
    %1307 = vrot.lane.b32.xlu0 %v1287, 64
    %v1308 = vpop.permute.xlu0 %1307
    %v1310 = vmul.f32 %v1287, %v1308
    %1312 = vrot.lane.b32.xlu0 %v1310, 32
    %v1313 = vpop.permute.xlu0 %1312
    %v1315 = vadd.f32 %v1305, %v1313
    %v1316 = vtanh.pop %v1301
    %1318 = vrot.lane.b32.xlu0 %v1316, 64
    %v1319 = vpop.permute.xlu0 %1318
    %v1321 = vmul.f32 %v1286, %v1319
    %v1322 = vtanh.pop %v1315
    %1324 = vrot.lane.b32.xlu0 %v1322, 64
    %v1325 = vpop.permute.xlu0 %1324
    %v1327 = vmul.f32 %v1287, %v1325
    %v1329 = vrot.slane %v1327, 6
    %1330 = vrot.lane.b32.xlu0 %v1329, 64
    %v1331 = vpop.permute.xlu0 %1330
    %v1333 = vsel %vm77, %v309, %v1331
    %v1334 = vrot.slane %v1180, 2
    %1335 = vrot.lane.b32.xlu0 %v1334, 64
    %v1336 = vpop.permute.xlu0 %1335
    %v1338 = vsel %vm77, %v455, %v1336
    %v1339 = vrot.slane %v1033, 6
    %1340 = vrot.lane.b32.xlu0 %v1339, 64
    %v1341 = vpop.permute.xlu0 %1340
    %v1343 = vsel %vm77, %v602, %v1341
    %v1344 = vrot.slane %v887, 2
    %1345 = vrot.lane.b32.xlu0 %v1344, 64
    %v1346 = vpop.permute.xlu0 %1345
    %v1348 = vsel %vm77, %v749, %v1346
    %v1349 = vrot.slane %v746, 6
    %1350 = vrot.lane.b32.xlu0 %v1349, 64
    %v1351 = vpop.permute.xlu0 %1350
    %v1353 = vsel %vm77, %v890, %v1351
    %v1354 = vrot.slane %v599, 2
    %1355 = vrot.lane.b32.xlu0 %v1354, 64
    %v1356 = vpop.permute.xlu0 %1355
    %v1358 = vsel %vm77, %v1036, %v1356
    %v1359 = vrot.slane %v452, 6
    %1360 = vrot.lane.b32.xlu0 %v1359, 64
    %v1361 = vpop.permute.xlu0 %1360
    %v1363 = vsel %vm77, %v1183, %v1361
    %1365 = vrot.lane.b32.xlu0 %v1321, 32
    %v1366 = vpop.permute.xlu0 %1365
    %v1368 = vrot.slane %v306, 2
    %1369 = vrot.lane.b32.xlu0 %v1368, 64
    %v1370 = vpop.permute.xlu0 %1369
    %v1372 = vsel %vm77, %v1366, %v1370
    %vm1373 = vcmask 1041408
    %v1374 = vsel %vm1373, %v1333, %v1338
    %vm1375 = vcmask 1043456
    %v1376 = vsel %vm1375, %v1374, %v1343
    %vm1377 = vcmask 1045504
    %v1378 = vsel %vm1377, %v1376, %v1348
    %v1379 = vsel %vm1373, %v1353, %v1358
    %v1380 = vsel %vm1375, %v1379, %v1363
    %v1381 = vsel %vm1377, %v1380, %v1372
    %v1382 = vld [vmem:[%s4] sm:$0xff]
    %v1383 = vld [vmem:[%s4 + $0x8] sm:$0xff]
    %v1384 = vld [vmem:[%s4 + $0x10] sm:$0xff]
    %v1385 = vld [vmem:[%s4 + $0x18] sm:$0xff]
    %v1386 = vld [vmem:[%s4 + $0x20] sm:$0xff]
    %v1387 = vld [vmem:[%s4 + $0x28] sm:$0xff]
    %v1388 = vld [vmem:[%s4 + $0x30] sm:$0xff]
    %v1389 = vld [vmem:[%s4 + $0x38] sm:$0xff]
    %v1390 = vld [vmem:[%s4 + $0x40] sm:$0xff]
    %v1391 = vld [vmem:[%s4 + $0x48] sm:$0xff]
    %v1392 = vld [vmem:[%s4 + $0x50] sm:$0xff]
    %v1393 = vld [vmem:[%s4 + $0x58] sm:$0xff]
    %v1394 = vld [vmem:[%s4 + $0x60] sm:$0xff]
    %v1395 = vld [vmem:[%s4 + $0x68] sm:$0xff]
    %v1396 = vld [vmem:[%s4 + $0x70] sm:$0xff]
    %v1397 = vld [vmem:[%s4 + $0x78] sm:$0xff]
    %v1398 = vld [vmem:[%s6] sm:$0x3]
    %v1400 = vlaneseq
    %v1401 = vshrl.u32 %v1400, 7
    %v1402 = vsub.s32 0, %v1401
    %v1403 = vrot.slane %v1398, %v1402
    %v1404 = vlaneseq
    %v1405 = vshrl.u32 %v1404, 7
    %v1406 = vsub.s32 1, %v1405
    %v1407 = vrot.slane %v1398, %v1406
    %v1411 = vsel %vm186, %v1378, 0
    %v1414 = vsel %vm186, %v1381, 0
    %1416 = vmatprep.subr.mxu0 0.0
    %1417 = vmatpush1.msra.mxu0 0.0
    %1418 = vmatprep.subr.mxu0 0.0
    %1419 = vmatpush1.msra.mxu0 0.0
    %1420 = vmatprep.subr.mxu0 0.0
    %1421 = vmatpush1.msra.mxu0 0.0
    %1422 = vmatprep.subr.mxu0 0.0
    %1423 = vmatpush1.msra.mxu0 0.0
    %1424 = vmatprep.subr.mxu0 0.0
    %1425 = vmatpush1.msra.mxu0 0.0
    %1426 = vmatprep.subr.mxu0 0.0
    %1427 = vmatpush1.msra.mxu0 0.0
    %1428 = vmatprep.subr.mxu0 0.0
    %1429 = vmatpush1.msra.mxu0 0.0
    %1430 = vmatprep.subr.mxu0 0.0
    %1431 = vmatpush1.msra.mxu0 0.0
    %1432 = vmatprep.subr.mxu0 %v1397
    %1433 = vmatpush1.msra.mxu0 %v1396
    %1434 = vmatprep.subr.mxu0 %v1395
    %1435 = vmatpush1.msra.mxu0 %v1394
    %1436 = vmatprep.subr.mxu0 %v1393
    %1437 = vmatpush1.msra.mxu0 %v1392
    %1438 = vmatprep.subr.mxu0 %v1391
    %1439 = vmatpush1.msra.mxu0 %v1390
    %1440 = vmatprep.subr.mxu0 %v1389
    %1441 = vmatpush1.msra.mxu0 %v1388
    %1442 = vmatprep.subr.mxu0 %v1387
    %1443 = vmatpush1.msra.mxu0 %v1386
    %1444 = vmatprep.subr.mxu0 %v1385
    %1445 = vmatpush1.msra.mxu0 %v1384
    %1446 = vmatprep.subr.mxu0 %v1383
    %1447 = vmatpush1.msra.mxu0 %v1382
    %1448 = vmatprep.subr.mxu0 0.0
    %1449 = vmatpush2.msra.mxu0 0.0
    %1450 = vmatprep.subr.mxu0 0.0
    %1451 = vmatpush2.msra.mxu0 0.0
    %1452 = vmatprep.subr.mxu0 0.0
    %1453 = vmatpush2.msra.mxu0 0.0
    %1454 = vmatprep.subr.mxu0 0.0
    %1455 = vmatpush2.msra.mxu0 0.0
    %1456 = vmatprep.subr.mxu0 0.0
    %1457 = vmatpush2.msra.mxu0 0.0
    %1458 = vmatprep.subr.mxu0 0.0
    %1459 = vmatpush2.msra.mxu0 0.0
    %1460 = vmatprep.subr.mxu0 0.0
    %1461 = vmatpush2.msra.mxu0 0.0
    %1462 = vmatprep.subr.mxu0 0.0
    %1463 = vmatpush2.msra.mxu0 0.0
    %1464 = vmatprep.subr.mxu0 0.0
    %1465 = vmatpush2.msra.mxu0 0.0
    %1466 = vmatprep.subr.mxu0 0.0
    %1467 = vmatpush2.msra.mxu0 0.0
    %1468 = vmatprep.subr.mxu0 0.0
    %1469 = vmatpush2.msra.mxu0 0.0
    %1470 = vmatprep.subr.mxu0 0.0
    %1471 = vmatpush2.msra.mxu0 0.0
    %1472 = vmatprep.subr.mxu0 0.0
    %1473 = vmatpush2.msra.mxu0 0.0
    %1474 = vmatprep.subr.mxu0 0.0
    %1475 = vmatpush2.msra.mxu0 0.0
    %1476 = vmatprep.subr.mxu0 0.0
    %1477 = vmatpush2.msra.mxu0 0.0
    %1478 = vmatprep.subr.mxu0 0.0
    %1479 = vmatpush2.msra.mxu0 0.0
    %1480 = vmatprep.mubr.f32.mxu0 0.0
    %1481 = vmatmul.mubr.f32.gmra.mxu0 %v1411
    %v1482 = vpop.f32.mrf.mxu0
    %v1483 = vadd.f32 %v1403, %v1482
    %v1484 = vpop.f32.mrf.mxu0
    %v1485 = vadd.f32 %v1407, %v1484
    %1486 = vmatprep.mubr.f32.mxu0 0.0
    %1487 = vmatmul.mubr.f32.gmra.mxu0 %v1414
    %v1488 = vpop.f32.mrf.mxu0
    %v1489 = vadd.f32 %v1403, %v1488
    %v1490 = vpop.f32.mrf.mxu0
    %v1491 = vadd.f32 %v1407, %v1490
    %1492 = vdwg.mxu0
    %1493 = vst [vmem:[#allocation2] sm:$0xff] %v1483
    %1494 = vst [vmem:[#allocation2 + $0x8] sm:$0xff] %v1485
    %1495 = vst [vmem:[#allocation2 + $0x10] sm:$0xff] %v1489
    %1496 = vst [vmem:[#allocation2 + $0x18] sm:$0xff] %v1491
    %v1497 = vld [vmem:[%s5] sm:$0xff]
    %v1498 = vld [vmem:[%s5 + $0x8] sm:$0xff]
    %v1499 = vld [vmem:[%s5 + $0x10] sm:$0xff]
    %v1500 = vld [vmem:[%s5 + $0x18] sm:$0xff]
    %v1501 = vld [vmem:[%s5 + $0x20] sm:$0xff]
    %v1502 = vld [vmem:[%s5 + $0x28] sm:$0xff]
    %v1503 = vld [vmem:[%s5 + $0x30] sm:$0xff]
    %v1504 = vld [vmem:[%s5 + $0x38] sm:$0xff]
    %v1505 = vld [vmem:[%s5 + $0x40] sm:$0xff]
    %v1506 = vld [vmem:[%s5 + $0x48] sm:$0xff]
    %v1507 = vld [vmem:[%s5 + $0x50] sm:$0xff]
    %v1508 = vld [vmem:[%s5 + $0x58] sm:$0xff]
    %v1509 = vld [vmem:[%s5 + $0x60] sm:$0xff]
    %v1510 = vld [vmem:[%s5 + $0x68] sm:$0xff]
    %v1511 = vld [vmem:[%s5 + $0x70] sm:$0xff]
    %v1512 = vld [vmem:[%s5 + $0x78] sm:$0xff]
    %v1513 = vld [vmem:[#allocation2] sm:$0x3]
    %v1514 = vld [vmem:[#allocation2 + $0x18] sm:$0xc0]
    %v1516 = vrot.slane %v1514, 6
    %1518 = vmatprep.subr.mxu0 0.0
    %1519 = vmatpush1.msra.mxu0 0.0
    %1520 = vmatprep.subr.mxu0 0.0
    %1521 = vmatpush1.msra.mxu0 0.0
    %1522 = vmatprep.subr.mxu0 0.0
    %1523 = vmatpush1.msra.mxu0 0.0
    %1524 = vmatprep.subr.mxu0 0.0
    %1525 = vmatpush1.msra.mxu0 0.0
    %1526 = vmatprep.subr.mxu0 0.0
    %1527 = vmatpush1.msra.mxu0 0.0
    %1528 = vmatprep.subr.mxu0 0.0
    %1529 = vmatpush1.msra.mxu0 0.0
    %1530 = vmatprep.subr.mxu0 0.0
    %1531 = vmatpush1.msra.mxu0 0.0
    %1532 = vmatprep.subr.mxu0 0.0
    %1533 = vmatpush1.msra.mxu0 0.0
    %1534 = vmatprep.subr.mxu0 %v1512
    %1535 = vmatpush1.msra.mxu0 %v1511
    %1536 = vmatprep.subr.mxu0 %v1510
    %1537 = vmatpush1.msra.mxu0 %v1509
    %1538 = vmatprep.subr.mxu0 %v1508
    %1539 = vmatpush1.msra.mxu0 %v1507
    %1540 = vmatprep.subr.mxu0 %v1506
    %1541 = vmatpush1.msra.mxu0 %v1505
    %1542 = vmatprep.subr.mxu0 %v1504
    %1543 = vmatpush1.msra.mxu0 %v1503
    %1544 = vmatprep.subr.mxu0 %v1502
    %1545 = vmatpush1.msra.mxu0 %v1501
    %1546 = vmatprep.subr.mxu0 %v1500
    %1547 = vmatpush1.msra.mxu0 %v1499
    %1548 = vmatprep.subr.mxu0 %v1498
    %1549 = vmatpush1.msra.mxu0 %v1497
    %1550 = vmatprep.subr.mxu0 0.0
    %1551 = vmatpush2.msra.mxu0 0.0
    %1552 = vmatprep.subr.mxu0 0.0
    %1553 = vmatpush2.msra.mxu0 0.0
    %1554 = vmatprep.subr.mxu0 0.0
    %1555 = vmatpush2.msra.mxu0 0.0
    %1556 = vmatprep.subr.mxu0 0.0
    %1557 = vmatpush2.msra.mxu0 0.0
    %1558 = vmatprep.subr.mxu0 0.0
    %1559 = vmatpush2.msra.mxu0 0.0
    %1560 = vmatprep.subr.mxu0 0.0
    %1561 = vmatpush2.msra.mxu0 0.0
    %1562 = vmatprep.subr.mxu0 0.0
    %1563 = vmatpush2.msra.mxu0 0.0
    %1564 = vmatprep.subr.mxu0 0.0
    %1565 = vmatpush2.msra.mxu0 0.0
    %1566 = vmatprep.subr.mxu0 0.0
    %1567 = vmatpush2.msra.mxu0 0.0
    %1568 = vmatprep.subr.mxu0 0.0
    %1569 = vmatpush2.msra.mxu0 0.0
    %1570 = vmatprep.subr.mxu0 0.0
    %1571 = vmatpush2.msra.mxu0 0.0
    %1572 = vmatprep.subr.mxu0 0.0
    %1573 = vmatpush2.msra.mxu0 0.0
    %1574 = vmatprep.subr.mxu0 0.0
    %1575 = vmatpush2.msra.mxu0 0.0
    %1576 = vmatprep.subr.mxu0 0.0
    %1577 = vmatpush2.msra.mxu0 0.0
    %1578 = vmatprep.subr.mxu0 0.0
    %1579 = vmatpush2.msra.mxu0 0.0
    %1580 = vmatprep.subr.mxu0 0.0
    %1581 = vmatpush2.msra.mxu0 0.0
    %1582 = vmatprep.mubr.f32.mxu0 0.0
    %1583 = vmatmul.mubr.f32.gmra.mxu0 %v188
    %v1584 = vpop.f32.mrf.mxu0
    %v1585 = vadd.f32 0.0, %v1584
    %v1586 = vpop.f32.mrf.mxu0
    %v1587 = vadd.f32 0.0, %v1586
    %1588 = vdwg.mxu0
    %v1589 = vadd.f32 %v1513, %v1585
    %v1590 = vadd.f32 %v1516, %v1587
    %v1591 = vmul.f32 %v1589, %v53
    %v1592 = vmul.f32 %v1590, %v54
    %v1593 = vtanh.pop %v1591
    %v1594 = vtanh.pop %v1592
    %v1595 = vmul.f32 %v1593, 0.5
    %v1596 = vmul.f32 %v1594, 0.5
    %v1597 = vadd.f32 %v1595, 0.5
    %v1598 = vadd.f32 %v1596, 0.5
    %v1599 = vsel %vm51, %v1593, %v1597
    %v1600 = vsel %vm52, %v1594, %v1598
    %v1601 = vmul.f32 %v1599, 0.0
    %1603 = vrot.lane.b32.xlu0 %v1599, 64
    %v1604 = vpop.permute.xlu0 %1603
    %v1606 = vmul.f32 %v1599, %v1604
    %1608 = vrot.lane.b32.xlu0 %v1606, 32
    %v1609 = vpop.permute.xlu0 %1608
    %v1611 = vadd.f32 %v1601, %v1609
    %v1612 = vmul.f32 %v1600, 0.0
    %1614 = vrot.lane.b32.xlu0 %v1600, 64
    %v1615 = vpop.permute.xlu0 %1614
    %v1617 = vmul.f32 %v1600, %v1615
    %1619 = vrot.lane.b32.xlu0 %v1617, 32
    %v1620 = vpop.permute.xlu0 %1619
    %v1622 = vadd.f32 %v1612, %v1620
    %v1623 = vtanh.pop %v1611
    %1625 = vrot.lane.b32.xlu0 %v1623, 64
    %v1626 = vpop.permute.xlu0 %1625
    %v1628 = vmul.f32 %v1599, %v1626
    %v1629 = vtanh.pop %v1622
    %1631 = vrot.lane.b32.xlu0 %v1629, 64
    %v1632 = vpop.permute.xlu0 %1631
    %v1634 = vmul.f32 %v1600, %v1632
    %1636 = vrot.lane.b32.xlu0 %v1628, 32
    %v1637 = vpop.permute.xlu0 %1636
    %1640 = vrot.lane.b32.xlu0 %v1634, 64
    %v1641 = vpop.permute.xlu0 %1640
    %v1643 = vsel %vm77, %v1637, %v1641
    %v1644 = vld [vmem:[#allocation2] sm:$0xc]
    %v1645 = vld [vmem:[#allocation2 + $0x18] sm:$0x30]
    %v1647 = vrot.slane %v1645, 2
    %v1650 = vsel %vm186, %v1643, 0
    %1652 = vmatprep.subr.mxu0 0.0
    %1653 = vmatpush1.msra.mxu0 0.0
    %1654 = vmatprep.subr.mxu0 0.0
    %1655 = vmatpush1.msra.mxu0 0.0
    %1656 = vmatprep.subr.mxu0 0.0
    %1657 = vmatpush1.msra.mxu0 0.0
    %1658 = vmatprep.subr.mxu0 0.0
    %1659 = vmatpush1.msra.mxu0 0.0
    %1660 = vmatprep.subr.mxu0 0.0
    %1661 = vmatpush1.msra.mxu0 0.0
    %1662 = vmatprep.subr.mxu0 0.0
    %1663 = vmatpush1.msra.mxu0 0.0
    %1664 = vmatprep.subr.mxu0 0.0
    %1665 = vmatpush1.msra.mxu0 0.0
    %1666 = vmatprep.subr.mxu0 0.0
    %1667 = vmatpush1.msra.mxu0 0.0
    %1668 = vmatprep.subr.mxu0 %v1512
    %1669 = vmatpush1.msra.mxu0 %v1511
    %1670 = vmatprep.subr.mxu0 %v1510
    %1671 = vmatpush1.msra.mxu0 %v1509
    %1672 = vmatprep.subr.mxu0 %v1508
    %1673 = vmatpush1.msra.mxu0 %v1507
    %1674 = vmatprep.subr.mxu0 %v1506
    %1675 = vmatpush1.msra.mxu0 %v1505
    %1676 = vmatprep.subr.mxu0 %v1504
    %1677 = vmatpush1.msra.mxu0 %v1503
    %1678 = vmatprep.subr.mxu0 %v1502
    %1679 = vmatpush1.msra.mxu0 %v1501
    %1680 = vmatprep.subr.mxu0 %v1500
    %1681 = vmatpush1.msra.mxu0 %v1499
    %1682 = vmatprep.subr.mxu0 %v1498
    %1683 = vmatpush1.msra.mxu0 %v1497
    %1684 = vmatprep.subr.mxu0 0.0
    %1685 = vmatpush2.msra.mxu0 0.0
    %1686 = vmatprep.subr.mxu0 0.0
    %1687 = vmatpush2.msra.mxu0 0.0
    %1688 = vmatprep.subr.mxu0 0.0
    %1689 = vmatpush2.msra.mxu0 0.0
    %1690 = vmatprep.subr.mxu0 0.0
    %1691 = vmatpush2.msra.mxu0 0.0
    %1692 = vmatprep.subr.mxu0 0.0
    %1693 = vmatpush2.msra.mxu0 0.0
    %1694 = vmatprep.subr.mxu0 0.0
    %1695 = vmatpush2.msra.mxu0 0.0
    %1696 = vmatprep.subr.mxu0 0.0
    %1697 = vmatpush2.msra.mxu0 0.0
    %1698 = vmatprep.subr.mxu0 0.0
    %1699 = vmatpush2.msra.mxu0 0.0
    %1700 = vmatprep.subr.mxu0 0.0
    %1701 = vmatpush2.msra.mxu0 0.0
    %1702 = vmatprep.subr.mxu0 0.0
    %1703 = vmatpush2.msra.mxu0 0.0
    %1704 = vmatprep.subr.mxu0 0.0
    %1705 = vmatpush2.msra.mxu0 0.0
    %1706 = vmatprep.subr.mxu0 0.0
    %1707 = vmatpush2.msra.mxu0 0.0
    %1708 = vmatprep.subr.mxu0 0.0
    %1709 = vmatpush2.msra.mxu0 0.0
    %1710 = vmatprep.subr.mxu0 0.0
    %1711 = vmatpush2.msra.mxu0 0.0
    %1712 = vmatprep.subr.mxu0 0.0
    %1713 = vmatpush2.msra.mxu0 0.0
    %1714 = vmatprep.subr.mxu0 0.0
    %1715 = vmatpush2.msra.mxu0 0.0
    %1716 = vmatprep.mubr.f32.mxu0 0.0
    %1717 = vmatmul.mubr.f32.gmra.mxu0 %v1650
    %v1718 = vpop.f32.mrf.mxu0
    %v1719 = vadd.f32 0.0, %v1718
    %v1720 = vpop.f32.mrf.mxu0
    %v1721 = vadd.f32 0.0, %v1720
    %1722 = vdwg.mxu0
    %v1725 = vrot.slane %v1719, 6
    %v1726 = vrot.slane %v1721, 6
    %v1729 = vadd.f32 %v1644, %v1725
    %v1730 = vadd.f32 %v1647, %v1726
    %v1731 = vmul.f32 %v1729, %v53
    %v1732 = vmul.f32 %v1730, %v54
    %v1733 = vtanh.pop %v1731
    %v1734 = vtanh.pop %v1732
    %v1735 = vmul.f32 %v1733, 0.5
    %v1736 = vmul.f32 %v1734, 0.5
    %v1737 = vadd.f32 %v1735, 0.5
    %v1738 = vadd.f32 %v1736, 0.5
    %v1739 = vsel %vm51, %v1733, %v1737
    %v1740 = vsel %vm52, %v1734, %v1738
    %v1742 = vrot.slane %v1611, 6
    %v1744 = vmul.f32 %v1739, %v1742
    %1746 = vrot.lane.b32.xlu0 %v1739, 64
    %v1747 = vpop.permute.xlu0 %1746
    %v1749 = vmul.f32 %v1739, %v1747
    %1751 = vrot.lane.b32.xlu0 %v1749, 32
    %v1752 = vpop.permute.xlu0 %1751
    %v1754 = vadd.f32 %v1744, %v1752
    %v1756 = vrot.slane %v1622, 6
    %v1758 = vmul.f32 %v1740, %v1756
    %1760 = vrot.lane.b32.xlu0 %v1740, 64
    %v1761 = vpop.permute.xlu0 %1760
    %v1763 = vmul.f32 %v1740, %v1761
    %1765 = vrot.lane.b32.xlu0 %v1763, 32
    %v1766 = vpop.permute.xlu0 %1765
    %v1768 = vadd.f32 %v1758, %v1766
    %v1769 = vtanh.pop %v1754
    %1771 = vrot.lane.b32.xlu0 %v1769, 64
    %v1772 = vpop.permute.xlu0 %1771
    %v1774 = vmul.f32 %v1739, %v1772
    %v1775 = vtanh.pop %v1768
    %1777 = vrot.lane.b32.xlu0 %v1775, 64
    %v1778 = vpop.permute.xlu0 %1777
    %v1780 = vmul.f32 %v1740, %v1778
    %1782 = vrot.lane.b32.xlu0 %v1774, 32
    %v1783 = vpop.permute.xlu0 %1782
    %1786 = vrot.lane.b32.xlu0 %v1780, 64
    %v1787 = vpop.permute.xlu0 %1786
    %v1789 = vsel %vm77, %v1783, %v1787
    %v1790 = vld [vmem:[#allocation2] sm:$0x30]
    %v1791 = vld [vmem:[#allocation2 + $0x18] sm:$0xc]
    %v1793 = vrot.slane %v1791, 6
    %v1796 = vrot.slane %v1789, 2
    %v1797 = vsel %vm186, %v1796, 0
    %1799 = vmatprep.subr.mxu0 0.0
    %1800 = vmatpush1.msra.mxu0 0.0
    %1801 = vmatprep.subr.mxu0 0.0
    %1802 = vmatpush1.msra.mxu0 0.0
    %1803 = vmatprep.subr.mxu0 0.0
    %1804 = vmatpush1.msra.mxu0 0.0
    %1805 = vmatprep.subr.mxu0 0.0
    %1806 = vmatpush1.msra.mxu0 0.0
    %1807 = vmatprep.subr.mxu0 0.0
    %1808 = vmatpush1.msra.mxu0 0.0
    %1809 = vmatprep.subr.mxu0 0.0
    %1810 = vmatpush1.msra.mxu0 0.0
    %1811 = vmatprep.subr.mxu0 0.0
    %1812 = vmatpush1.msra.mxu0 0.0
    %1813 = vmatprep.subr.mxu0 0.0
    %1814 = vmatpush1.msra.mxu0 0.0
    %1815 = vmatprep.subr.mxu0 %v1512
    %1816 = vmatpush1.msra.mxu0 %v1511
    %1817 = vmatprep.subr.mxu0 %v1510
    %1818 = vmatpush1.msra.mxu0 %v1509
    %1819 = vmatprep.subr.mxu0 %v1508
    %1820 = vmatpush1.msra.mxu0 %v1507
    %1821 = vmatprep.subr.mxu0 %v1506
    %1822 = vmatpush1.msra.mxu0 %v1505
    %1823 = vmatprep.subr.mxu0 %v1504
    %1824 = vmatpush1.msra.mxu0 %v1503
    %1825 = vmatprep.subr.mxu0 %v1502
    %1826 = vmatpush1.msra.mxu0 %v1501
    %1827 = vmatprep.subr.mxu0 %v1500
    %1828 = vmatpush1.msra.mxu0 %v1499
    %1829 = vmatprep.subr.mxu0 %v1498
    %1830 = vmatpush1.msra.mxu0 %v1497
    %1831 = vmatprep.subr.mxu0 0.0
    %1832 = vmatpush2.msra.mxu0 0.0
    %1833 = vmatprep.subr.mxu0 0.0
    %1834 = vmatpush2.msra.mxu0 0.0
    %1835 = vmatprep.subr.mxu0 0.0
    %1836 = vmatpush2.msra.mxu0 0.0
    %1837 = vmatprep.subr.mxu0 0.0
    %1838 = vmatpush2.msra.mxu0 0.0
    %1839 = vmatprep.subr.mxu0 0.0
    %1840 = vmatpush2.msra.mxu0 0.0
    %1841 = vmatprep.subr.mxu0 0.0
    %1842 = vmatpush2.msra.mxu0 0.0
    %1843 = vmatprep.subr.mxu0 0.0
    %1844 = vmatpush2.msra.mxu0 0.0
    %1845 = vmatprep.subr.mxu0 0.0
    %1846 = vmatpush2.msra.mxu0 0.0
    %1847 = vmatprep.subr.mxu0 0.0
    %1848 = vmatpush2.msra.mxu0 0.0
    %1849 = vmatprep.subr.mxu0 0.0
    %1850 = vmatpush2.msra.mxu0 0.0
    %1851 = vmatprep.subr.mxu0 0.0
    %1852 = vmatpush2.msra.mxu0 0.0
    %1853 = vmatprep.subr.mxu0 0.0
    %1854 = vmatpush2.msra.mxu0 0.0
    %1855 = vmatprep.subr.mxu0 0.0
    %1856 = vmatpush2.msra.mxu0 0.0
    %1857 = vmatprep.subr.mxu0 0.0
    %1858 = vmatpush2.msra.mxu0 0.0
    %1859 = vmatprep.subr.mxu0 0.0
    %1860 = vmatpush2.msra.mxu0 0.0
    %1861 = vmatprep.subr.mxu0 0.0
    %1862 = vmatpush2.msra.mxu0 0.0
    %1863 = vmatprep.mubr.f32.mxu0 0.0
    %1864 = vmatmul.mubr.f32.gmra.mxu0 %v1797
    %v1865 = vpop.f32.mrf.mxu0
    %v1866 = vadd.f32 0.0, %v1865
    %v1867 = vpop.f32.mrf.mxu0
    %v1868 = vadd.f32 0.0, %v1867
    %1869 = vdwg.mxu0
    %v1872 = vrot.slane %v1866, 4
    %v1873 = vrot.slane %v1868, 4
    %v1876 = vadd.f32 %v1790, %v1872
    %v1877 = vadd.f32 %v1793, %v1873
    %v1878 = vmul.f32 %v1876, %v53
    %v1879 = vmul.f32 %v1877, %v54
    %v1880 = vtanh.pop %v1878
    %v1881 = vtanh.pop %v1879
    %v1882 = vmul.f32 %v1880, 0.5
    %v1883 = vmul.f32 %v1881, 0.5
    %v1884 = vadd.f32 %v1882, 0.5
    %v1885 = vadd.f32 %v1883, 0.5
    %v1886 = vsel %vm51, %v1880, %v1884
    %v1887 = vsel %vm52, %v1881, %v1885
    %v1889 = vrot.slane %v1754, 6
    %v1891 = vmul.f32 %v1886, %v1889
    %1893 = vrot.lane.b32.xlu0 %v1886, 64
    %v1894 = vpop.permute.xlu0 %1893
    %v1896 = vmul.f32 %v1886, %v1894
    %1898 = vrot.lane.b32.xlu0 %v1896, 32
    %v1899 = vpop.permute.xlu0 %1898
    %v1901 = vadd.f32 %v1891, %v1899
    %v1903 = vrot.slane %v1768, 6
    %v1905 = vmul.f32 %v1887, %v1903
    %1907 = vrot.lane.b32.xlu0 %v1887, 64
    %v1908 = vpop.permute.xlu0 %1907
    %v1910 = vmul.f32 %v1887, %v1908
    %1912 = vrot.lane.b32.xlu0 %v1910, 32
    %v1913 = vpop.permute.xlu0 %1912
    %v1915 = vadd.f32 %v1905, %v1913
    %v1916 = vtanh.pop %v1901
    %1918 = vrot.lane.b32.xlu0 %v1916, 64
    %v1919 = vpop.permute.xlu0 %1918
    %v1921 = vmul.f32 %v1886, %v1919
    %v1922 = vtanh.pop %v1915
    %1924 = vrot.lane.b32.xlu0 %v1922, 64
    %v1925 = vpop.permute.xlu0 %1924
    %v1927 = vmul.f32 %v1887, %v1925
    %1929 = vrot.lane.b32.xlu0 %v1921, 32
    %v1930 = vpop.permute.xlu0 %1929
    %1933 = vrot.lane.b32.xlu0 %v1927, 64
    %v1934 = vpop.permute.xlu0 %1933
    %v1936 = vsel %vm77, %v1930, %v1934
    %v1937 = vld [vmem:[#allocation2] sm:$0xc0]
    %v1938 = vld [vmem:[#allocation2 + $0x18] sm:$0x3]
    %v1940 = vrot.slane %v1938, 2
    %v1943 = vrot.slane %v1936, 4
    %v1944 = vsel %vm186, %v1943, 0
    %1946 = vmatprep.subr.mxu0 0.0
    %1947 = vmatpush1.msra.mxu0 0.0
    %1948 = vmatprep.subr.mxu0 0.0
    %1949 = vmatpush1.msra.mxu0 0.0
    %1950 = vmatprep.subr.mxu0 0.0
    %1951 = vmatpush1.msra.mxu0 0.0
    %1952 = vmatprep.subr.mxu0 0.0
    %1953 = vmatpush1.msra.mxu0 0.0
    %1954 = vmatprep.subr.mxu0 0.0
    %1955 = vmatpush1.msra.mxu0 0.0
    %1956 = vmatprep.subr.mxu0 0.0
    %1957 = vmatpush1.msra.mxu0 0.0
    %1958 = vmatprep.subr.mxu0 0.0
    %1959 = vmatpush1.msra.mxu0 0.0
    %1960 = vmatprep.subr.mxu0 0.0
    %1961 = vmatpush1.msra.mxu0 0.0
    %1962 = vmatprep.subr.mxu0 %v1512
    %1963 = vmatpush1.msra.mxu0 %v1511
    %1964 = vmatprep.subr.mxu0 %v1510
    %1965 = vmatpush1.msra.mxu0 %v1509
    %1966 = vmatprep.subr.mxu0 %v1508
    %1967 = vmatpush1.msra.mxu0 %v1507
    %1968 = vmatprep.subr.mxu0 %v1506
    %1969 = vmatpush1.msra.mxu0 %v1505
    %1970 = vmatprep.subr.mxu0 %v1504
    %1971 = vmatpush1.msra.mxu0 %v1503
    %1972 = vmatprep.subr.mxu0 %v1502
    %1973 = vmatpush1.msra.mxu0 %v1501
    %1974 = vmatprep.subr.mxu0 %v1500
    %1975 = vmatpush1.msra.mxu0 %v1499
    %1976 = vmatprep.subr.mxu0 %v1498
    %1977 = vmatpush1.msra.mxu0 %v1497
    %1978 = vmatprep.subr.mxu0 0.0
    %1979 = vmatpush2.msra.mxu0 0.0
    %1980 = vmatprep.subr.mxu0 0.0
    %1981 = vmatpush2.msra.mxu0 0.0
    %1982 = vmatprep.subr.mxu0 0.0
    %1983 = vmatpush2.msra.mxu0 0.0
    %1984 = vmatprep.subr.mxu0 0.0
    %1985 = vmatpush2.msra.mxu0 0.0
    %1986 = vmatprep.subr.mxu0 0.0
    %1987 = vmatpush2.msra.mxu0 0.0
    %1988 = vmatprep.subr.mxu0 0.0
    %1989 = vmatpush2.msra.mxu0 0.0
    %1990 = vmatprep.subr.mxu0 0.0
    %1991 = vmatpush2.msra.mxu0 0.0
    %1992 = vmatprep.subr.mxu0 0.0
    %1993 = vmatpush2.msra.mxu0 0.0
    %1994 = vmatprep.subr.mxu0 0.0
    %1995 = vmatpush2.msra.mxu0 0.0
    %1996 = vmatprep.subr.mxu0 0.0
    %1997 = vmatpush2.msra.mxu0 0.0
    %1998 = vmatprep.subr.mxu0 0.0
    %1999 = vmatpush2.msra.mxu0 0.0
    %2000 = vmatprep.subr.mxu0 0.0
    %2001 = vmatpush2.msra.mxu0 0.0
    %2002 = vmatprep.subr.mxu0 0.0
    %2003 = vmatpush2.msra.mxu0 0.0
    %2004 = vmatprep.subr.mxu0 0.0
    %2005 = vmatpush2.msra.mxu0 0.0
    %2006 = vmatprep.subr.mxu0 0.0
    %2007 = vmatpush2.msra.mxu0 0.0
    %2008 = vmatprep.subr.mxu0 0.0
    %2009 = vmatpush2.msra.mxu0 0.0
    %2010 = vmatprep.mubr.f32.mxu0 0.0
    %2011 = vmatmul.mubr.f32.gmra.mxu0 %v1944
    %v2012 = vpop.f32.mrf.mxu0
    %v2013 = vadd.f32 0.0, %v2012
    %v2014 = vpop.f32.mrf.mxu0
    %v2015 = vadd.f32 0.0, %v2014
    %2016 = vdwg.mxu0
    %v2019 = vrot.slane %v2013, 2
    %v2020 = vrot.slane %v2015, 2
    %v2023 = vadd.f32 %v1937, %v2019
    %v2024 = vadd.f32 %v1940, %v2020
    %v2025 = vmul.f32 %v2023, %v53
    %v2026 = vmul.f32 %v2024, %v54
    %v2027 = vtanh.pop %v2025
    %v2028 = vtanh.pop %v2026
    %v2029 = vmul.f32 %v2027, 0.5
    %v2030 = vmul.f32 %v2028, 0.5
    %v2031 = vadd.f32 %v2029, 0.5
    %v2032 = vadd.f32 %v2030, 0.5
    %v2033 = vsel %vm51, %v2027, %v2031
    %v2034 = vsel %vm52, %v2028, %v2032
    %v2036 = vrot.slane %v1901, 6
    %v2038 = vmul.f32 %v2033, %v2036
    %2040 = vrot.lane.b32.xlu0 %v2033, 64
    %v2041 = vpop.permute.xlu0 %2040
    %v2043 = vmul.f32 %v2033, %v2041
    %2045 = vrot.lane.b32.xlu0 %v2043, 32
    %v2046 = vpop.permute.xlu0 %2045
    %v2048 = vadd.f32 %v2038, %v2046
    %v2050 = vrot.slane %v1915, 6
    %v2052 = vmul.f32 %v2034, %v2050
    %2054 = vrot.lane.b32.xlu0 %v2034, 64
    %v2055 = vpop.permute.xlu0 %2054
    %v2057 = vmul.f32 %v2034, %v2055
    %2059 = vrot.lane.b32.xlu0 %v2057, 32
    %v2060 = vpop.permute.xlu0 %2059
    %v2062 = vadd.f32 %v2052, %v2060
    %v2063 = vtanh.pop %v2048
    %2065 = vrot.lane.b32.xlu0 %v2063, 64
    %v2066 = vpop.permute.xlu0 %2065
    %v2068 = vmul.f32 %v2033, %v2066
    %v2069 = vtanh.pop %v2062
    %2071 = vrot.lane.b32.xlu0 %v2069, 64
    %v2072 = vpop.permute.xlu0 %2071
    %v2074 = vmul.f32 %v2034, %v2072
    %2076 = vrot.lane.b32.xlu0 %v2068, 32
    %v2077 = vpop.permute.xlu0 %2076
    %2080 = vrot.lane.b32.xlu0 %v2074, 64
    %v2081 = vpop.permute.xlu0 %2080
    %v2083 = vsel %vm77, %v2077, %v2081
    %v2084 = vld [vmem:[#allocation2 + $0x10] sm:$0x3]
    %v2085 = vld [vmem:[#allocation2 + $0x8] sm:$0xc0]
    %v2087 = vrot.slane %v2085, 6
    %v2090 = vrot.slane %v2083, 6
    %v2091 = vsel %vm186, %v2090, 0
    %2093 = vmatprep.subr.mxu0 0.0
    %2094 = vmatpush1.msra.mxu0 0.0
    %2095 = vmatprep.subr.mxu0 0.0
    %2096 = vmatpush1.msra.mxu0 0.0
    %2097 = vmatprep.subr.mxu0 0.0
    %2098 = vmatpush1.msra.mxu0 0.0
    %2099 = vmatprep.subr.mxu0 0.0
    %2100 = vmatpush1.msra.mxu0 0.0
    %2101 = vmatprep.subr.mxu0 0.0
    %2102 = vmatpush1.msra.mxu0 0.0
    %2103 = vmatprep.subr.mxu0 0.0
    %2104 = vmatpush1.msra.mxu0 0.0
    %2105 = vmatprep.subr.mxu0 0.0
    %2106 = vmatpush1.msra.mxu0 0.0
    %2107 = vmatprep.subr.mxu0 0.0
    %2108 = vmatpush1.msra.mxu0 0.0
    %2109 = vmatprep.subr.mxu0 %v1512
    %2110 = vmatpush1.msra.mxu0 %v1511
    %2111 = vmatprep.subr.mxu0 %v1510
    %2112 = vmatpush1.msra.mxu0 %v1509
    %2113 = vmatprep.subr.mxu0 %v1508
    %2114 = vmatpush1.msra.mxu0 %v1507
    %2115 = vmatprep.subr.mxu0 %v1506
    %2116 = vmatpush1.msra.mxu0 %v1505
    %2117 = vmatprep.subr.mxu0 %v1504
    %2118 = vmatpush1.msra.mxu0 %v1503
    %2119 = vmatprep.subr.mxu0 %v1502
    %2120 = vmatpush1.msra.mxu0 %v1501
    %2121 = vmatprep.subr.mxu0 %v1500
    %2122 = vmatpush1.msra.mxu0 %v1499
    %2123 = vmatprep.subr.mxu0 %v1498
    %2124 = vmatpush1.msra.mxu0 %v1497
    %2125 = vmatprep.subr.mxu0 0.0
    %2126 = vmatpush2.msra.mxu0 0.0
    %2127 = vmatprep.subr.mxu0 0.0
    %2128 = vmatpush2.msra.mxu0 0.0
    %2129 = vmatprep.subr.mxu0 0.0
    %2130 = vmatpush2.msra.mxu0 0.0
    %2131 = vmatprep.subr.mxu0 0.0
    %2132 = vmatpush2.msra.mxu0 0.0
    %2133 = vmatprep.subr.mxu0 0.0
    %2134 = vmatpush2.msra.mxu0 0.0
    %2135 = vmatprep.subr.mxu0 0.0
    %2136 = vmatpush2.msra.mxu0 0.0
    %2137 = vmatprep.subr.mxu0 0.0
    %2138 = vmatpush2.msra.mxu0 0.0
    %2139 = vmatprep.subr.mxu0 0.0
    %2140 = vmatpush2.msra.mxu0 0.0
    %2141 = vmatprep.subr.mxu0 0.0
    %2142 = vmatpush2.msra.mxu0 0.0
    %2143 = vmatprep.subr.mxu0 0.0
    %2144 = vmatpush2.msra.mxu0 0.0
    %2145 = vmatprep.subr.mxu0 0.0
    %2146 = vmatpush2.msra.mxu0 0.0
    %2147 = vmatprep.subr.mxu0 0.0
    %2148 = vmatpush2.msra.mxu0 0.0
    %2149 = vmatprep.subr.mxu0 0.0
    %2150 = vmatpush2.msra.mxu0 0.0
    %2151 = vmatprep.subr.mxu0 0.0
    %2152 = vmatpush2.msra.mxu0 0.0
    %2153 = vmatprep.subr.mxu0 0.0
    %2154 = vmatpush2.msra.mxu0 0.0
    %2155 = vmatprep.subr.mxu0 0.0
    %2156 = vmatpush2.msra.mxu0 0.0
    %2157 = vmatprep.mubr.f32.mxu0 0.0
    %2158 = vmatmul.mubr.f32.gmra.mxu0 %v2091
    %v2159 = vpop.f32.mrf.mxu0
    %v2160 = vadd.f32 0.0, %v2159
    %v2161 = vpop.f32.mrf.mxu0
    %v2162 = vadd.f32 0.0, %v2161
    %2163 = vdwg.mxu0
    %v2164 = vadd.f32 %v2084, %v2160
    %v2165 = vadd.f32 %v2087, %v2162
    %v2166 = vmul.f32 %v2164, %v53
    %v2167 = vmul.f32 %v2165, %v54
    %v2168 = vtanh.pop %v2166
    %v2169 = vtanh.pop %v2167
    %v2170 = vmul.f32 %v2168, 0.5
    %v2171 = vmul.f32 %v2169, 0.5
    %v2172 = vadd.f32 %v2170, 0.5
    %v2173 = vadd.f32 %v2171, 0.5
    %v2174 = vsel %vm51, %v2168, %v2172
    %v2175 = vsel %vm52, %v2169, %v2173
    %v2177 = vrot.slane %v2048, 6
    %v2179 = vmul.f32 %v2174, %v2177
    %2181 = vrot.lane.b32.xlu0 %v2174, 64
    %v2182 = vpop.permute.xlu0 %2181
    %v2184 = vmul.f32 %v2174, %v2182
    %2186 = vrot.lane.b32.xlu0 %v2184, 32
    %v2187 = vpop.permute.xlu0 %2186
    %v2189 = vadd.f32 %v2179, %v2187
    %v2191 = vrot.slane %v2062, 6
    %v2193 = vmul.f32 %v2175, %v2191
    %2195 = vrot.lane.b32.xlu0 %v2175, 64
    %v2196 = vpop.permute.xlu0 %2195
    %v2198 = vmul.f32 %v2175, %v2196
    %2200 = vrot.lane.b32.xlu0 %v2198, 32
    %v2201 = vpop.permute.xlu0 %2200
    %v2203 = vadd.f32 %v2193, %v2201
    %v2204 = vtanh.pop %v2189
    %2206 = vrot.lane.b32.xlu0 %v2204, 64
    %v2207 = vpop.permute.xlu0 %2206
    %v2209 = vmul.f32 %v2174, %v2207
    %v2210 = vtanh.pop %v2203
    %2212 = vrot.lane.b32.xlu0 %v2210, 64
    %v2213 = vpop.permute.xlu0 %2212
    %v2215 = vmul.f32 %v2175, %v2213
    %2217 = vrot.lane.b32.xlu0 %v2209, 32
    %v2218 = vpop.permute.xlu0 %2217
    %2221 = vrot.lane.b32.xlu0 %v2215, 64
    %v2222 = vpop.permute.xlu0 %2221
    %v2224 = vsel %vm77, %v2218, %v2222
    %v2225 = vld [vmem:[#allocation2 + $0x10] sm:$0xc]
    %v2226 = vld [vmem:[#allocation2 + $0x8] sm:$0x30]
    %v2228 = vrot.slane %v2226, 2
    %v2231 = vsel %vm186, %v2224, 0
    %2233 = vmatprep.subr.mxu0 0.0
    %2234 = vmatpush1.msra.mxu0 0.0
    %2235 = vmatprep.subr.mxu0 0.0
    %2236 = vmatpush1.msra.mxu0 0.0
    %2237 = vmatprep.subr.mxu0 0.0
    %2238 = vmatpush1.msra.mxu0 0.0
    %2239 = vmatprep.subr.mxu0 0.0
    %2240 = vmatpush1.msra.mxu0 0.0
    %2241 = vmatprep.subr.mxu0 0.0
    %2242 = vmatpush1.msra.mxu0 0.0
    %2243 = vmatprep.subr.mxu0 0.0
    %2244 = vmatpush1.msra.mxu0 0.0
    %2245 = vmatprep.subr.mxu0 0.0
    %2246 = vmatpush1.msra.mxu0 0.0
    %2247 = vmatprep.subr.mxu0 0.0
    %2248 = vmatpush1.msra.mxu0 0.0
    %2249 = vmatprep.subr.mxu0 %v1512
    %2250 = vmatpush1.msra.mxu0 %v1511
    %2251 = vmatprep.subr.mxu0 %v1510
    %2252 = vmatpush1.msra.mxu0 %v1509
    %2253 = vmatprep.subr.mxu0 %v1508
    %2254 = vmatpush1.msra.mxu0 %v1507
    %2255 = vmatprep.subr.mxu0 %v1506
    %2256 = vmatpush1.msra.mxu0 %v1505
    %2257 = vmatprep.subr.mxu0 %v1504
    %2258 = vmatpush1.msra.mxu0 %v1503
    %2259 = vmatprep.subr.mxu0 %v1502
    %2260 = vmatpush1.msra.mxu0 %v1501
    %2261 = vmatprep.subr.mxu0 %v1500
    %2262 = vmatpush1.msra.mxu0 %v1499
    %2263 = vmatprep.subr.mxu0 %v1498
    %2264 = vmatpush1.msra.mxu0 %v1497
    %2265 = vmatprep.subr.mxu0 0.0
    %2266 = vmatpush2.msra.mxu0 0.0
    %2267 = vmatprep.subr.mxu0 0.0
    %2268 = vmatpush2.msra.mxu0 0.0
    %2269 = vmatprep.subr.mxu0 0.0
    %2270 = vmatpush2.msra.mxu0 0.0
    %2271 = vmatprep.subr.mxu0 0.0
    %2272 = vmatpush2.msra.mxu0 0.0
    %2273 = vmatprep.subr.mxu0 0.0
    %2274 = vmatpush2.msra.mxu0 0.0
    %2275 = vmatprep.subr.mxu0 0.0
    %2276 = vmatpush2.msra.mxu0 0.0
    %2277 = vmatprep.subr.mxu0 0.0
    %2278 = vmatpush2.msra.mxu0 0.0
    %2279 = vmatprep.subr.mxu0 0.0
    %2280 = vmatpush2.msra.mxu0 0.0
    %2281 = vmatprep.subr.mxu0 0.0
    %2282 = vmatpush2.msra.mxu0 0.0
    %2283 = vmatprep.subr.mxu0 0.0
    %2284 = vmatpush2.msra.mxu0 0.0
    %2285 = vmatprep.subr.mxu0 0.0
    %2286 = vmatpush2.msra.mxu0 0.0
    %2287 = vmatprep.subr.mxu0 0.0
    %2288 = vmatpush2.msra.mxu0 0.0
    %2289 = vmatprep.subr.mxu0 0.0
    %2290 = vmatpush2.msra.mxu0 0.0
    %2291 = vmatprep.subr.mxu0 0.0
    %2292 = vmatpush2.msra.mxu0 0.0
    %2293 = vmatprep.subr.mxu0 0.0
    %2294 = vmatpush2.msra.mxu0 0.0
    %2295 = vmatprep.subr.mxu0 0.0
    %2296 = vmatpush2.msra.mxu0 0.0
    %2297 = vmatprep.mubr.f32.mxu0 0.0
    %2298 = vmatmul.mubr.f32.gmra.mxu0 %v2231
    %v2299 = vpop.f32.mrf.mxu0
    %v2300 = vadd.f32 0.0, %v2299
    %v2301 = vpop.f32.mrf.mxu0
    %v2302 = vadd.f32 0.0, %v2301
    %2303 = vdwg.mxu0
    %v2306 = vrot.slane %v2300, 6
    %v2307 = vrot.slane %v2302, 6
    %v2310 = vadd.f32 %v2225, %v2306
    %v2311 = vadd.f32 %v2228, %v2307
    %v2312 = vmul.f32 %v2310, %v53
    %v2313 = vmul.f32 %v2311, %v54
    %v2314 = vtanh.pop %v2312
    %v2315 = vtanh.pop %v2313
    %v2316 = vmul.f32 %v2314, 0.5
    %v2317 = vmul.f32 %v2315, 0.5
    %v2318 = vadd.f32 %v2316, 0.5
    %v2319 = vadd.f32 %v2317, 0.5
    %v2320 = vsel %vm51, %v2314, %v2318
    %v2321 = vsel %vm52, %v2315, %v2319
    %v2323 = vrot.slane %v2189, 6
    %v2325 = vmul.f32 %v2320, %v2323
    %2327 = vrot.lane.b32.xlu0 %v2320, 64
    %v2328 = vpop.permute.xlu0 %2327
    %v2330 = vmul.f32 %v2320, %v2328
    %2332 = vrot.lane.b32.xlu0 %v2330, 32
    %v2333 = vpop.permute.xlu0 %2332
    %v2335 = vadd.f32 %v2325, %v2333
    %v2337 = vrot.slane %v2203, 6
    %v2339 = vmul.f32 %v2321, %v2337
    %2341 = vrot.lane.b32.xlu0 %v2321, 64
    %v2342 = vpop.permute.xlu0 %2341
    %v2344 = vmul.f32 %v2321, %v2342
    %2346 = vrot.lane.b32.xlu0 %v2344, 32
    %v2347 = vpop.permute.xlu0 %2346
    %v2349 = vadd.f32 %v2339, %v2347
    %v2350 = vtanh.pop %v2335
    %2352 = vrot.lane.b32.xlu0 %v2350, 64
    %v2353 = vpop.permute.xlu0 %2352
    %v2355 = vmul.f32 %v2320, %v2353
    %v2356 = vtanh.pop %v2349
    %2358 = vrot.lane.b32.xlu0 %v2356, 64
    %v2359 = vpop.permute.xlu0 %2358
    %v2361 = vmul.f32 %v2321, %v2359
    %2363 = vrot.lane.b32.xlu0 %v2355, 32
    %v2364 = vpop.permute.xlu0 %2363
    %2367 = vrot.lane.b32.xlu0 %v2361, 64
    %v2368 = vpop.permute.xlu0 %2367
    %v2370 = vsel %vm77, %v2364, %v2368
    %v2371 = vld [vmem:[#allocation2 + $0x10] sm:$0x30]
    %v2372 = vld [vmem:[#allocation2 + $0x8] sm:$0xc]
    %v2374 = vrot.slane %v2372, 6
    %v2377 = vrot.slane %v2370, 2
    %v2378 = vsel %vm186, %v2377, 0
    %2380 = vmatprep.subr.mxu0 0.0
    %2381 = vmatpush1.msra.mxu0 0.0
    %2382 = vmatprep.subr.mxu0 0.0
    %2383 = vmatpush1.msra.mxu0 0.0
    %2384 = vmatprep.subr.mxu0 0.0
    %2385 = vmatpush1.msra.mxu0 0.0
    %2386 = vmatprep.subr.mxu0 0.0
    %2387 = vmatpush1.msra.mxu0 0.0
    %2388 = vmatprep.subr.mxu0 0.0
    %2389 = vmatpush1.msra.mxu0 0.0
    %2390 = vmatprep.subr.mxu0 0.0
    %2391 = vmatpush1.msra.mxu0 0.0
    %2392 = vmatprep.subr.mxu0 0.0
    %2393 = vmatpush1.msra.mxu0 0.0
    %2394 = vmatprep.subr.mxu0 0.0
    %2395 = vmatpush1.msra.mxu0 0.0
    %2396 = vmatprep.subr.mxu0 %v1512
    %2397 = vmatpush1.msra.mxu0 %v1511
    %2398 = vmatprep.subr.mxu0 %v1510
    %2399 = vmatpush1.msra.mxu0 %v1509
    %2400 = vmatprep.subr.mxu0 %v1508
    %2401 = vmatpush1.msra.mxu0 %v1507
    %2402 = vmatprep.subr.mxu0 %v1506
    %2403 = vmatpush1.msra.mxu0 %v1505
    %2404 = vmatprep.subr.mxu0 %v1504
    %2405 = vmatpush1.msra.mxu0 %v1503
    %2406 = vmatprep.subr.mxu0 %v1502
    %2407 = vmatpush1.msra.mxu0 %v1501
    %2408 = vmatprep.subr.mxu0 %v1500
    %2409 = vmatpush1.msra.mxu0 %v1499
    %2410 = vmatprep.subr.mxu0 %v1498
    %2411 = vmatpush1.msra.mxu0 %v1497
    %2412 = vmatprep.subr.mxu0 0.0
    %2413 = vmatpush2.msra.mxu0 0.0
    %2414 = vmatprep.subr.mxu0 0.0
    %2415 = vmatpush2.msra.mxu0 0.0
    %2416 = vmatprep.subr.mxu0 0.0
    %2417 = vmatpush2.msra.mxu0 0.0
    %2418 = vmatprep.subr.mxu0 0.0
    %2419 = vmatpush2.msra.mxu0 0.0
    %2420 = vmatprep.subr.mxu0 0.0
    %2421 = vmatpush2.msra.mxu0 0.0
    %2422 = vmatprep.subr.mxu0 0.0
    %2423 = vmatpush2.msra.mxu0 0.0
    %2424 = vmatprep.subr.mxu0 0.0
    %2425 = vmatpush2.msra.mxu0 0.0
    %2426 = vmatprep.subr.mxu0 0.0
    %2427 = vmatpush2.msra.mxu0 0.0
    %2428 = vmatprep.subr.mxu0 0.0
    %2429 = vmatpush2.msra.mxu0 0.0
    %2430 = vmatprep.subr.mxu0 0.0
    %2431 = vmatpush2.msra.mxu0 0.0
    %2432 = vmatprep.subr.mxu0 0.0
    %2433 = vmatpush2.msra.mxu0 0.0
    %2434 = vmatprep.subr.mxu0 0.0
    %2435 = vmatpush2.msra.mxu0 0.0
    %2436 = vmatprep.subr.mxu0 0.0
    %2437 = vmatpush2.msra.mxu0 0.0
    %2438 = vmatprep.subr.mxu0 0.0
    %2439 = vmatpush2.msra.mxu0 0.0
    %2440 = vmatprep.subr.mxu0 0.0
    %2441 = vmatpush2.msra.mxu0 0.0
    %2442 = vmatprep.subr.mxu0 0.0
    %2443 = vmatpush2.msra.mxu0 0.0
    %2444 = vmatprep.mubr.f32.mxu0 0.0
    %2445 = vmatmul.mubr.f32.gmra.mxu0 %v2378
    %v2446 = vpop.f32.mrf.mxu0
    %v2447 = vadd.f32 0.0, %v2446
    %v2448 = vpop.f32.mrf.mxu0
    %v2449 = vadd.f32 0.0, %v2448
    %2450 = vdwg.mxu0
    %v2453 = vrot.slane %v2447, 4
    %v2454 = vrot.slane %v2449, 4
    %v2457 = vadd.f32 %v2371, %v2453
    %v2458 = vadd.f32 %v2374, %v2454
    %v2459 = vmul.f32 %v2457, %v53
    %v2460 = vmul.f32 %v2458, %v54
    %v2461 = vtanh.pop %v2459
    %v2462 = vtanh.pop %v2460
    %v2463 = vmul.f32 %v2461, 0.5
    %v2464 = vmul.f32 %v2462, 0.5
    %v2465 = vadd.f32 %v2463, 0.5
    %v2466 = vadd.f32 %v2464, 0.5
    %v2467 = vsel %vm51, %v2461, %v2465
    %v2468 = vsel %vm52, %v2462, %v2466
    %v2470 = vrot.slane %v2335, 6
    %v2472 = vmul.f32 %v2467, %v2470
    %2474 = vrot.lane.b32.xlu0 %v2467, 64
    %v2475 = vpop.permute.xlu0 %2474
    %v2477 = vmul.f32 %v2467, %v2475
    %2479 = vrot.lane.b32.xlu0 %v2477, 32
    %v2480 = vpop.permute.xlu0 %2479
    %v2482 = vadd.f32 %v2472, %v2480
    %v2484 = vrot.slane %v2349, 6
    %v2486 = vmul.f32 %v2468, %v2484
    %2488 = vrot.lane.b32.xlu0 %v2468, 64
    %v2489 = vpop.permute.xlu0 %2488
    %v2491 = vmul.f32 %v2468, %v2489
    %2493 = vrot.lane.b32.xlu0 %v2491, 32
    %v2494 = vpop.permute.xlu0 %2493
    %v2496 = vadd.f32 %v2486, %v2494
    %v2497 = vtanh.pop %v2482
    %2499 = vrot.lane.b32.xlu0 %v2497, 64
    %v2500 = vpop.permute.xlu0 %2499
    %v2502 = vmul.f32 %v2467, %v2500
    %v2503 = vtanh.pop %v2496
    %2505 = vrot.lane.b32.xlu0 %v2503, 64
    %v2506 = vpop.permute.xlu0 %2505
    %v2508 = vmul.f32 %v2468, %v2506
    %2510 = vrot.lane.b32.xlu0 %v2502, 32
    %v2511 = vpop.permute.xlu0 %2510
    %2514 = vrot.lane.b32.xlu0 %v2508, 64
    %v2515 = vpop.permute.xlu0 %2514
    %v2517 = vsel %vm77, %v2511, %v2515
    %v2518 = vld [vmem:[#allocation2 + $0x10] sm:$0xc0]
    %v2519 = vld [vmem:[#allocation2 + $0x8] sm:$0x3]
    %v2521 = vrot.slane %v2519, 2
    %v2524 = vrot.slane %v2517, 4
    %v2525 = vsel %vm186, %v2524, 0
    %2527 = vmatprep.subr.mxu0 0.0
    %2528 = vmatpush1.msra.mxu0 0.0
    %2529 = vmatprep.subr.mxu0 0.0
    %2530 = vmatpush1.msra.mxu0 0.0
    %2531 = vmatprep.subr.mxu0 0.0
    %2532 = vmatpush1.msra.mxu0 0.0
    %2533 = vmatprep.subr.mxu0 0.0
    %2534 = vmatpush1.msra.mxu0 0.0
    %2535 = vmatprep.subr.mxu0 0.0
    %2536 = vmatpush1.msra.mxu0 0.0
    %2537 = vmatprep.subr.mxu0 0.0
    %2538 = vmatpush1.msra.mxu0 0.0
    %2539 = vmatprep.subr.mxu0 0.0
    %2540 = vmatpush1.msra.mxu0 0.0
    %2541 = vmatprep.subr.mxu0 0.0
    %2542 = vmatpush1.msra.mxu0 0.0
    %2543 = vmatprep.subr.mxu0 %v1512
    %2544 = vmatpush1.msra.mxu0 %v1511
    %2545 = vmatprep.subr.mxu0 %v1510
    %2546 = vmatpush1.msra.mxu0 %v1509
    %2547 = vmatprep.subr.mxu0 %v1508
    %2548 = vmatpush1.msra.mxu0 %v1507
    %2549 = vmatprep.subr.mxu0 %v1506
    %2550 = vmatpush1.msra.mxu0 %v1505
    %2551 = vmatprep.subr.mxu0 %v1504
    %2552 = vmatpush1.msra.mxu0 %v1503
    %2553 = vmatprep.subr.mxu0 %v1502
    %2554 = vmatpush1.msra.mxu0 %v1501
    %2555 = vmatprep.subr.mxu0 %v1500
    %2556 = vmatpush1.msra.mxu0 %v1499
    %2557 = vmatprep.subr.mxu0 %v1498
    %2558 = vmatpush1.msra.mxu0 %v1497
    %2559 = vmatprep.subr.mxu0 0.0
    %2560 = vmatpush2.msra.mxu0 0.0
    %2561 = vmatprep.subr.mxu0 0.0
    %2562 = vmatpush2.msra.mxu0 0.0
    %2563 = vmatprep.subr.mxu0 0.0
    %2564 = vmatpush2.msra.mxu0 0.0
    %2565 = vmatprep.subr.mxu0 0.0
    %2566 = vmatpush2.msra.mxu0 0.0
    %2567 = vmatprep.subr.mxu0 0.0
    %2568 = vmatpush2.msra.mxu0 0.0
    %2569 = vmatprep.subr.mxu0 0.0
    %2570 = vmatpush2.msra.mxu0 0.0
    %2571 = vmatprep.subr.mxu0 0.0
    %2572 = vmatpush2.msra.mxu0 0.0
    %2573 = vmatprep.subr.mxu0 0.0
    %2574 = vmatpush2.msra.mxu0 0.0
    %2575 = vmatprep.subr.mxu0 0.0
    %2576 = vmatpush2.msra.mxu0 0.0
    %2577 = vmatprep.subr.mxu0 0.0
    %2578 = vmatpush2.msra.mxu0 0.0
    %2579 = vmatprep.subr.mxu0 0.0
    %2580 = vmatpush2.msra.mxu0 0.0
    %2581 = vmatprep.subr.mxu0 0.0
    %2582 = vmatpush2.msra.mxu0 0.0
    %2583 = vmatprep.subr.mxu0 0.0
    %2584 = vmatpush2.msra.mxu0 0.0
    %2585 = vmatprep.subr.mxu0 0.0
    %2586 = vmatpush2.msra.mxu0 0.0
    %2587 = vmatprep.subr.mxu0 0.0
    %2588 = vmatpush2.msra.mxu0 0.0
    %2589 = vmatprep.subr.mxu0 0.0
    %2590 = vmatpush2.msra.mxu0 0.0
    %2591 = vmatprep.mubr.f32.mxu0 0.0
    %2592 = vmatmul.mubr.f32.gmra.mxu0 %v2525
    %v2593 = vpop.f32.mrf.mxu0
    %v2594 = vadd.f32 0.0, %v2593
    %v2595 = vpop.f32.mrf.mxu0
    %v2596 = vadd.f32 0.0, %v2595
    %2597 = vdwg.mxu0
    %v2600 = vrot.slane %v2594, 2
    %v2601 = vrot.slane %v2596, 2
    %v2604 = vadd.f32 %v2518, %v2600
    %v2605 = vadd.f32 %v2521, %v2601
    %v2606 = vmul.f32 %v2604, %v53
    %v2607 = vmul.f32 %v2605, %v54
    %v2608 = vtanh.pop %v2606
    %v2609 = vtanh.pop %v2607
    %v2610 = vmul.f32 %v2608, 0.5
    %v2611 = vmul.f32 %v2609, 0.5
    %v2612 = vadd.f32 %v2610, 0.5
    %v2613 = vadd.f32 %v2611, 0.5
    %v2614 = vsel %vm51, %v2608, %v2612
    %v2615 = vsel %vm52, %v2609, %v2613
    %v2617 = vrot.slane %v2482, 6
    %v2619 = vmul.f32 %v2614, %v2617
    %2621 = vrot.lane.b32.xlu0 %v2614, 64
    %v2622 = vpop.permute.xlu0 %2621
    %v2624 = vmul.f32 %v2614, %v2622
    %2626 = vrot.lane.b32.xlu0 %v2624, 32
    %v2627 = vpop.permute.xlu0 %2626
    %v2629 = vadd.f32 %v2619, %v2627
    %v2631 = vrot.slane %v2496, 6
    %v2633 = vmul.f32 %v2615, %v2631
    %2635 = vrot.lane.b32.xlu0 %v2615, 64
    %v2636 = vpop.permute.xlu0 %2635
    %v2638 = vmul.f32 %v2615, %v2636
    %2640 = vrot.lane.b32.xlu0 %v2638, 32
    %v2641 = vpop.permute.xlu0 %2640
    %v2643 = vadd.f32 %v2633, %v2641
    %v2644 = vtanh.pop %v2629
    %2646 = vrot.lane.b32.xlu0 %v2644, 64
    %v2647 = vpop.permute.xlu0 %2646
    %v2649 = vmul.f32 %v2614, %v2647
    %v2650 = vtanh.pop %v2643
    %2652 = vrot.lane.b32.xlu0 %v2650, 64
    %v2653 = vpop.permute.xlu0 %2652
    %v2655 = vmul.f32 %v2615, %v2653
    %v2657 = vrot.slane %v2655, 6
    %2658 = vrot.lane.b32.xlu0 %v2657, 64
    %v2659 = vpop.permute.xlu0 %2658
    %v2661 = vsel %vm77, %v1637, %v2659
    %v2662 = vrot.slane %v2508, 2
    %2663 = vrot.lane.b32.xlu0 %v2662, 64
    %v2664 = vpop.permute.xlu0 %2663
    %v2666 = vsel %vm77, %v1783, %v2664
    %v2667 = vrot.slane %v2361, 6
    %2668 = vrot.lane.b32.xlu0 %v2667, 64
    %v2669 = vpop.permute.xlu0 %2668
    %v2671 = vsel %vm77, %v1930, %v2669
    %v2672 = vrot.slane %v2215, 2
    %2673 = vrot.lane.b32.xlu0 %v2672, 64
    %v2674 = vpop.permute.xlu0 %2673
    %v2676 = vsel %vm77, %v2077, %v2674
    %v2677 = vrot.slane %v2074, 6
    %2678 = vrot.lane.b32.xlu0 %v2677, 64
    %v2679 = vpop.permute.xlu0 %2678
    %v2681 = vsel %vm77, %v2218, %v2679
    %v2682 = vrot.slane %v1927, 2
    %2683 = vrot.lane.b32.xlu0 %v2682, 64
    %v2684 = vpop.permute.xlu0 %2683
    %v2686 = vsel %vm77, %v2364, %v2684
    %v2687 = vrot.slane %v1780, 6
    %2688 = vrot.lane.b32.xlu0 %v2687, 64
    %v2689 = vpop.permute.xlu0 %2688
    %v2691 = vsel %vm77, %v2511, %v2689
    %2693 = vrot.lane.b32.xlu0 %v2649, 32
    %v2694 = vpop.permute.xlu0 %2693
    %v2696 = vrot.slane %v1634, 2
    %2697 = vrot.lane.b32.xlu0 %v2696, 64
    %v2698 = vpop.permute.xlu0 %2697
    %v2700 = vsel %vm77, %v2694, %v2698
    %v2701 = vsel %vm1373, %v2661, %v2666
    %v2702 = vsel %vm1375, %v2701, %v2671
    %v2703 = vsel %vm1377, %v2702, %v2676
    %v2704 = vsel %vm1373, %v2681, %v2686
    %v2705 = vsel %vm1375, %v2704, %v2691
    %v2706 = vsel %vm1377, %v2705, %v2700
    %v2707 = vld [vmem:[%s7] sm:$0xff]
    %v2708 = vld [vmem:[%s7 + $0x8] sm:$0xff]
    %v2709 = vld [vmem:[%s7 + $0x10] sm:$0xff]
    %v2710 = vld [vmem:[%s7 + $0x18] sm:$0xff]
    %v2711 = vld [vmem:[%s7 + $0x20] sm:$0xff]
    %v2712 = vld [vmem:[%s7 + $0x28] sm:$0xff]
    %v2713 = vld [vmem:[%s7 + $0x30] sm:$0xff]
    %v2714 = vld [vmem:[%s7 + $0x38] sm:$0xff]
    %v2715 = vld [vmem:[%s8] sm:$0xff]
    %v2716 = vld [vmem:[%s8 + $0x8] sm:$0xff]
    %v2717 = vld [vmem:[%s8 + $0x10] sm:$0xff]
    %v2718 = vld [vmem:[%s8 + $0x18] sm:$0xff]
    %v2719 = vld [vmem:[%s8 + $0x20] sm:$0xff]
    %v2720 = vld [vmem:[%s8 + $0x28] sm:$0xff]
    %v2721 = vld [vmem:[%s8 + $0x30] sm:$0xff]
    %v2722 = vld [vmem:[%s8 + $0x38] sm:$0xff]
    %v2724 = vrot.slane %v2706, 6
    %v2725 = vsel %vm186, %v2724, 0
    %2727 = vmatprep.subr.mxu0 0.0
    %2728 = vmatpush1.msra.mxu0 0.0
    %2729 = vmatprep.subr.mxu0 0.0
    %2730 = vmatpush1.msra.mxu0 0.0
    %2731 = vmatprep.subr.mxu0 0.0
    %2732 = vmatpush1.msra.mxu0 0.0
    %2733 = vmatprep.subr.mxu0 0.0
    %2734 = vmatpush1.msra.mxu0 0.0
    %2735 = vmatprep.subr.mxu0 0.0
    %2736 = vmatpush1.msra.mxu0 0.0
    %2737 = vmatprep.subr.mxu0 0.0
    %2738 = vmatpush1.msra.mxu0 0.0
    %2739 = vmatprep.subr.mxu0 0.0
    %2740 = vmatpush1.msra.mxu0 0.0
    %2741 = vmatprep.subr.mxu0 0.0
    %2742 = vmatpush1.msra.mxu0 0.0
    %2743 = vmatprep.subr.mxu0 0.0
    %2744 = vmatpush1.msra.mxu0 %v2722
    %2745 = vmatprep.subr.mxu0 0.0
    %2746 = vmatpush1.msra.mxu0 %v2721
    %2747 = vmatprep.subr.mxu0 0.0
    %2748 = vmatpush1.msra.mxu0 %v2720
    %2749 = vmatprep.subr.mxu0 0.0
    %2750 = vmatpush1.msra.mxu0 %v2719
    %2751 = vmatprep.subr.mxu0 0.0
    %2752 = vmatpush1.msra.mxu0 %v2718
    %2753 = vmatprep.subr.mxu0 0.0
    %2754 = vmatpush1.msra.mxu0 %v2717
    %2755 = vmatprep.subr.mxu0 0.0
    %2756 = vmatpush1.msra.mxu0 %v2716
    %2757 = vmatprep.subr.mxu0 0.0
    %2758 = vmatpush1.msra.mxu0 %v2715
    %2759 = vmatprep.subr.mxu0 0.0
    %2760 = vmatpush2.msra.mxu0 0.0
    %2761 = vmatprep.subr.mxu0 0.0
    %2762 = vmatpush2.msra.mxu0 0.0
    %2763 = vmatprep.subr.mxu0 0.0
    %2764 = vmatpush2.msra.mxu0 0.0
    %2765 = vmatprep.subr.mxu0 0.0
    %2766 = vmatpush2.msra.mxu0 0.0
    %2767 = vmatprep.subr.mxu0 0.0
    %2768 = vmatpush2.msra.mxu0 0.0
    %2769 = vmatprep.subr.mxu0 0.0
    %2770 = vmatpush2.msra.mxu0 0.0
    %2771 = vmatprep.subr.mxu0 0.0
    %2772 = vmatpush2.msra.mxu0 0.0
    %2773 = vmatprep.subr.mxu0 0.0
    %2774 = vmatpush2.msra.mxu0 0.0
    %2775 = vmatprep.subr.mxu0 0.0
    %2776 = vmatpush2.msra.mxu0 0.0
    %2777 = vmatprep.subr.mxu0 0.0
    %2778 = vmatpush2.msra.mxu0 0.0
    %2779 = vmatprep.subr.mxu0 0.0
    %2780 = vmatpush2.msra.mxu0 0.0
    %2781 = vmatprep.subr.mxu0 0.0
    %2782 = vmatpush2.msra.mxu0 0.0
    %2783 = vmatprep.subr.mxu0 0.0
    %2784 = vmatpush2.msra.mxu0 0.0
    %2785 = vmatprep.subr.mxu0 0.0
    %2786 = vmatpush2.msra.mxu0 0.0
    %2787 = vmatprep.subr.mxu0 0.0
    %2788 = vmatpush2.msra.mxu0 0.0
    %2789 = vmatprep.subr.mxu0 0.0
    %2790 = vmatpush2.msra.mxu0 0.0
    %2791 = vmatprep.mubr.f32.mxu0 0.0
    %2792 = vmatmul.mubr.f32.gmra.mxu0 %v2725
    %v2793 = vpop.f32.mrf.mxu0
    %v2794 = vadd.f32 0.0, %v2793
    %v2795 = vpop.f32.mrf.mxu0
    %2796 = vdwg.mxu0
    %v2798 = vsel %vm186, %v2703, 0
    %2800 = vmatprep.subr.mxu0 0.0
    %2801 = vmatpush1.msra.mxu0 0.0
    %2802 = vmatprep.subr.mxu0 0.0
    %2803 = vmatpush1.msra.mxu0 0.0
    %2804 = vmatprep.subr.mxu0 0.0
    %2805 = vmatpush1.msra.mxu0 0.0
    %2806 = vmatprep.subr.mxu0 0.0
    %2807 = vmatpush1.msra.mxu0 0.0
    %2808 = vmatprep.subr.mxu0 0.0
    %2809 = vmatpush1.msra.mxu0 0.0
    %2810 = vmatprep.subr.mxu0 0.0
    %2811 = vmatpush1.msra.mxu0 0.0
    %2812 = vmatprep.subr.mxu0 0.0
    %2813 = vmatpush1.msra.mxu0 0.0
    %2814 = vmatprep.subr.mxu0 0.0
    %2815 = vmatpush1.msra.mxu0 0.0
    %2816 = vmatprep.subr.mxu0 0.0
    %2817 = vmatpush1.msra.mxu0 %v2714
    %2818 = vmatprep.subr.mxu0 0.0
    %2819 = vmatpush1.msra.mxu0 %v2713
    %2820 = vmatprep.subr.mxu0 0.0
    %2821 = vmatpush1.msra.mxu0 %v2712
    %2822 = vmatprep.subr.mxu0 0.0
    %2823 = vmatpush1.msra.mxu0 %v2711
    %2824 = vmatprep.subr.mxu0 0.0
    %2825 = vmatpush1.msra.mxu0 %v2710
    %2826 = vmatprep.subr.mxu0 0.0
    %2827 = vmatpush1.msra.mxu0 %v2709
    %2828 = vmatprep.subr.mxu0 0.0
    %2829 = vmatpush1.msra.mxu0 %v2708
    %2830 = vmatprep.subr.mxu0 0.0
    %2831 = vmatpush1.msra.mxu0 %v2707
    %2832 = vmatprep.subr.mxu0 0.0
    %2833 = vmatpush2.msra.mxu0 0.0
    %2834 = vmatprep.subr.mxu0 0.0
    %2835 = vmatpush2.msra.mxu0 0.0
    %2836 = vmatprep.subr.mxu0 0.0
    %2837 = vmatpush2.msra.mxu0 0.0
    %2838 = vmatprep.subr.mxu0 0.0
    %2839 = vmatpush2.msra.mxu0 0.0
    %2840 = vmatprep.subr.mxu0 0.0
    %2841 = vmatpush2.msra.mxu0 0.0
    %2842 = vmatprep.subr.mxu0 0.0
    %2843 = vmatpush2.msra.mxu0 0.0
    %2844 = vmatprep.subr.mxu0 0.0
    %2845 = vmatpush2.msra.mxu0 0.0
    %2846 = vmatprep.subr.mxu0 0.0
    %2847 = vmatpush2.msra.mxu0 0.0
    %2848 = vmatprep.subr.mxu0 0.0
    %2849 = vmatpush2.msra.mxu0 0.0
    %2850 = vmatprep.subr.mxu0 0.0
    %2851 = vmatpush2.msra.mxu0 0.0
    %2852 = vmatprep.subr.mxu0 0.0
    %2853 = vmatpush2.msra.mxu0 0.0
    %2854 = vmatprep.subr.mxu0 0.0
    %2855 = vmatpush2.msra.mxu0 0.0
    %2856 = vmatprep.subr.mxu0 0.0
    %2857 = vmatpush2.msra.mxu0 0.0
    %2858 = vmatprep.subr.mxu0 0.0
    %2859 = vmatpush2.msra.mxu0 0.0
    %2860 = vmatprep.subr.mxu0 0.0
    %2861 = vmatpush2.msra.mxu0 0.0
    %2862 = vmatprep.subr.mxu0 0.0
    %2863 = vmatpush2.msra.mxu0 0.0
    %2864 = vmatprep.mubr.f32.mxu0 0.0
    %2865 = vmatmul.mubr.f32.gmra.mxu0 %v2798
    %v2866 = vpop.f32.mrf.mxu0
    %v2867 = vadd.f32 %v2794, %v2866
    %v2868 = vpop.f32.mrf.mxu0
    %2869 = vdwg.mxu0
    %v2870 = vld [vmem:[%s9] sm:$0x1]
    %v2872 = vlaneseq
    %v2873 = vshrl.u32 %v2872, 7
    %v2874 = vsub.s32 0, %v2873
    %v2875 = vrot.slane %v2870, %v2874
    %v2877 = vadd.f32 %v2867, %v2875
    %vm2878 = vcmask 9216
    %2879 = vst.msk [vmem:[#allocation3] sm:$0x3] %vm2878, %v2877
    // Predicated region
    $region42: #{lstm_text_classifier_forward.1} parent=1 // pred_check
      _
    $region43: #{lstm_text_classifier_forward.1} parent=1 // pred_check_branch
      %2881 = sbr.rel (0) target = $region45
    $region44: #{lstm_text_classifier_forward.1} parent=1 // pred_region
      %s2883 = ssub.s32 32, 32
      %2884 = vsyncadd [#allocation4], %s2883
      %s2886 = sshll.u32 [#allocation3], 4
      %s2887 = int_to_ptr.vmem [resolvable:$true] %s2886
      %2889 = dma.vmem_to_hbm [thread:$0]  %s2887, 32, %s10, [#allocation4]
    $region45: #{lstm_text_classifier_forward.1} parent=1 // pred_fallthru
      _
    // Predicated region
    $region46: #{lstm_text_classifier_forward.1} parent=1 // pred_check
      _
    $region47: #{lstm_text_classifier_forward.1} parent=1 // pred_check_branch
      %2891 = sbr.rel (0) target = $region49
    $region48: #{lstm_text_classifier_forward.1} parent=1 // pred_region
      %2892 = dma.done [#allocation4], 32
    $region49: #{lstm_text_classifier_forward.1} parent=1 // pred_fallthru
      _
    %2893 = vsyncpa [#allocation4], 1

</llo_original>
